<compile_context>
chip_gen: v7x
topology: tpu7x:2x2x1
jax: 0.10.0
libtpu: 0.0.40
codegen_flags: <defaults>
</compile_context>

<pallas_src>
import functools

import jax
import jax.numpy as jnp
from jax import lax
from jax.experimental import pallas as pl
from jax.experimental.pallas import tpu as pltpu

# ----------------------------- small synthetic config -----------------------------
B, P, S = 2, 4, 8          # batch, num visual patches, text seq len
D = 32                     # hidden size ("qwen_dim")
V = 64                     # model vocab size
H, DH = 4, 8               # attention heads, head dim  (H * DH == D)
I = 64                     # MLP intermediate size
L = 2                      # number of decoder layers
EPS = 1e-6
ROPE_THETA = 10000.0
DTYPE = jnp.float32        # residual-stream / logits dtype
WDTYPE = jnp.bfloat16      # MXU operand dtype (accumulation stays f32)


def _round_up(n, m):
    return ((n + m - 1) // m) * m


# ================================ fused Pallas kernel ================================

def _decoder_kernel(x_ref, cos_ref, sin_ref,
                    ln1_ref, wqkv_ref, bqkv_ref, wo_ref, bo_ref,
                    ln2_ref, wgu_ref, bgu_ref, wd_ref, bd_ref,
                    lnf_ref, wh_ref, bh_ref,
                    logits_ref,
                    *, num_layers, num_heads, head_dim, num_patches, inter):
    """Full decoder stack for one batch element: (1, Tp, D) -> (1, Tp, Vp) logits."""
    Tp = x_ref.shape[1]
    hd = num_heads * head_dim
    half = head_dim // 2
    scale = 1.0 / (head_dim ** 0.5)

    x = x_ref[0].astype(jnp.float32)            # (Tp, D) residual stream, kept on-chip
    cos = cos_ref[...].astype(jnp.float32)      # (Tp, DH)
    sin = sin_ref[...].astype(jnp.float32)

    # prefix + causal mask built in-kernel (no HBM bias tensor); padded rows/cols handled too
    row = lax.broadcasted_iota(jnp.int32, (Tp, Tp), 0)
    col = lax.broadcasted_iota(jnp.int32, (Tp, Tp), 1)
    allowed = jnp.logical_or(col <= row, col < num_patches)
    bias = jnp.where(allowed, 0.0, -1e9).astype(jnp.float32)      # (Tp, Tp), f32

    def rms(h, w):                               # RMSNorm in f32
        var = jnp.mean(h * h, axis=-1, keepdims=True)
        return h * lax.rsqrt(var + EPS) * w

    def rope(t):                                 # t: (H, Tp, DH) — one pass for all heads
        t1 = t[..., :half]
        t2 = t[..., half:]
        rot = jnp.concatenate([-t2, t1], axis=-1)
        # TODO(synk): pltpu.roll(t, shift=half, axis=-1) * sign would push this to the XLU slot.
        return t * cos[None] + rot * sin[None]

    for l in range(num_layers):                  # L=2 — statically unrolled
        # ---- attention: RMSNorm + fused QKV + RoPE + masked softmax + O-proj + residual ----
        h = rms(x, ln1_ref[l])                                              # (Tp, D)
        qkv = jnp.dot(h.astype(WDTYPE), wqkv_ref[l],
                      preferred_element_type=jnp.float32) + bqkv_ref[l]     # (Tp, 3*hd) f32
        # head split into a batched (H, Tp, DH) layout (leading-dim stack, no tiled reshape)
        q = jnp.stack([qkv[:, i * head_dim:(i + 1) * head_dim]
                       for i in range(num_heads)], axis=0)
        k = jnp.stack([qkv[:, hd + i * head_dim:hd + (i + 1) * head_dim]
                       for i in range(num_heads)], axis=0)
        v = jnp.stack([qkv[:, 2 * hd + i * head_dim:2 * hd + (i + 1) * head_dim]
                       for i in range(num_heads)], axis=0)
        q = rope(q) * scale                      # fold 1/sqrt(DH) into q
        k = rope(k)

        # ONE batched score matmul + ONE softmax chain over (H, Tp, Tp)
        s = jnp.einsum('hqd,hkd->hqk', q.astype(WDTYPE), k.astype(WDTYPE),
                       preferred_element_type=jnp.float32) + bias[None]     # f32
        m = jnp.max(s, axis=-1, keepdims=True)
        p = jnp.exp(s - m)
        inv = pl.reciprocal(jnp.sum(p, axis=-1, keepdims=True), approx=True)  # EUP slot
        o = jnp.einsum('hqk,hkd->hqd', p.astype(WDTYPE), v.astype(WDTYPE),
                       preferred_element_type=jnp.float32) * inv            # (H, Tp, DH)

        # ONE O-projection over all heads + residual add
        o2d = jnp.concatenate([o[i] for i in range(num_heads)], axis=-1)    # (Tp, hd)
        x = x + jnp.dot(o2d.astype(WDTYPE), wo_ref[l],
                        preferred_element_type=jnp.float32) + bo_ref[l]

        # ---- MLP: RMSNorm + fused gate/up + SiLU*u + down + residual ----
        h = rms(x, ln2_ref[l])
        gu = jnp.dot(h.astype(WDTYPE), wgu_ref[l],
                     preferred_element_type=jnp.float32) + bgu_ref[l]       # (Tp, 2*I)
        act = jax.nn.silu(gu[:, :inter]) * gu[:, inter:]
        x = x + jnp.dot(act.astype(WDTYPE), wd_ref[l],
                        preferred_element_type=jnp.float32) + bd_ref[l]

    # ---- final RMSNorm + output head (vocab lane-padded to 128 -> dense stores) ----
    h = rms(x, lnf_ref[...])
    logits = jnp.dot(h.astype(WDTYPE), wh_ref[...],
                     preferred_element_type=jnp.float32) + bh_ref[...]
    logits_ref[0] = logits.astype(logits_ref.dtype)


def decoder_pallas(params, x_pad, cos, sin, num_patches):
    """Single fused pallas_call for the whole decoder stack. x_pad: (B, Tp, D)."""
    Bq, Tp, Dd = x_pad.shape
    Vp = params["w_head"].shape[1]
    hd3 = 3 * H * DH

    kern = functools.partial(_decoder_kernel, num_layers=L, num_heads=H,
                             head_dim=DH, num_patches=num_patches, inter=I)

    def full(shape):  # whole-array block, constant across the batch grid
        return pl.BlockSpec(shape, lambda b, _n=len(shape): (0,) * _n)

    return pl.pallas_call(
        kern,
        grid=(Bq,),
        out_shape=jax.ShapeDtypeStruct((Bq, Tp, Vp), DTYPE),
        in_specs=[
            pl.BlockSpec((1, Tp, Dd), lambda b: (b, 0, 0)),   # x (per-batch)
            full((Tp, DH)), full((Tp, DH)),                   # cos, sin
            full((L, 1, Dd)),                                 # input_ln
            full((L, Dd, hd3)), full((L, 1, hd3)),            # fused q|k|v
            full((L, H * DH, Dd)), full((L, 1, Dd)),          # o_proj
            full((L, 1, Dd)),                                 # post_ln
            full((L, Dd, 2 * I)), full((L, 1, 2 * I)),        # fused gate|up
            full((L, I, Dd)), full((L, 1, Dd)),               # down
            full((1, Dd)),                                    # final_ln
            full((Dd, Vp)), full((1, Vp)),                    # output head (vocab padded)
        ],
        out_specs=pl.BlockSpec((1, Tp, Vp), lambda b: (b, 0, 0)),
        compiler_params=pltpu.CompilerParams(dimension_semantics=("parallel",)),
    )(x_pad, cos, sin,
      params["ln1"], params["wqkv"], params["bqkv"], params["wo"], params["bo"],
      params["ln2"], params["wgu"], params["bgu"], params["wd"], params["bd"],
      params["final_ln"], params["w_head"], params["b_head"])


# ================================ JAX glue ================================

def rope_cos_sin(T, dh, theta=ROPE_THETA):
    inv_freq = 1.0 / (theta ** (jnp.arange(0, dh, 2, dtype=jnp.float32) / dh))
    t = jnp.arange(T, dtype=jnp.float32)
    freqs = jnp.outer(t, inv_freq)                       # (T, dh/2)
    emb = jnp.concatenate([freqs, freqs], axis=-1)       # (T, dh)
    return jnp.cos(emb), jnp.sin(emb)


def init_linear(key, din, dout, scale=0.02):
    kw, kb = jax.random.split(key)
    w = jax.random.normal(kw, (din, dout), jnp.float32) * scale
    b = jax.random.normal(kb, (dout,), jnp.float32) * scale
    return w, b


def init_params(key):
    vp = _round_up(V, 128)
    keys = iter(jax.random.split(key, 3 + 4 * L))

    embed = jax.random.normal(next(keys), (V, D), jnp.float32) * 0.02
    w_text, b_text = init_linear(next(keys), D, D)
    # fold text_projection into the embedding table (one-time VxD matmul; linear over rows)
    embed_proj = embed @ w_text + b_text

    w_head, b_head = init_linear(next(keys), D, V)
    w_head = jnp.pad(w_head, ((0, 0), (0, vp - V))).astype(WDTYPE)   # lane-dense head
    b_head = jnp.pad(b_head, (0, vp - V)).reshape(1, vp)

    def stack_lin(pairs):
        ws = jnp.stack([w for w, _ in pairs]).astype(WDTYPE)         # (L, din, dout) bf16
        bs = jnp.stack([b for _, b in pairs])[:, None, :]            # (L, 1, dout)  f32
        return ws, bs

    wqkv, bqkv = stack_lin([init_linear(next(keys), D, 3 * H * DH) for _ in range(L)])
    wo, bo = stack_lin([init_linear(next(keys), H * DH, D) for _ in range(L)])
    wgu, bgu = stack_lin([init_linear(next(keys), D, 2 * I) for _ in range(L)])
    wd, bd = stack_lin([init_linear(next(keys), I, D) for _ in range(L)])

    return {
        "embed_proj": embed_proj,
        "ln1": jnp.ones((L, 1, D), jnp.float32),
        "ln2": jnp.ones((L, 1, D), jnp.float32),
        "wqkv": wqkv, "bqkv": bqkv,
        "wo": wo, "bo": bo,
        "wgu": wgu, "bgu": bgu,
        "wd": wd, "bd": bd,
        "final_ln": jnp.ones((1, D), jnp.float32),
        "w_head": w_head, "b_head": b_head,
    }


def decoder_forward(params, patch_features, input_tokens, labels=None):
    Bq, Pn, _ = patch_features.shape
    Sq = input_tokens.shape[1]
    T = Pn + Sq
    Tp = _round_up(T, 8)                                       # sublane-pad 12 -> 16

    visual = patch_features.astype(DTYPE)
    text = params["embed_proj"][input_tokens]                  # text_projection pre-folded
    x = jnp.concatenate([visual, text], axis=1)                # (B, T, D)
    x = jnp.pad(x, ((0, 0), (0, Tp - T), (0, 0)))              # pad rows are masked/sliced off

    cos, sin = rope_cos_sin(Tp, DH)

    logits_pad = decoder_pallas(params, x, cos, sin, Pn)       # ONE fused call -> (B, Tp, Vp)
    logits = logits_pad[:, Pn:Pn + Sq, :V]                     # contract shape (B, S, V)

    loss = None
    if labels is not None:
        # TODO(synk): cross-entropy (ignore_index=-100) kept in plain JAX glue.
        flat_logits = logits.reshape(-1, V)
        flat_labels = labels.reshape(-1)
        valid = flat_labels != -100
        safe = jnp.where(valid, flat_labels, 0)
        logp = jax.nn.log_softmax(flat_logits, axis=-1)
        nll = -jnp.take_along_axis(logp, safe[:, None], axis=-1)[:, 0]
        loss = jnp.sum(jnp.where(valid, nll, 0.0)) / jnp.maximum(jnp.sum(valid), 1)
    return {"logits": logits, "loss": loss}


if __name__ == "__main__":
    root = jax.random.PRNGKey(0)
    k_params, k_patch, k_tok, k_lbl = jax.random.split(root, 4)

    params = init_params(k_params)
    patch_features = jax.random.normal(k_patch, (B, P, D), DTYPE)
    input_tokens = jax.random.randint(k_tok, (B, S), 0, V)
    labels = jax.random.randint(k_lbl, (B, S), 0, V)
    labels = labels.at[:, 0].set(-100)  # exercise ignore_index

    fwd = jax.jit(decoder_forward)
    out = fwd(params, patch_features, input_tokens, labels)
    jax.block_until_ready(out["logits"])
    jax.block_until_ready(out["loss"])

    assert out["logits"].shape == (B, S, V)
    assert out["loss"].shape == ()
    print("KERNEL_OK")
</pallas_src>

<mosaic_0001>
module attributes {stable_mosaic.version = 11 : i64} {
  func.func @_decoder_kernel(%arg0: i32, %arg1: memref<1x16x32xf32, #tpu.memory_space<vmem>>, %arg2: memref<16x8xf32, #tpu.memory_space<vmem>>, %arg3: memref<16x8xf32, #tpu.memory_space<vmem>>, %arg4: memref<2x1x32xf32, #tpu.memory_space<vmem>>, %arg5: memref<2x32x96xbf16, #tpu.memory_space<vmem>>, %arg6: memref<2x1x96xf32, #tpu.memory_space<vmem>>, %arg7: memref<2x32x32xbf16, #tpu.memory_space<vmem>>, %arg8: memref<2x1x32xf32, #tpu.memory_space<vmem>>, %arg9: memref<2x1x32xf32, #tpu.memory_space<vmem>>, %arg10: memref<2x32x128xbf16, #tpu.memory_space<vmem>>, %arg11: memref<2x1x128xf32, #tpu.memory_space<vmem>>, %arg12: memref<2x64x32xbf16, #tpu.memory_space<vmem>>, %arg13: memref<2x1x32xf32, #tpu.memory_space<vmem>>, %arg14: memref<1x32xf32, #tpu.memory_space<vmem>>, %arg15: memref<32x128xbf16, #tpu.memory_space<vmem>>, %arg16: memref<1x128xf32, #tpu.memory_space<vmem>>, %arg17: memref<1x16x128xf32, #tpu.memory_space<vmem>>) attributes {dimension_semantics = [#tpu.dimension_semantics<parallel>], iteration_bounds = array<i64: 2>, scalar_prefetch = 0 : i64, scratch_operands = 0 : i64, tpu.core_type = #tpu.core_type<tc>, window_params = [{transform_indices = @transform_0, window_bounds = array<i64: 1, 16, 32>}, {pipeline_mode = #tpu.pipeline_mode<synchronous>, transform_indices = @transform_1, window_bounds = array<i64: 16, 8>}, {pipeline_mode = #tpu.pipeline_mode<synchronous>, transform_indices = @transform_2, window_bounds = array<i64: 16, 8>}, {pipeline_mode = #tpu.pipeline_mode<synchronous>, transform_indices = @transform_3, window_bounds = array<i64: 2, 1, 32>}, {pipeline_mode = #tpu.pipeline_mode<synchronous>, transform_indices = @transform_4, window_bounds = array<i64: 2, 32, 96>}, {pipeline_mode = #tpu.pipeline_mode<synchronous>, transform_indices = @transform_5, window_bounds = array<i64: 2, 1, 96>}, {pipeline_mode = #tpu.pipeline_mode<synchronous>, transform_indices = @transform_6, window_bounds = array<i64: 2, 32, 32>}, {pipeline_mode = #tpu.pipeline_mode<synchronous>, transform_indices = @transform_7, window_bounds = array<i64: 2, 1, 32>}, {pipeline_mode = #tpu.pipeline_mode<synchronous>, transform_indices = @transform_8, window_bounds = array<i64: 2, 1, 32>}, {pipeline_mode = #tpu.pipeline_mode<synchronous>, transform_indices = @transform_9, window_bounds = array<i64: 2, 32, 128>}, {pipeline_mode = #tpu.pipeline_mode<synchronous>, transform_indices = @transform_10, window_bounds = array<i64: 2, 1, 128>}, {pipeline_mode = #tpu.pipeline_mode<synchronous>, transform_indices = @transform_11, window_bounds = array<i64: 2, 64, 32>}, {pipeline_mode = #tpu.pipeline_mode<synchronous>, transform_indices = @transform_12, window_bounds = array<i64: 2, 1, 32>}, {pipeline_mode = #tpu.pipeline_mode<synchronous>, transform_indices = @transform_13, window_bounds = array<i64: 1, 32>}, {pipeline_mode = #tpu.pipeline_mode<synchronous>, transform_indices = @transform_14, window_bounds = array<i64: 32, 128>}, {pipeline_mode = #tpu.pipeline_mode<synchronous>, transform_indices = @transform_15, window_bounds = array<i64: 1, 128>}, {transform_indices = @transform_16, window_bounds = array<i64: 1, 16, 128>}]} {
    %c0 = arith.constant 0 : index
    %c0_0 = arith.constant 0 : index
    %c0_1 = arith.constant 0 : index
    %0 = vector.load %arg1[%c0, %c0_0, %c0_1] : memref<1x16x32xf32, #tpu.memory_space<vmem>>, vector<1x16x32xf32>
    %1 = vector.shape_cast %0 : vector<1x16x32xf32> to vector<16x32xf32>
    %c0_2 = arith.constant 0 : index
    %c0_3 = arith.constant 0 : index
    %2 = vector.load %arg2[%c0_2, %c0_3] : memref<16x8xf32, #tpu.memory_space<vmem>>, vector<16x8xf32>
    %c0_4 = arith.constant 0 : index
    %c0_5 = arith.constant 0 : index
    %3 = vector.load %arg3[%c0_4, %c0_5] : memref<16x8xf32, #tpu.memory_space<vmem>>, vector<16x8xf32>
    %4 = tpu.iota {dimensions = array<i32: 0>} : vector<16x16xi32>
    %5 = tpu.iota {dimensions = array<i32: 1>} : vector<16x16xi32>
    %6 = arith.cmpi sle, %5, %4 : vector<16x16xi32>
    %c4_i32 = arith.constant 4 : i32
    %7 = vector.broadcast %c4_i32 : i32 to vector<16x16xi32>
    %8 = arith.cmpi slt, %5, %7 : vector<16x16xi32>
    %9 = arith.ori %6, %8 : vector<16x16xi1>
    %cst = arith.constant 0.000000e+00 : f32
    %cst_6 = arith.constant -1.000000e+09 : f32
    %10 = vector.broadcast %cst : f32 to vector<16x16xf32>
    %11 = vector.broadcast %cst_6 : f32 to vector<16x16xf32>
    %12 = arith.select %9, %10, %11 : vector<16x16xi1>, vector<16x16xf32>
    %c0_7 = arith.constant 0 : index
    %c0_8 = arith.constant 0 : index
    %c0_9 = arith.constant 0 : index
    %13 = vector.load %arg4[%c0_7, %c0_8, %c0_9] : memref<2x1x32xf32, #tpu.memory_space<vmem>>, vector<1x1x32xf32>
    %14 = vector.shape_cast %13 : vector<1x1x32xf32> to vector<1x32xf32>
    %15 = arith.mulf %1, %1 : vector<16x32xf32>
    %cst_10 = arith.constant dense<0.000000e+00> : vector<16xf32>
    %16 = vector.multi_reduction <add>, %15, %cst_10 [1] : vector<16x32xf32> to vector<16xf32>
    %17 = vector.shape_cast %16 : vector<16xf32> to vector<16x1xf32>
    %cst_11 = arith.constant 3.200000e+01 : f32
    %18 = vector.broadcast %cst_11 : f32 to vector<16x1xf32>
    %19 = arith.divf %17, %18 : vector<16x1xf32>
    %cst_12 = arith.constant 9.99999997E-7 : f32
    %20 = vector.broadcast %cst_12 : f32 to vector<16x1xf32>
    %21 = arith.addf %19, %20 : vector<16x1xf32>
    %22 = math.rsqrt %21 : vector<16x1xf32>
    %23 = vector.broadcast %22 : vector<16x1xf32> to vector<16x32xf32>
    %24 = arith.mulf %1, %23 : vector<16x32xf32>
    %25 = vector.broadcast %14 : vector<1x32xf32> to vector<16x32xf32>
    %26 = arith.mulf %24, %25 : vector<16x32xf32>
    %27 = arith.truncf %26 : vector<16x32xf32> to vector<16x32xbf16>
    %c0_13 = arith.constant 0 : index
    %c0_14 = arith.constant 0 : index
    %c0_15 = arith.constant 0 : index
    %28 = vector.load %arg5[%c0_13, %c0_14, %c0_15] : memref<2x32x96xbf16, #tpu.memory_space<vmem>>, vector<1x32x96xbf16>
    %29 = vector.shape_cast %28 : vector<1x32x96xbf16> to vector<32x96xbf16>
    %cst_16 = arith.constant dense<0.000000e+00> : vector<16x96xf32>
    %30 = tpu.matmul %27, %29, %cst_16 {dimension_numbers = #tpu.dot_dimension_numbers<[1], [0], [0], [1], [0, 0, 1, 1], [], []>} : vector<16x32xbf16>, vector<32x96xbf16>, vector<16x96xf32> -> vector<16x96xf32>
    %c0_17 = arith.constant 0 : index
    %c0_18 = arith.constant 0 : index
    %c0_19 = arith.constant 0 : index
    %31 = vector.load %arg6[%c0_17, %c0_18, %c0_19] : memref<2x1x96xf32, #tpu.memory_space<vmem>>, vector<1x1x96xf32>
    %32 = vector.shape_cast %31 : vector<1x1x96xf32> to vector<1x96xf32>
    %33 = vector.broadcast %32 : vector<1x96xf32> to vector<16x96xf32>
    %34 = arith.addf %30, %33 : vector<16x96xf32>
    %35 = vector.extract_strided_slice %34 {offsets = [0, 0], sizes = [16, 8], strides = [1, 1]} : vector<16x96xf32> to vector<16x8xf32>
    %36 = vector.extract_strided_slice %34 {offsets = [0, 8], sizes = [16, 8], strides = [1, 1]} : vector<16x96xf32> to vector<16x8xf32>
    %37 = vector.extract_strided_slice %34 {offsets = [0, 16], sizes = [16, 8], strides = [1, 1]} : vector<16x96xf32> to vector<16x8xf32>
    %38 = vector.extract_strided_slice %34 {offsets = [0, 24], sizes = [16, 8], strides = [1, 1]} : vector<16x96xf32> to vector<16x8xf32>
    %39 = vector.shape_cast %35 : vector<16x8xf32> to vector<1x16x8xf32>
    %40 = vector.shape_cast %36 : vector<16x8xf32> to vector<1x16x8xf32>
    %41 = vector.shape_cast %37 : vector<16x8xf32> to vector<1x16x8xf32>
    %42 = vector.shape_cast %38 : vector<16x8xf32> to vector<1x16x8xf32>
    %43 = tpu.concatenate %39, %40, %41, %42 in 0 : vector<1x16x8xf32>, vector<1x16x8xf32>, vector<1x16x8xf32>, vector<1x16x8xf32> -> vector<4x16x8xf32>
    %44 = vector.extract_strided_slice %34 {offsets = [0, 32], sizes = [16, 8], strides = [1, 1]} : vector<16x96xf32> to vector<16x8xf32>
    %45 = vector.extract_strided_slice %34 {offsets = [0, 40], sizes = [16, 8], strides = [1, 1]} : vector<16x96xf32> to vector<16x8xf32>
    %46 = vector.extract_strided_slice %34 {offsets = [0, 48], sizes = [16, 8], strides = [1, 1]} : vector<16x96xf32> to vector<16x8xf32>
    %47 = vector.extract_strided_slice %34 {offsets = [0, 56], sizes = [16, 8], strides = [1, 1]} : vector<16x96xf32> to vector<16x8xf32>
    %48 = vector.shape_cast %44 : vector<16x8xf32> to vector<1x16x8xf32>
    %49 = vector.shape_cast %45 : vector<16x8xf32> to vector<1x16x8xf32>
    %50 = vector.shape_cast %46 : vector<16x8xf32> to vector<1x16x8xf32>
    %51 = vector.shape_cast %47 : vector<16x8xf32> to vector<1x16x8xf32>
    %52 = tpu.concatenate %48, %49, %50, %51 in 0 : vector<1x16x8xf32>, vector<1x16x8xf32>, vector<1x16x8xf32>, vector<1x16x8xf32> -> vector<4x16x8xf32>
    %53 = vector.extract_strided_slice %34 {offsets = [0, 64], sizes = [16, 8], strides = [1, 1]} : vector<16x96xf32> to vector<16x8xf32>
    %54 = vector.extract_strided_slice %34 {offsets = [0, 72], sizes = [16, 8], strides = [1, 1]} : vector<16x96xf32> to vector<16x8xf32>
    %55 = vector.extract_strided_slice %34 {offsets = [0, 80], sizes = [16, 8], strides = [1, 1]} : vector<16x96xf32> to vector<16x8xf32>
    %56 = vector.extract_strided_slice %34 {offsets = [0, 88], sizes = [16, 8], strides = [1, 1]} : vector<16x96xf32> to vector<16x8xf32>
    %57 = vector.shape_cast %53 : vector<16x8xf32> to vector<1x16x8xf32>
    %58 = vector.shape_cast %54 : vector<16x8xf32> to vector<1x16x8xf32>
    %59 = vector.shape_cast %55 : vector<16x8xf32> to vector<1x16x8xf32>
    %60 = vector.shape_cast %56 : vector<16x8xf32> to vector<1x16x8xf32>
    %61 = tpu.concatenate %57, %58, %59, %60 in 0 : vector<1x16x8xf32>, vector<1x16x8xf32>, vector<1x16x8xf32>, vector<1x16x8xf32> -> vector<4x16x8xf32>
    %62 = vector.extract_strided_slice %43 {offsets = [0, 0, 0], sizes = [4, 16, 4], strides = [1, 1, 1]} : vector<4x16x8xf32> to vector<4x16x4xf32>
    %63 = vector.extract_strided_slice %43 {offsets = [0, 0, 4], sizes = [4, 16, 4], strides = [1, 1, 1]} : vector<4x16x8xf32> to vector<4x16x4xf32>
    %cst_20 = arith.constant 0.000000e+00 : f32
    %64 = vector.broadcast %cst_20 : f32 to vector<4x16x4xf32>
    %65 = arith.subf %64, %63 : vector<4x16x4xf32>
    %66 = tpu.concatenate %65, %62 in 2 : vector<4x16x4xf32>, vector<4x16x4xf32> -> vector<4x16x8xf32>
    %67 = vector.shape_cast %2 : vector<16x8xf32> to vector<1x16x8xf32>
    %68 = vector.broadcast %67 : vector<1x16x8xf32> to vector<4x16x8xf32>
    %69 = arith.mulf %43, %68 : vector<4x16x8xf32>
    %70 = vector.shape_cast %3 : vector<16x8xf32> to vector<1x16x8xf32>
    %71 = vector.broadcast %70 : vector<1x16x8xf32> to vector<4x16x8xf32>
    %72 = arith.mulf %66, %71 : vector<4x16x8xf32>
    %73 = arith.addf %69, %72 : vector<4x16x8xf32>
    %cst_21 = arith.constant 0.353553385 : f32
    %74 = vector.broadcast %cst_21 : f32 to vector<4x16x8xf32>
    %75 = arith.mulf %73, %74 : vector<4x16x8xf32>
    %76 = vector.extract_strided_slice %52 {offsets = [0, 0, 0], sizes = [4, 16, 4], strides = [1, 1, 1]} : vector<4x16x8xf32> to vector<4x16x4xf32>
    %77 = vector.extract_strided_slice %52 {offsets = [0, 0, 4], sizes = [4, 16, 4], strides = [1, 1, 1]} : vector<4x16x8xf32> to vector<4x16x4xf32>
    %cst_22 = arith.constant 0.000000e+00 : f32
    %78 = vector.broadcast %cst_22 : f32 to vector<4x16x4xf32>
    %79 = arith.subf %78, %77 : vector<4x16x4xf32>
    %80 = tpu.concatenate %79, %76 in 2 : vector<4x16x4xf32>, vector<4x16x4xf32> -> vector<4x16x8xf32>
    %81 = vector.shape_cast %2 : vector<16x8xf32> to vector<1x16x8xf32>
    %82 = vector.broadcast %81 : vector<1x16x8xf32> to vector<4x16x8xf32>
    %83 = arith.mulf %52, %82 : vector<4x16x8xf32>
    %84 = vector.shape_cast %3 : vector<16x8xf32> to vector<1x16x8xf32>
    %85 = vector.broadcast %84 : vector<1x16x8xf32> to vector<4x16x8xf32>
    %86 = arith.mulf %80, %85 : vector<4x16x8xf32>
    %87 = arith.addf %83, %86 : vector<4x16x8xf32>
    %88 = arith.truncf %75 : vector<4x16x8xf32> to vector<4x16x8xbf16>
    %89 = arith.truncf %87 : vector<4x16x8xf32> to vector<4x16x8xbf16>
    "tpu.trace_start"() <{level = 10 : i32, message = "hqd,hkd->hqk"}> : () -> ()
    %cst_23 = arith.constant dense<0.000000e+00> : vector<4x16x16xf32>
    %90 = tpu.matmul %88, %89, %cst_23 {dimension_numbers = #tpu.dot_dimension_numbers<[2], [2], [1], [1], [0, 0, 0, 1, 1, 1], [0], [0]>} : vector<4x16x8xbf16>, vector<4x16x8xbf16>, vector<4x16x16xf32> -> vector<4x16x16xf32>
    "tpu.trace_stop"() : () -> ()
    %91 = vector.shape_cast %12 : vector<16x16xf32> to vector<1x16x16xf32>
    %92 = vector.broadcast %91 : vector<1x16x16xf32> to vector<4x16x16xf32>
    %93 = arith.addf %90, %92 : vector<4x16x16xf32>
    %cst_24 = arith.constant dense<0xFF800000> : vector<4x16xf32>
    %94 = vector.multi_reduction <maximumf>, %93, %cst_24 [2] : vector<4x16x16xf32> to vector<4x16xf32>
    %95 = vector.shape_cast %94 : vector<4x16xf32> to vector<4x16x1xf32>
    %96 = vector.broadcast %95 : vector<4x16x1xf32> to vector<4x16x16xf32>
    %97 = arith.subf %93, %96 : vector<4x16x16xf32>
    %98 = math.exp %97 : vector<4x16x16xf32>
    %cst_25 = arith.constant dense<0.000000e+00> : vector<4x16xf32>
    %99 = vector.multi_reduction <add>, %98, %cst_25 [2] : vector<4x16x16xf32> to vector<4x16xf32>
    %100 = vector.shape_cast %99 : vector<4x16xf32> to vector<4x16x1xf32>
    %101 = tpu.reciprocal %100 {approx = true} : vector<4x16x1xf32> -> vector<4x16x1xf32>
    %102 = arith.truncf %98 : vector<4x16x16xf32> to vector<4x16x16xbf16>
    %103 = arith.truncf %61 : vector<4x16x8xf32> to vector<4x16x8xbf16>
    "tpu.trace_start"() <{level = 10 : i32, message = "hqk,hkd->hqd"}> : () -> ()
    %cst_26 = arith.constant dense<0.000000e+00> : vector<4x16x8xf32>
    %104 = tpu.matmul %102, %103, %cst_26 {dimension_numbers = #tpu.dot_dimension_numbers<[2], [1], [1], [2], [0, 0, 0, 1, 1, 2], [0], [0]>} : vector<4x16x16xbf16>, vector<4x16x8xbf16>, vector<4x16x8xf32> -> vector<4x16x8xf32>
    "tpu.trace_stop"() : () -> ()
    %105 = vector.broadcast %101 : vector<4x16x1xf32> to vector<4x16x8xf32>
    %106 = arith.mulf %104, %105 : vector<4x16x8xf32>
    %107 = vector.extract_strided_slice %106 {offsets = [0, 0, 0], sizes = [1, 16, 8], strides = [1, 1, 1]} : vector<4x16x8xf32> to vector<1x16x8xf32>
    %108 = vector.shape_cast %107 : vector<1x16x8xf32> to vector<16x8xf32>
    %109 = vector.extract_strided_slice %106 {offsets = [1, 0, 0], sizes = [1, 16, 8], strides = [1, 1, 1]} : vector<4x16x8xf32> to vector<1x16x8xf32>
    %110 = vector.shape_cast %109 : vector<1x16x8xf32> to vector<16x8xf32>
    %111 = vector.extract_strided_slice %106 {offsets = [2, 0, 0], sizes = [1, 16, 8], strides = [1, 1, 1]} : vector<4x16x8xf32> to vector<1x16x8xf32>
    %112 = vector.shape_cast %111 : vector<1x16x8xf32> to vector<16x8xf32>
    %113 = vector.extract_strided_slice %106 {offsets = [3, 0, 0], sizes = [1, 16, 8], strides = [1, 1, 1]} : vector<4x16x8xf32> to vector<1x16x8xf32>
    %114 = vector.shape_cast %113 : vector<1x16x8xf32> to vector<16x8xf32>
    %115 = tpu.concatenate %108, %110, %112, %114 in 1 : vector<16x8xf32>, vector<16x8xf32>, vector<16x8xf32>, vector<16x8xf32> -> vector<16x32xf32>
    %116 = arith.truncf %115 : vector<16x32xf32> to vector<16x32xbf16>
    %c0_27 = arith.constant 0 : index
    %c0_28 = arith.constant 0 : index
    %c0_29 = arith.constant 0 : index
    %117 = vector.load %arg7[%c0_27, %c0_28, %c0_29] : memref<2x32x32xbf16, #tpu.memory_space<vmem>>, vector<1x32x32xbf16>
    %118 = vector.shape_cast %117 : vector<1x32x32xbf16> to vector<32x32xbf16>
    %cst_30 = arith.constant dense<0.000000e+00> : vector<16x32xf32>
    %119 = tpu.matmul %116, %118, %cst_30 {dimension_numbers = #tpu.dot_dimension_numbers<[1], [0], [0], [1], [0, 0, 1, 1], [], []>} : vector<16x32xbf16>, vector<32x32xbf16>, vector<16x32xf32> -> vector<16x32xf32>
    %120 = arith.addf %1, %119 : vector<16x32xf32>
    %c0_31 = arith.constant 0 : index
    %c0_32 = arith.constant 0 : index
    %c0_33 = arith.constant 0 : index
    %121 = vector.load %arg8[%c0_31, %c0_32, %c0_33] : memref<2x1x32xf32, #tpu.memory_space<vmem>>, vector<1x1x32xf32>
    %122 = vector.shape_cast %121 : vector<1x1x32xf32> to vector<1x32xf32>
    %123 = vector.broadcast %122 : vector<1x32xf32> to vector<16x32xf32>
    %124 = arith.addf %120, %123 : vector<16x32xf32>
    %c0_34 = arith.constant 0 : index
    %c0_35 = arith.constant 0 : index
    %c0_36 = arith.constant 0 : index
    %125 = vector.load %arg9[%c0_34, %c0_35, %c0_36] : memref<2x1x32xf32, #tpu.memory_space<vmem>>, vector<1x1x32xf32>
    %126 = vector.shape_cast %125 : vector<1x1x32xf32> to vector<1x32xf32>
    %127 = arith.mulf %124, %124 : vector<16x32xf32>
    %cst_37 = arith.constant dense<0.000000e+00> : vector<16xf32>
    %128 = vector.multi_reduction <add>, %127, %cst_37 [1] : vector<16x32xf32> to vector<16xf32>
    %129 = vector.shape_cast %128 : vector<16xf32> to vector<16x1xf32>
    %cst_38 = arith.constant 3.200000e+01 : f32
    %130 = vector.broadcast %cst_38 : f32 to vector<16x1xf32>
    %131 = arith.divf %129, %130 : vector<16x1xf32>
    %cst_39 = arith.constant 9.99999997E-7 : f32
    %132 = vector.broadcast %cst_39 : f32 to vector<16x1xf32>
    %133 = arith.addf %131, %132 : vector<16x1xf32>
    %134 = math.rsqrt %133 : vector<16x1xf32>
    %135 = vector.broadcast %134 : vector<16x1xf32> to vector<16x32xf32>
    %136 = arith.mulf %124, %135 : vector<16x32xf32>
    %137 = vector.broadcast %126 : vector<1x32xf32> to vector<16x32xf32>
    %138 = arith.mulf %136, %137 : vector<16x32xf32>
    %139 = arith.truncf %138 : vector<16x32xf32> to vector<16x32xbf16>
    %c0_40 = arith.constant 0 : index
    %c0_41 = arith.constant 0 : index
    %c0_42 = arith.constant 0 : index
    %140 = vector.load %arg10[%c0_40, %c0_41, %c0_42] : memref<2x32x128xbf16, #tpu.memory_space<vmem>>, vector<1x32x128xbf16>
    %141 = vector.shape_cast %140 : vector<1x32x128xbf16> to vector<32x128xbf16>
    %cst_43 = arith.constant dense<0.000000e+00> : vector<16x128xf32>
    %142 = tpu.matmul %139, %141, %cst_43 {dimension_numbers = #tpu.dot_dimension_numbers<[1], [0], [0], [1], [0, 0, 1, 1], [], []>} : vector<16x32xbf16>, vector<32x128xbf16>, vector<16x128xf32> -> vector<16x128xf32>
    %c0_44 = arith.constant 0 : index
    %c0_45 = arith.constant 0 : index
    %c0_46 = arith.constant 0 : index
    %143 = vector.load %arg11[%c0_44, %c0_45, %c0_46] : memref<2x1x128xf32, #tpu.memory_space<vmem>>, vector<1x1x128xf32>
    %144 = vector.shape_cast %143 : vector<1x1x128xf32> to vector<1x128xf32>
    %145 = vector.broadcast %144 : vector<1x128xf32> to vector<16x128xf32>
    %146 = arith.addf %142, %145 : vector<16x128xf32>
    %147 = vector.extract_strided_slice %146 {offsets = [0, 0], sizes = [16, 64], strides = [1, 1]} : vector<16x128xf32> to vector<16x64xf32>
    %148 = arith.negf %147 : vector<16x64xf32>
    %149 = math.exp %148 : vector<16x64xf32>
    %cst_47 = arith.constant 1.000000e+00 : f32
    %150 = vector.broadcast %cst_47 : f32 to vector<16x64xf32>
    %151 = arith.addf %150, %149 : vector<16x64xf32>
    %152 = arith.divf %150, %151 : vector<16x64xf32>
    %153 = arith.mulf %147, %152 : vector<16x64xf32>
    %154 = vector.extract_strided_slice %146 {offsets = [0, 64], sizes = [16, 64], strides = [1, 1]} : vector<16x128xf32> to vector<16x64xf32>
    %155 = arith.mulf %153, %154 : vector<16x64xf32>
    %156 = arith.truncf %155 : vector<16x64xf32> to vector<16x64xbf16>
    %c0_48 = arith.constant 0 : index
    %c0_49 = arith.constant 0 : index
    %c0_50 = arith.constant 0 : index
    %157 = vector.load %arg12[%c0_48, %c0_49, %c0_50] : memref<2x64x32xbf16, #tpu.memory_space<vmem>>, vector<1x64x32xbf16>
    %158 = vector.shape_cast %157 : vector<1x64x32xbf16> to vector<64x32xbf16>
    %cst_51 = arith.constant dense<0.000000e+00> : vector<16x32xf32>
    %159 = tpu.matmul %156, %158, %cst_51 {dimension_numbers = #tpu.dot_dimension_numbers<[1], [0], [0], [1], [0, 0, 1, 1], [], []>} : vector<16x64xbf16>, vector<64x32xbf16>, vector<16x32xf32> -> vector<16x32xf32>
    %160 = arith.addf %124, %159 : vector<16x32xf32>
    %c0_52 = arith.constant 0 : index
    %c0_53 = arith.constant 0 : index
    %c0_54 = arith.constant 0 : index
    %161 = vector.load %arg13[%c0_52, %c0_53, %c0_54] : memref<2x1x32xf32, #tpu.memory_space<vmem>>, vector<1x1x32xf32>
    %162 = vector.shape_cast %161 : vector<1x1x32xf32> to vector<1x32xf32>
    %163 = vector.broadcast %162 : vector<1x32xf32> to vector<16x32xf32>
    %164 = arith.addf %160, %163 : vector<16x32xf32>
    %c1 = arith.constant 1 : index
    %c0_55 = arith.constant 0 : index
    %c0_56 = arith.constant 0 : index
    %165 = vector.load %arg4[%c1, %c0_55, %c0_56] : memref<2x1x32xf32, #tpu.memory_space<vmem>>, vector<1x1x32xf32>
    %166 = vector.shape_cast %165 : vector<1x1x32xf32> to vector<1x32xf32>
    %167 = arith.mulf %164, %164 : vector<16x32xf32>
    %cst_57 = arith.constant dense<0.000000e+00> : vector<16xf32>
    %168 = vector.multi_reduction <add>, %167, %cst_57 [1] : vector<16x32xf32> to vector<16xf32>
    %169 = vector.shape_cast %168 : vector<16xf32> to vector<16x1xf32>
    %cst_58 = arith.constant 3.200000e+01 : f32
    %170 = vector.broadcast %cst_58 : f32 to vector<16x1xf32>
    %171 = arith.divf %169, %170 : vector<16x1xf32>
    %cst_59 = arith.constant 9.99999997E-7 : f32
    %172 = vector.broadcast %cst_59 : f32 to vector<16x1xf32>
    %173 = arith.addf %171, %172 : vector<16x1xf32>
    %174 = math.rsqrt %173 : vector<16x1xf32>
    %175 = vector.broadcast %174 : vector<16x1xf32> to vector<16x32xf32>
    %176 = arith.mulf %164, %175 : vector<16x32xf32>
    %177 = vector.broadcast %166 : vector<1x32xf32> to vector<16x32xf32>
    %178 = arith.mulf %176, %177 : vector<16x32xf32>
    %179 = arith.truncf %178 : vector<16x32xf32> to vector<16x32xbf16>
    %c1_60 = arith.constant 1 : index
    %c0_61 = arith.constant 0 : index
    %c0_62 = arith.constant 0 : index
    %180 = vector.load %arg5[%c1_60, %c0_61, %c0_62] : memref<2x32x96xbf16, #tpu.memory_space<vmem>>, vector<1x32x96xbf16>
    %181 = vector.shape_cast %180 : vector<1x32x96xbf16> to vector<32x96xbf16>
    %cst_63 = arith.constant dense<0.000000e+00> : vector<16x96xf32>
    %182 = tpu.matmul %179, %181, %cst_63 {dimension_numbers = #tpu.dot_dimension_numbers<[1], [0], [0], [1], [0, 0, 1, 1], [], []>} : vector<16x32xbf16>, vector<32x96xbf16>, vector<16x96xf32> -> vector<16x96xf32>
    %c1_64 = arith.constant 1 : index
    %c0_65 = arith.constant 0 : index
    %c0_66 = arith.constant 0 : index
    %183 = vector.load %arg6[%c1_64, %c0_65, %c0_66] : memref<2x1x96xf32, #tpu.memory_space<vmem>>, vector<1x1x96xf32>
    %184 = vector.shape_cast %183 : vector<1x1x96xf32> to vector<1x96xf32>
    %185 = vector.broadcast %184 : vector<1x96xf32> to vector<16x96xf32>
    %186 = arith.addf %182, %185 : vector<16x96xf32>
    %187 = vector.extract_strided_slice %186 {offsets = [0, 0], sizes = [16, 8], strides = [1, 1]} : vector<16x96xf32> to vector<16x8xf32>
    %188 = vector.extract_strided_slice %186 {offsets = [0, 8], sizes = [16, 8], strides = [1, 1]} : vector<16x96xf32> to vector<16x8xf32>
    %189 = vector.extract_strided_slice %186 {offsets = [0, 16], sizes = [16, 8], strides = [1, 1]} : vector<16x96xf32> to vector<16x8xf32>
    %190 = vector.extract_strided_slice %186 {offsets = [0, 24], sizes = [16, 8], strides = [1, 1]} : vector<16x96xf32> to vector<16x8xf32>
    %191 = vector.shape_cast %187 : vector<16x8xf32> to vector<1x16x8xf32>
    %192 = vector.shape_cast %188 : vector<16x8xf32> to vector<1x16x8xf32>
    %193 = vector.shape_cast %189 : vector<16x8xf32> to vector<1x16x8xf32>
    %194 = vector.shape_cast %190 : vector<16x8xf32> to vector<1x16x8xf32>
    %195 = tpu.concatenate %191, %192, %193, %194 in 0 : vector<1x16x8xf32>, vector<1x16x8xf32>, vector<1x16x8xf32>, vector<1x16x8xf32> -> vector<4x16x8xf32>
    %196 = vector.extract_strided_slice %186 {offsets = [0, 32], sizes = [16, 8], strides = [1, 1]} : vector<16x96xf32> to vector<16x8xf32>
    %197 = vector.extract_strided_slice %186 {offsets = [0, 40], sizes = [16, 8], strides = [1, 1]} : vector<16x96xf32> to vector<16x8xf32>
    %198 = vector.extract_strided_slice %186 {offsets = [0, 48], sizes = [16, 8], strides = [1, 1]} : vector<16x96xf32> to vector<16x8xf32>
    %199 = vector.extract_strided_slice %186 {offsets = [0, 56], sizes = [16, 8], strides = [1, 1]} : vector<16x96xf32> to vector<16x8xf32>
    %200 = vector.shape_cast %196 : vector<16x8xf32> to vector<1x16x8xf32>
    %201 = vector.shape_cast %197 : vector<16x8xf32> to vector<1x16x8xf32>
    %202 = vector.shape_cast %198 : vector<16x8xf32> to vector<1x16x8xf32>
    %203 = vector.shape_cast %199 : vector<16x8xf32> to vector<1x16x8xf32>
    %204 = tpu.concatenate %200, %201, %202, %203 in 0 : vector<1x16x8xf32>, vector<1x16x8xf32>, vector<1x16x8xf32>, vector<1x16x8xf32> -> vector<4x16x8xf32>
    %205 = vector.extract_strided_slice %186 {offsets = [0, 64], sizes = [16, 8], strides = [1, 1]} : vector<16x96xf32> to vector<16x8xf32>
    %206 = vector.extract_strided_slice %186 {offsets = [0, 72], sizes = [16, 8], strides = [1, 1]} : vector<16x96xf32> to vector<16x8xf32>
    %207 = vector.extract_strided_slice %186 {offsets = [0, 80], sizes = [16, 8], strides = [1, 1]} : vector<16x96xf32> to vector<16x8xf32>
    %208 = vector.extract_strided_slice %186 {offsets = [0, 88], sizes = [16, 8], strides = [1, 1]} : vector<16x96xf32> to vector<16x8xf32>
    %209 = vector.shape_cast %205 : vector<16x8xf32> to vector<1x16x8xf32>
    %210 = vector.shape_cast %206 : vector<16x8xf32> to vector<1x16x8xf32>
    %211 = vector.shape_cast %207 : vector<16x8xf32> to vector<1x16x8xf32>
    %212 = vector.shape_cast %208 : vector<16x8xf32> to vector<1x16x8xf32>
    %213 = tpu.concatenate %209, %210, %211, %212 in 0 : vector<1x16x8xf32>, vector<1x16x8xf32>, vector<1x16x8xf32>, vector<1x16x8xf32> -> vector<4x16x8xf32>
    %214 = vector.extract_strided_slice %195 {offsets = [0, 0, 0], sizes = [4, 16, 4], strides = [1, 1, 1]} : vector<4x16x8xf32> to vector<4x16x4xf32>
    %215 = vector.extract_strided_slice %195 {offsets = [0, 0, 4], sizes = [4, 16, 4], strides = [1, 1, 1]} : vector<4x16x8xf32> to vector<4x16x4xf32>
    %cst_67 = arith.constant 0.000000e+00 : f32
    %216 = vector.broadcast %cst_67 : f32 to vector<4x16x4xf32>
    %217 = arith.subf %216, %215 : vector<4x16x4xf32>
    %218 = tpu.concatenate %217, %214 in 2 : vector<4x16x4xf32>, vector<4x16x4xf32> -> vector<4x16x8xf32>
    %219 = vector.shape_cast %2 : vector<16x8xf32> to vector<1x16x8xf32>
    %220 = vector.broadcast %219 : vector<1x16x8xf32> to vector<4x16x8xf32>
    %221 = arith.mulf %195, %220 : vector<4x16x8xf32>
    %222 = vector.shape_cast %3 : vector<16x8xf32> to vector<1x16x8xf32>
    %223 = vector.broadcast %222 : vector<1x16x8xf32> to vector<4x16x8xf32>
    %224 = arith.mulf %218, %223 : vector<4x16x8xf32>
    %225 = arith.addf %221, %224 : vector<4x16x8xf32>
    %cst_68 = arith.constant 0.353553385 : f32
    %226 = vector.broadcast %cst_68 : f32 to vector<4x16x8xf32>
    %227 = arith.mulf %225, %226 : vector<4x16x8xf32>
    %228 = vector.extract_strided_slice %204 {offsets = [0, 0, 0], sizes = [4, 16, 4], strides = [1, 1, 1]} : vector<4x16x8xf32> to vector<4x16x4xf32>
    %229 = vector.extract_strided_slice %204 {offsets = [0, 0, 4], sizes = [4, 16, 4], strides = [1, 1, 1]} : vector<4x16x8xf32> to vector<4x16x4xf32>
    %cst_69 = arith.constant 0.000000e+00 : f32
    %230 = vector.broadcast %cst_69 : f32 to vector<4x16x4xf32>
    %231 = arith.subf %230, %229 : vector<4x16x4xf32>
    %232 = tpu.concatenate %231, %228 in 2 : vector<4x16x4xf32>, vector<4x16x4xf32> -> vector<4x16x8xf32>
    %233 = vector.shape_cast %2 : vector<16x8xf32> to vector<1x16x8xf32>
    %234 = vector.broadcast %233 : vector<1x16x8xf32> to vector<4x16x8xf32>
    %235 = arith.mulf %204, %234 : vector<4x16x8xf32>
    %236 = vector.shape_cast %3 : vector<16x8xf32> to vector<1x16x8xf32>
    %237 = vector.broadcast %236 : vector<1x16x8xf32> to vector<4x16x8xf32>
    %238 = arith.mulf %232, %237 : vector<4x16x8xf32>
    %239 = arith.addf %235, %238 : vector<4x16x8xf32>
    %240 = arith.truncf %227 : vector<4x16x8xf32> to vector<4x16x8xbf16>
    %241 = arith.truncf %239 : vector<4x16x8xf32> to vector<4x16x8xbf16>
    "tpu.trace_start"() <{level = 10 : i32, message = "hqd,hkd->hqk"}> : () -> ()
    %cst_70 = arith.constant dense<0.000000e+00> : vector<4x16x16xf32>
    %242 = tpu.matmul %240, %241, %cst_70 {dimension_numbers = #tpu.dot_dimension_numbers<[2], [2], [1], [1], [0, 0, 0, 1, 1, 1], [0], [0]>} : vector<4x16x8xbf16>, vector<4x16x8xbf16>, vector<4x16x16xf32> -> vector<4x16x16xf32>
    "tpu.trace_stop"() : () -> ()
    %243 = vector.shape_cast %12 : vector<16x16xf32> to vector<1x16x16xf32>
    %244 = vector.broadcast %243 : vector<1x16x16xf32> to vector<4x16x16xf32>
    %245 = arith.addf %242, %244 : vector<4x16x16xf32>
    %cst_71 = arith.constant dense<0xFF800000> : vector<4x16xf32>
    %246 = vector.multi_reduction <maximumf>, %245, %cst_71 [2] : vector<4x16x16xf32> to vector<4x16xf32>
    %247 = vector.shape_cast %246 : vector<4x16xf32> to vector<4x16x1xf32>
    %248 = vector.broadcast %247 : vector<4x16x1xf32> to vector<4x16x16xf32>
    %249 = arith.subf %245, %248 : vector<4x16x16xf32>
    %250 = math.exp %249 : vector<4x16x16xf32>
    %cst_72 = arith.constant dense<0.000000e+00> : vector<4x16xf32>
    %251 = vector.multi_reduction <add>, %250, %cst_72 [2] : vector<4x16x16xf32> to vector<4x16xf32>
    %252 = vector.shape_cast %251 : vector<4x16xf32> to vector<4x16x1xf32>
    %253 = tpu.reciprocal %252 {approx = true} : vector<4x16x1xf32> -> vector<4x16x1xf32>
    %254 = arith.truncf %250 : vector<4x16x16xf32> to vector<4x16x16xbf16>
    %255 = arith.truncf %213 : vector<4x16x8xf32> to vector<4x16x8xbf16>
    "tpu.trace_start"() <{level = 10 : i32, message = "hqk,hkd->hqd"}> : () -> ()
    %cst_73 = arith.constant dense<0.000000e+00> : vector<4x16x8xf32>
    %256 = tpu.matmul %254, %255, %cst_73 {dimension_numbers = #tpu.dot_dimension_numbers<[2], [1], [1], [2], [0, 0, 0, 1, 1, 2], [0], [0]>} : vector<4x16x16xbf16>, vector<4x16x8xbf16>, vector<4x16x8xf32> -> vector<4x16x8xf32>
    "tpu.trace_stop"() : () -> ()
    %257 = vector.broadcast %253 : vector<4x16x1xf32> to vector<4x16x8xf32>
    %258 = arith.mulf %256, %257 : vector<4x16x8xf32>
    %259 = vector.extract_strided_slice %258 {offsets = [0, 0, 0], sizes = [1, 16, 8], strides = [1, 1, 1]} : vector<4x16x8xf32> to vector<1x16x8xf32>
    %260 = vector.shape_cast %259 : vector<1x16x8xf32> to vector<16x8xf32>
    %261 = vector.extract_strided_slice %258 {offsets = [1, 0, 0], sizes = [1, 16, 8], strides = [1, 1, 1]} : vector<4x16x8xf32> to vector<1x16x8xf32>
    %262 = vector.shape_cast %261 : vector<1x16x8xf32> to vector<16x8xf32>
    %263 = vector.extract_strided_slice %258 {offsets = [2, 0, 0], sizes = [1, 16, 8], strides = [1, 1, 1]} : vector<4x16x8xf32> to vector<1x16x8xf32>
    %264 = vector.shape_cast %263 : vector<1x16x8xf32> to vector<16x8xf32>
    %265 = vector.extract_strided_slice %258 {offsets = [3, 0, 0], sizes = [1, 16, 8], strides = [1, 1, 1]} : vector<4x16x8xf32> to vector<1x16x8xf32>
    %266 = vector.shape_cast %265 : vector<1x16x8xf32> to vector<16x8xf32>
    %267 = tpu.concatenate %260, %262, %264, %266 in 1 : vector<16x8xf32>, vector<16x8xf32>, vector<16x8xf32>, vector<16x8xf32> -> vector<16x32xf32>
    %268 = arith.truncf %267 : vector<16x32xf32> to vector<16x32xbf16>
    %c1_74 = arith.constant 1 : index
    %c0_75 = arith.constant 0 : index
    %c0_76 = arith.constant 0 : index
    %269 = vector.load %arg7[%c1_74, %c0_75, %c0_76] : memref<2x32x32xbf16, #tpu.memory_space<vmem>>, vector<1x32x32xbf16>
    %270 = vector.shape_cast %269 : vector<1x32x32xbf16> to vector<32x32xbf16>
    %cst_77 = arith.constant dense<0.000000e+00> : vector<16x32xf32>
    %271 = tpu.matmul %268, %270, %cst_77 {dimension_numbers = #tpu.dot_dimension_numbers<[1], [0], [0], [1], [0, 0, 1, 1], [], []>} : vector<16x32xbf16>, vector<32x32xbf16>, vector<16x32xf32> -> vector<16x32xf32>
    %272 = arith.addf %164, %271 : vector<16x32xf32>
    %c1_78 = arith.constant 1 : index
    %c0_79 = arith.constant 0 : index
    %c0_80 = arith.constant 0 : index
    %273 = vector.load %arg8[%c1_78, %c0_79, %c0_80] : memref<2x1x32xf32, #tpu.memory_space<vmem>>, vector<1x1x32xf32>
    %274 = vector.shape_cast %273 : vector<1x1x32xf32> to vector<1x32xf32>
    %275 = vector.broadcast %274 : vector<1x32xf32> to vector<16x32xf32>
    %276 = arith.addf %272, %275 : vector<16x32xf32>
    %c1_81 = arith.constant 1 : index
    %c0_82 = arith.constant 0 : index
    %c0_83 = arith.constant 0 : index
    %277 = vector.load %arg9[%c1_81, %c0_82, %c0_83] : memref<2x1x32xf32, #tpu.memory_space<vmem>>, vector<1x1x32xf32>
    %278 = vector.shape_cast %277 : vector<1x1x32xf32> to vector<1x32xf32>
    %279 = arith.mulf %276, %276 : vector<16x32xf32>
    %cst_84 = arith.constant dense<0.000000e+00> : vector<16xf32>
    %280 = vector.multi_reduction <add>, %279, %cst_84 [1] : vector<16x32xf32> to vector<16xf32>
    %281 = vector.shape_cast %280 : vector<16xf32> to vector<16x1xf32>
    %cst_85 = arith.constant 3.200000e+01 : f32
    %282 = vector.broadcast %cst_85 : f32 to vector<16x1xf32>
    %283 = arith.divf %281, %282 : vector<16x1xf32>
    %cst_86 = arith.constant 9.99999997E-7 : f32
    %284 = vector.broadcast %cst_86 : f32 to vector<16x1xf32>
    %285 = arith.addf %283, %284 : vector<16x1xf32>
    %286 = math.rsqrt %285 : vector<16x1xf32>
    %287 = vector.broadcast %286 : vector<16x1xf32> to vector<16x32xf32>
    %288 = arith.mulf %276, %287 : vector<16x32xf32>
    %289 = vector.broadcast %278 : vector<1x32xf32> to vector<16x32xf32>
    %290 = arith.mulf %288, %289 : vector<16x32xf32>
    %291 = arith.truncf %290 : vector<16x32xf32> to vector<16x32xbf16>
    %c1_87 = arith.constant 1 : index
    %c0_88 = arith.constant 0 : index
    %c0_89 = arith.constant 0 : index
    %292 = vector.load %arg10[%c1_87, %c0_88, %c0_89] : memref<2x32x128xbf16, #tpu.memory_space<vmem>>, vector<1x32x128xbf16>
    %293 = vector.shape_cast %292 : vector<1x32x128xbf16> to vector<32x128xbf16>
    %cst_90 = arith.constant dense<0.000000e+00> : vector<16x128xf32>
    %294 = tpu.matmul %291, %293, %cst_90 {dimension_numbers = #tpu.dot_dimension_numbers<[1], [0], [0], [1], [0, 0, 1, 1], [], []>} : vector<16x32xbf16>, vector<32x128xbf16>, vector<16x128xf32> -> vector<16x128xf32>
    %c1_91 = arith.constant 1 : index
    %c0_92 = arith.constant 0 : index
    %c0_93 = arith.constant 0 : index
    %295 = vector.load %arg11[%c1_91, %c0_92, %c0_93] : memref<2x1x128xf32, #tpu.memory_space<vmem>>, vector<1x1x128xf32>
    %296 = vector.shape_cast %295 : vector<1x1x128xf32> to vector<1x128xf32>
    %297 = vector.broadcast %296 : vector<1x128xf32> to vector<16x128xf32>
    %298 = arith.addf %294, %297 : vector<16x128xf32>
    %299 = vector.extract_strided_slice %298 {offsets = [0, 0], sizes = [16, 64], strides = [1, 1]} : vector<16x128xf32> to vector<16x64xf32>
    %300 = arith.negf %299 : vector<16x64xf32>
    %301 = math.exp %300 : vector<16x64xf32>
    %cst_94 = arith.constant 1.000000e+00 : f32
    %302 = vector.broadcast %cst_94 : f32 to vector<16x64xf32>
    %303 = arith.addf %302, %301 : vector<16x64xf32>
    %304 = arith.divf %302, %303 : vector<16x64xf32>
    %305 = arith.mulf %299, %304 : vector<16x64xf32>
    %306 = vector.extract_strided_slice %298 {offsets = [0, 64], sizes = [16, 64], strides = [1, 1]} : vector<16x128xf32> to vector<16x64xf32>
    %307 = arith.mulf %305, %306 : vector<16x64xf32>
    %308 = arith.truncf %307 : vector<16x64xf32> to vector<16x64xbf16>
    %c1_95 = arith.constant 1 : index
    %c0_96 = arith.constant 0 : index
    %c0_97 = arith.constant 0 : index
    %309 = vector.load %arg12[%c1_95, %c0_96, %c0_97] : memref<2x64x32xbf16, #tpu.memory_space<vmem>>, vector<1x64x32xbf16>
    %310 = vector.shape_cast %309 : vector<1x64x32xbf16> to vector<64x32xbf16>
    %cst_98 = arith.constant dense<0.000000e+00> : vector<16x32xf32>
    %311 = tpu.matmul %308, %310, %cst_98 {dimension_numbers = #tpu.dot_dimension_numbers<[1], [0], [0], [1], [0, 0, 1, 1], [], []>} : vector<16x64xbf16>, vector<64x32xbf16>, vector<16x32xf32> -> vector<16x32xf32>
    %312 = arith.addf %276, %311 : vector<16x32xf32>
    %c1_99 = arith.constant 1 : index
    %c0_100 = arith.constant 0 : index
    %c0_101 = arith.constant 0 : index
    %313 = vector.load %arg13[%c1_99, %c0_100, %c0_101] : memref<2x1x32xf32, #tpu.memory_space<vmem>>, vector<1x1x32xf32>
    %314 = vector.shape_cast %313 : vector<1x1x32xf32> to vector<1x32xf32>
    %315 = vector.broadcast %314 : vector<1x32xf32> to vector<16x32xf32>
    %316 = arith.addf %312, %315 : vector<16x32xf32>
    %c0_102 = arith.constant 0 : index
    %c0_103 = arith.constant 0 : index
    %317 = vector.load %arg14[%c0_102, %c0_103] : memref<1x32xf32, #tpu.memory_space<vmem>>, vector<1x32xf32>
    %318 = arith.mulf %316, %316 : vector<16x32xf32>
    %cst_104 = arith.constant dense<0.000000e+00> : vector<16xf32>
    %319 = vector.multi_reduction <add>, %318, %cst_104 [1] : vector<16x32xf32> to vector<16xf32>
    %320 = vector.shape_cast %319 : vector<16xf32> to vector<16x1xf32>
    %cst_105 = arith.constant 3.200000e+01 : f32
    %321 = vector.broadcast %cst_105 : f32 to vector<16x1xf32>
    %322 = arith.divf %320, %321 : vector<16x1xf32>
    %cst_106 = arith.constant 9.99999997E-7 : f32
    %323 = vector.broadcast %cst_106 : f32 to vector<16x1xf32>
    %324 = arith.addf %322, %323 : vector<16x1xf32>
    %325 = math.rsqrt %324 : vector<16x1xf32>
    %326 = vector.broadcast %325 : vector<16x1xf32> to vector<16x32xf32>
    %327 = arith.mulf %316, %326 : vector<16x32xf32>
    %328 = vector.broadcast %317 : vector<1x32xf32> to vector<16x32xf32>
    %329 = arith.mulf %327, %328 : vector<16x32xf32>
    %330 = arith.truncf %329 : vector<16x32xf32> to vector<16x32xbf16>
    %c0_107 = arith.constant 0 : index
    %c0_108 = arith.constant 0 : index
    %331 = vector.load %arg15[%c0_107, %c0_108] : memref<32x128xbf16, #tpu.memory_space<vmem>>, vector<32x128xbf16>
    %cst_109 = arith.constant dense<0.000000e+00> : vector<16x128xf32>
    %332 = tpu.matmul %330, %331, %cst_109 {dimension_numbers = #tpu.dot_dimension_numbers<[1], [0], [0], [1], [0, 0, 1, 1], [], []>} : vector<16x32xbf16>, vector<32x128xbf16>, vector<16x128xf32> -> vector<16x128xf32>
    %c0_110 = arith.constant 0 : index
    %c0_111 = arith.constant 0 : index
    %333 = vector.load %arg16[%c0_110, %c0_111] : memref<1x128xf32, #tpu.memory_space<vmem>>, vector<1x128xf32>
    %334 = vector.broadcast %333 : vector<1x128xf32> to vector<16x128xf32>
    %335 = arith.addf %332, %334 : vector<16x128xf32>
    %c0_112 = arith.constant 0 : index
    %c0_113 = arith.constant 0 : index
    %c0_114 = arith.constant 0 : index
    %336 = vector.load %arg17[%c0_112, %c0_113, %c0_114] : memref<1x16x128xf32, #tpu.memory_space<vmem>>, vector<1x16x128xf32>
    %337 = vector.shape_cast %336 : vector<1x16x128xf32> to vector<16x128xf32>
    %338 = vector.shape_cast %335 : vector<16x128xf32> to vector<1x16x128xf32>
    tpu.vector_store %arg17[%c0_112, %c0_113, %c0_114], %338 {strides = array<i32>} : memref<1x16x128xf32, #tpu.memory_space<vmem>>, vector<1x16x128xf32>,
    return
  }
  func.func @transform_0(%arg0: i32) -> (i32, i32, i32) {
    %c0_i32 = arith.constant 0 : i32
    %c0_i32_0 = arith.constant 0 : i32
    %c0_i32_1 = arith.constant 0 : i32
    return %arg0, %c0_i32, %c0_i32_0 : i32, i32, i32
  }
  func.func @transform_1(%arg0: i32) -> (i32, i32) {
    %c0_i32 = arith.constant 0 : i32
    %c0_i32_0 = arith.constant 0 : i32
    %c0_i32_1 = arith.constant 0 : i32
    return %c0_i32, %c0_i32_0 : i32, i32
  }
  func.func @transform_2(%arg0: i32) -> (i32, i32) {
    %c0_i32 = arith.constant 0 : i32
    %c0_i32_0 = arith.constant 0 : i32
    %c0_i32_1 = arith.constant 0 : i32
    return %c0_i32, %c0_i32_0 : i32, i32
  }
  func.func @transform_3(%arg0: i32) -> (i32, i32, i32) {
    %c0_i32 = arith.constant 0 : i32
    %c0_i32_0 = arith.constant 0 : i32
    %c0_i32_1 = arith.constant 0 : i32
    %c0_i32_2 = arith.constant 0 : i32
    return %c0_i32, %c0_i32_0, %c0_i32_1 : i32, i32, i32
  }
  func.func @transform_4(%arg0: i32) -> (i32, i32, i32) {
    %c0_i32 = arith.constant 0 : i32
    %c0_i32_0 = arith.constant 0 : i32
    %c0_i32_1 = arith.constant 0 : i32
    %c0_i32_2 = arith.constant 0 : i32
    return %c0_i32, %c0_i32_0, %c0_i32_1 : i32, i32, i32
  }
  func.func @transform_5(%arg0: i32) -> (i32, i32, i32) {
    %c0_i32 = arith.constant 0 : i32
    %c0_i32_0 = arith.constant 0 : i32
    %c0_i32_1 = arith.constant 0 : i32
    %c0_i32_2 = arith.constant 0 : i32
    return %c0_i32, %c0_i32_0, %c0_i32_1 : i32, i32, i32
  }
  func.func @transform_6(%arg0: i32) -> (i32, i32, i32) {
    %c0_i32 = arith.constant 0 : i32
    %c0_i32_0 = arith.constant 0 : i32
    %c0_i32_1 = arith.constant 0 : i32
    %c0_i32_2 = arith.constant 0 : i32
    return %c0_i32, %c0_i32_0, %c0_i32_1 : i32, i32, i32
  }
  func.func @transform_7(%arg0: i32) -> (i32, i32, i32) {
    %c0_i32 = arith.constant 0 : i32
    %c0_i32_0 = arith.constant 0 : i32
    %c0_i32_1 = arith.constant 0 : i32
    %c0_i32_2 = arith.constant 0 : i32
    return %c0_i32, %c0_i32_0, %c0_i32_1 : i32, i32, i32
  }
  func.func @transform_8(%arg0: i32) -> (i32, i32, i32) {
    %c0_i32 = arith.constant 0 : i32
    %c0_i32_0 = arith.constant 0 : i32
    %c0_i32_1 = arith.constant 0 : i32
    %c0_i32_2 = arith.constant 0 : i32
    return %c0_i32, %c0_i32_0, %c0_i32_1 : i32, i32, i32
  }
  func.func @transform_9(%arg0: i32) -> (i32, i32, i32) {
    %c0_i32 = arith.constant 0 : i32
    %c0_i32_0 = arith.constant 0 : i32
    %c0_i32_1 = arith.constant 0 : i32
    %c0_i32_2 = arith.constant 0 : i32
    return %c0_i32, %c0_i32_0, %c0_i32_1 : i32, i32, i32
  }
  func.func @transform_10(%arg0: i32) -> (i32, i32, i32) {
    %c0_i32 = arith.constant 0 : i32
    %c0_i32_0 = arith.constant 0 : i32
    %c0_i32_1 = arith.constant 0 : i32
    %c0_i32_2 = arith.constant 0 : i32
    return %c0_i32, %c0_i32_0, %c0_i32_1 : i32, i32, i32
  }
  func.func @transform_11(%arg0: i32) -> (i32, i32, i32) {
    %c0_i32 = arith.constant 0 : i32
    %c0_i32_0 = arith.constant 0 : i32
    %c0_i32_1 = arith.constant 0 : i32
    %c0_i32_2 = arith.constant 0 : i32
    return %c0_i32, %c0_i32_0, %c0_i32_1 : i32, i32, i32
  }
  func.func @transform_12(%arg0: i32) -> (i32, i32, i32) {
    %c0_i32 = arith.constant 0 : i32
    %c0_i32_0 = arith.constant 0 : i32
    %c0_i32_1 = arith.constant 0 : i32
    %c0_i32_2 = arith.constant 0 : i32
    return %c0_i32, %c0_i32_0, %c0_i32_1 : i32, i32, i32
  }
  func.func @transform_13(%arg0: i32) -> (i32, i32) {
    %c0_i32 = arith.constant 0 : i32
    %c0_i32_0 = arith.constant 0 : i32
    %c0_i32_1 = arith.constant 0 : i32
    return %c0_i32, %c0_i32_0 : i32, i32
  }
  func.func @transform_14(%arg0: i32) -> (i32, i32) {
    %c0_i32 = arith.constant 0 : i32
    %c0_i32_0 = arith.constant 0 : i32
    %c0_i32_1 = arith.constant 0 : i32
    return %c0_i32, %c0_i32_0 : i32, i32
  }
  func.func @transform_15(%arg0: i32) -> (i32, i32) {
    %c0_i32 = arith.constant 0 : i32
    %c0_i32_0 = arith.constant 0 : i32
    %c0_i32_1 = arith.constant 0 : i32
    return %c0_i32, %c0_i32_0 : i32, i32
  }
  func.func @transform_16(%arg0: i32) -> (i32, i32, i32) {
    %c0_i32 = arith.constant 0 : i32
    %c0_i32_0 = arith.constant 0 : i32
    %c0_i32_1 = arith.constant 0 : i32
    return %arg0, %c0_i32, %c0_i32_0 : i32, i32, i32
  }
}

</mosaic_0001>

<llo_original>
// kernel: decoder_forward.1
$region0: #{decoder_forward.1}
  #allocation0 [shape = 'u32[]', space=smem, size = 0x4, offset = 0x4, fixed_abs, tag = 'smem constant byte address 0x4 - core index']
  #allocation1 [shape = 'u32[144,128]{1,0:T(1,128)}', space=vmem, size = 0x12000, scoped, tag = 'internal scratch']
  %s0 = inlined_call_operand.vmem [shape: f32[2,16,32], index: 0, kind: input, shape index: {}]
  %s1 = inlined_call_operand.vmem [shape: f32[16,8], index: 1, kind: input, shape index: {}]
  %s2 = inlined_call_operand.vmem [shape: f32[16,8], index: 2, kind: input, shape index: {}]
  %s3 = inlined_call_operand.vmem [shape: f32[2,1,32], index: 3, kind: input, shape index: {}]
  %s4 = inlined_call_operand.vmem [shape: bf16[2,32,96], index: 4, kind: input, shape index: {}]
  %s5 = inlined_call_operand.vmem [shape: f32[2,1,96], index: 5, kind: input, shape index: {}]
  %s6 = inlined_call_operand.vmem [shape: bf16[2,32,32], index: 6, kind: input, shape index: {}]
  %s7 = inlined_call_operand.vmem [shape: f32[2,1,32], index: 7, kind: input, shape index: {}]
  %s8 = inlined_call_operand.vmem [shape: f32[2,1,32], index: 8, kind: input, shape index: {}]
  %s9 = inlined_call_operand.vmem [shape: bf16[2,32,128], index: 9, kind: input, shape index: {}]
  %s10 = inlined_call_operand.vmem [shape: f32[2,1,128], index: 10, kind: input, shape index: {}]
  %s11 = inlined_call_operand.vmem [shape: bf16[2,64,32], index: 11, kind: input, shape index: {}]
  %s12 = inlined_call_operand.vmem [shape: f32[2,1,32], index: 12, kind: input, shape index: {}]
  %s13 = inlined_call_operand.vmem [shape: f32[1,32], index: 13, kind: input, shape index: {}]
  %s14 = inlined_call_operand.vmem [shape: bf16[32,128], index: 14, kind: input, shape index: {}]
  %s15 = inlined_call_operand.vmem [shape: f32[1,128], index: 15, kind: input, shape index: {}]
  %s16 = inlined_call_operand.vmem [shape: f32[2,16,128], index: 16, kind: output, shape index: {}]
  %s17 = sld [smem:[#allocation0]]
  $region97: #{decoder_forward.1} parent=0
    _
  %s19 = ssub.s32 1, %s17
  %s20 = scalar_select 0, %s19, %s17
  loop: start=0, step=1, limit=4
  $region2: #{decoder_forward.1} parent=0 // loop_pre_header
    _
  $region3: #{decoder_forward.1} parent=0 // loop_header
    %s22 = sphi 0, %s26
    %p23 = scmp.ge.s32.totalorder %s22, 4
    %s32 = sphi 0, %s34
    %s35 = sphi 0, %s32
    %s36 = sphi 0, %s35
    %s52 = sphi 0, %s36
    %s56 = sphi 0, %s56
    %s58 = sphi 0, %s56
    %s59 = sphi 0, %s58
    %s73 = sphi 0, %s59
    %s77 = sphi 0, %s77
    %s79 = sphi 0, %s77
    %s80 = sphi 0, %s79
    %s94 = sphi 0, %s80
    %s98 = sphi 0, %s98
    %s100 = sphi 0, %s98
    %s101 = sphi 0, %s100
    %s115 = sphi 0, %s101
    %s119 = sphi 0, %s119
    %s121 = sphi 0, %s119
    %s122 = sphi 0, %s121
    %s136 = sphi 0, %s122
    %s140 = sphi 0, %s140
    %s142 = sphi 0, %s140
    %s143 = sphi 0, %s142
    %s157 = sphi 0, %s143
    %s161 = sphi 0, %s161
    %s163 = sphi 0, %s161
    %s164 = sphi 0, %s163
    %s178 = sphi 0, %s164
    %s182 = sphi 0, %s182
    %s184 = sphi 0, %s182
    %s185 = sphi 0, %s184
    %s199 = sphi 0, %s185
    %s203 = sphi 0, %s203
    %s205 = sphi 0, %s203
    %s206 = sphi 0, %s205
    %s220 = sphi 0, %s206
    %s224 = sphi 0, %s224
    %s226 = sphi 0, %s224
    %s227 = sphi 0, %s226
    %s241 = sphi 0, %s227
    %s245 = sphi 0, %s245
    %s247 = sphi 0, %s245
    %s248 = sphi 0, %s247
    %s262 = sphi 0, %s248
    %s266 = sphi 0, %s266
    %s268 = sphi 0, %s266
    %s269 = sphi 0, %s268
    %s283 = sphi 0, %s269
    %s287 = sphi 0, %s287
    %s289 = sphi 0, %s287
    %s290 = sphi 0, %s289
    %s304 = sphi 0, %s290
    %s308 = sphi 0, %s308
    %s310 = sphi 0, %s308
    %s311 = sphi 0, %s310
    %s325 = sphi 0, %s311
    %s329 = sphi 0, %s329
    %s331 = sphi 0, %s329
    %s332 = sphi 0, %s331
    %s346 = sphi 0, %s332
    %s350 = sphi 0, %s350
    %s352 = sphi 0, %s350
    %s353 = sphi 0, %s352
    %s367 = sphi 0, %s353
    %s373 = sphi 0, %s375
    %s376 = sphi 0, %s373
    %s377 = sphi 0, %s376
    %s393 = sphi 0, %s377
  $region4: #{decoder_forward.1} parent=0 // loop_header_branch
    %25 = sbr.rel (%p23) target = $region8
  $region5: #{decoder_forward.1} parent=0 // loop_body
    %s27 = ssub.s32 %s22, 1
    %s28 = ssub.s32 %s22, 2
    %s29 = sadd.s32 %s22, 1
    %s30 = ssub.s32 %s22, %s29
    %p31 = scmp.eq.s32.totalorder %s30, 0
    %s33 = sadd.s32 %s32, 1
    %s34 = scalar_select %p31, %s32, %s33
    %p37 = pneg %p31
    %p38 = scmp.eq.s32.totalorder %s22, 1
    %p39 = por %p37, %p38
    %p40 = scmp.ne.s32.totalorder %s32, %s35
    %p41 = scmp.eq.s32.totalorder %s22, 0
    %p42 = por %p40, %p41
    %p43 = scmp.ne.s32.totalorder %s32, %s35
    %p44 = scmp.eq.s32.totalorder %s27, 1
    %p45 = por %p43, %p44
    %p46 = scmp.ne.s32.totalorder %s35, %s36
    %p47 = scmp.eq.s32.totalorder %s27, 0
    %p48 = por %p46, %p47
    %p49 = scmp.ne.s32.totalorder %s35, %s36
    %p50 = scmp.eq.s32.totalorder %s28, 1
    %p51 = por %p49, %p50
    %p53 = scmp.ne.s32.totalorder %s36, %s52
    %p54 = scmp.eq.s32.totalorder %s28, 0
    %p55 = por %p53, %p54
    %s57 = sadd.s32 %s56, 1
    %p60 = scmp.eq.s32.totalorder %s22, 1
    %p61 = scmp.ne.s32.totalorder %s56, %s58
    %p62 = scmp.eq.s32.totalorder %s22, 0
    %p63 = por %p61, %p62
    %p64 = scmp.ne.s32.totalorder %s56, %s58
    %p65 = scmp.eq.s32.totalorder %s27, 1
    %p66 = por %p64, %p65
    %p67 = scmp.ne.s32.totalorder %s58, %s59
    %p68 = scmp.eq.s32.totalorder %s27, 0
    %p69 = por %p67, %p68
    %p70 = scmp.ne.s32.totalorder %s58, %s59
    %p71 = scmp.eq.s32.totalorder %s28, 1
    %p72 = por %p70, %p71
    %p74 = scmp.ne.s32.totalorder %s59, %s73
    %p75 = scmp.eq.s32.totalorder %s28, 0
    %p76 = por %p74, %p75
    %s78 = sadd.s32 %s77, 1
    %p81 = scmp.eq.s32.totalorder %s22, 1
    %p82 = scmp.ne.s32.totalorder %s77, %s79
    %p83 = scmp.eq.s32.totalorder %s22, 0
    %p84 = por %p82, %p83
    %p85 = scmp.ne.s32.totalorder %s77, %s79
    %p86 = scmp.eq.s32.totalorder %s27, 1
    %p87 = por %p85, %p86
    %p88 = scmp.ne.s32.totalorder %s79, %s80
    %p89 = scmp.eq.s32.totalorder %s27, 0
    %p90 = por %p88, %p89
    %p91 = scmp.ne.s32.totalorder %s79, %s80
    %p92 = scmp.eq.s32.totalorder %s28, 1
    %p93 = por %p91, %p92
    %p95 = scmp.ne.s32.totalorder %s80, %s94
    %p96 = scmp.eq.s32.totalorder %s28, 0
    %p97 = por %p95, %p96
    %s99 = sadd.s32 %s98, 1
    %p102 = scmp.eq.s32.totalorder %s22, 1
    %p103 = scmp.ne.s32.totalorder %s98, %s100
    %p104 = scmp.eq.s32.totalorder %s22, 0
    %p105 = por %p103, %p104
    %p106 = scmp.ne.s32.totalorder %s98, %s100
    %p107 = scmp.eq.s32.totalorder %s27, 1
    %p108 = por %p106, %p107
    %p109 = scmp.ne.s32.totalorder %s100, %s101
    %p110 = scmp.eq.s32.totalorder %s27, 0
    %p111 = por %p109, %p110
    %p112 = scmp.ne.s32.totalorder %s100, %s101
    %p113 = scmp.eq.s32.totalorder %s28, 1
    %p114 = por %p112, %p113
    %p116 = scmp.ne.s32.totalorder %s101, %s115
    %p117 = scmp.eq.s32.totalorder %s28, 0
    %p118 = por %p116, %p117
    %s120 = sadd.s32 %s119, 1
    %p123 = scmp.eq.s32.totalorder %s22, 1
    %p124 = scmp.ne.s32.totalorder %s119, %s121
    %p125 = scmp.eq.s32.totalorder %s22, 0
    %p126 = por %p124, %p125
    %p127 = scmp.ne.s32.totalorder %s119, %s121
    %p128 = scmp.eq.s32.totalorder %s27, 1
    %p129 = por %p127, %p128
    %p130 = scmp.ne.s32.totalorder %s121, %s122
    %p131 = scmp.eq.s32.totalorder %s27, 0
    %p132 = por %p130, %p131
    %p133 = scmp.ne.s32.totalorder %s121, %s122
    %p134 = scmp.eq.s32.totalorder %s28, 1
    %p135 = por %p133, %p134
    %p137 = scmp.ne.s32.totalorder %s122, %s136
    %p138 = scmp.eq.s32.totalorder %s28, 0
    %p139 = por %p137, %p138
    %s141 = sadd.s32 %s140, 1
    %p144 = scmp.eq.s32.totalorder %s22, 1
    %p145 = scmp.ne.s32.totalorder %s140, %s142
    %p146 = scmp.eq.s32.totalorder %s22, 0
    %p147 = por %p145, %p146
    %p148 = scmp.ne.s32.totalorder %s140, %s142
    %p149 = scmp.eq.s32.totalorder %s27, 1
    %p150 = por %p148, %p149
    %p151 = scmp.ne.s32.totalorder %s142, %s143
    %p152 = scmp.eq.s32.totalorder %s27, 0
    %p153 = por %p151, %p152
    %p154 = scmp.ne.s32.totalorder %s142, %s143
    %p155 = scmp.eq.s32.totalorder %s28, 1
    %p156 = por %p154, %p155
    %p158 = scmp.ne.s32.totalorder %s143, %s157
    %p159 = scmp.eq.s32.totalorder %s28, 0
    %p160 = por %p158, %p159
    %s162 = sadd.s32 %s161, 1
    %p165 = scmp.eq.s32.totalorder %s22, 1
    %p166 = scmp.ne.s32.totalorder %s161, %s163
    %p167 = scmp.eq.s32.totalorder %s22, 0
    %p168 = por %p166, %p167
    %p169 = scmp.ne.s32.totalorder %s161, %s163
    %p170 = scmp.eq.s32.totalorder %s27, 1
    %p171 = por %p169, %p170
    %p172 = scmp.ne.s32.totalorder %s163, %s164
    %p173 = scmp.eq.s32.totalorder %s27, 0
    %p174 = por %p172, %p173
    %p175 = scmp.ne.s32.totalorder %s163, %s164
    %p176 = scmp.eq.s32.totalorder %s28, 1
    %p177 = por %p175, %p176
    %p179 = scmp.ne.s32.totalorder %s164, %s178
    %p180 = scmp.eq.s32.totalorder %s28, 0
    %p181 = por %p179, %p180
    %s183 = sadd.s32 %s182, 1
    %p186 = scmp.eq.s32.totalorder %s22, 1
    %p187 = scmp.ne.s32.totalorder %s182, %s184
    %p188 = scmp.eq.s32.totalorder %s22, 0
    %p189 = por %p187, %p188
    %p190 = scmp.ne.s32.totalorder %s182, %s184
    %p191 = scmp.eq.s32.totalorder %s27, 1
    %p192 = por %p190, %p191
    %p193 = scmp.ne.s32.totalorder %s184, %s185
    %p194 = scmp.eq.s32.totalorder %s27, 0
    %p195 = por %p193, %p194
    %p196 = scmp.ne.s32.totalorder %s184, %s185
    %p197 = scmp.eq.s32.totalorder %s28, 1
    %p198 = por %p196, %p197
    %p200 = scmp.ne.s32.totalorder %s185, %s199
    %p201 = scmp.eq.s32.totalorder %s28, 0
    %p202 = por %p200, %p201
    %s204 = sadd.s32 %s203, 1
    %p207 = scmp.eq.s32.totalorder %s22, 1
    %p208 = scmp.ne.s32.totalorder %s203, %s205
    %p209 = scmp.eq.s32.totalorder %s22, 0
    %p210 = por %p208, %p209
    %p211 = scmp.ne.s32.totalorder %s203, %s205
    %p212 = scmp.eq.s32.totalorder %s27, 1
    %p213 = por %p211, %p212
    %p214 = scmp.ne.s32.totalorder %s205, %s206
    %p215 = scmp.eq.s32.totalorder %s27, 0
    %p216 = por %p214, %p215
    %p217 = scmp.ne.s32.totalorder %s205, %s206
    %p218 = scmp.eq.s32.totalorder %s28, 1
    %p219 = por %p217, %p218
    %p221 = scmp.ne.s32.totalorder %s206, %s220
    %p222 = scmp.eq.s32.totalorder %s28, 0
    %p223 = por %p221, %p222
    %s225 = sadd.s32 %s224, 1
    %p228 = scmp.eq.s32.totalorder %s22, 1
    %p229 = scmp.ne.s32.totalorder %s224, %s226
    %p230 = scmp.eq.s32.totalorder %s22, 0
    %p231 = por %p229, %p230
    %p232 = scmp.ne.s32.totalorder %s224, %s226
    %p233 = scmp.eq.s32.totalorder %s27, 1
    %p234 = por %p232, %p233
    %p235 = scmp.ne.s32.totalorder %s226, %s227
    %p236 = scmp.eq.s32.totalorder %s27, 0
    %p237 = por %p235, %p236
    %p238 = scmp.ne.s32.totalorder %s226, %s227
    %p239 = scmp.eq.s32.totalorder %s28, 1
    %p240 = por %p238, %p239
    %p242 = scmp.ne.s32.totalorder %s227, %s241
    %p243 = scmp.eq.s32.totalorder %s28, 0
    %p244 = por %p242, %p243
    %s246 = sadd.s32 %s245, 1
    %p249 = scmp.eq.s32.totalorder %s22, 1
    %p250 = scmp.ne.s32.totalorder %s245, %s247
    %p251 = scmp.eq.s32.totalorder %s22, 0
    %p252 = por %p250, %p251
    %p253 = scmp.ne.s32.totalorder %s245, %s247
    %p254 = scmp.eq.s32.totalorder %s27, 1
    %p255 = por %p253, %p254
    %p256 = scmp.ne.s32.totalorder %s247, %s248
    %p257 = scmp.eq.s32.totalorder %s27, 0
    %p258 = por %p256, %p257
    %p259 = scmp.ne.s32.totalorder %s247, %s248
    %p260 = scmp.eq.s32.totalorder %s28, 1
    %p261 = por %p259, %p260
    %p263 = scmp.ne.s32.totalorder %s248, %s262
    %p264 = scmp.eq.s32.totalorder %s28, 0
    %p265 = por %p263, %p264
    %s267 = sadd.s32 %s266, 1
    %p270 = scmp.eq.s32.totalorder %s22, 1
    %p271 = scmp.ne.s32.totalorder %s266, %s268
    %p272 = scmp.eq.s32.totalorder %s22, 0
    %p273 = por %p271, %p272
    %p274 = scmp.ne.s32.totalorder %s266, %s268
    %p275 = scmp.eq.s32.totalorder %s27, 1
    %p276 = por %p274, %p275
    %p277 = scmp.ne.s32.totalorder %s268, %s269
    %p278 = scmp.eq.s32.totalorder %s27, 0
    %p279 = por %p277, %p278
    %p280 = scmp.ne.s32.totalorder %s268, %s269
    %p281 = scmp.eq.s32.totalorder %s28, 1
    %p282 = por %p280, %p281
    %p284 = scmp.ne.s32.totalorder %s269, %s283
    %p285 = scmp.eq.s32.totalorder %s28, 0
    %p286 = por %p284, %p285
    %s288 = sadd.s32 %s287, 1
    %p291 = scmp.eq.s32.totalorder %s22, 1
    %p292 = scmp.ne.s32.totalorder %s287, %s289
    %p293 = scmp.eq.s32.totalorder %s22, 0
    %p294 = por %p292, %p293
    %p295 = scmp.ne.s32.totalorder %s287, %s289
    %p296 = scmp.eq.s32.totalorder %s27, 1
    %p297 = por %p295, %p296
    %p298 = scmp.ne.s32.totalorder %s289, %s290
    %p299 = scmp.eq.s32.totalorder %s27, 0
    %p300 = por %p298, %p299
    %p301 = scmp.ne.s32.totalorder %s289, %s290
    %p302 = scmp.eq.s32.totalorder %s28, 1
    %p303 = por %p301, %p302
    %p305 = scmp.ne.s32.totalorder %s290, %s304
    %p306 = scmp.eq.s32.totalorder %s28, 0
    %p307 = por %p305, %p306
    %s309 = sadd.s32 %s308, 1
    %p312 = scmp.eq.s32.totalorder %s22, 1
    %p313 = scmp.ne.s32.totalorder %s308, %s310
    %p314 = scmp.eq.s32.totalorder %s22, 0
    %p315 = por %p313, %p314
    %p316 = scmp.ne.s32.totalorder %s308, %s310
    %p317 = scmp.eq.s32.totalorder %s27, 1
    %p318 = por %p316, %p317
    %p319 = scmp.ne.s32.totalorder %s310, %s311
    %p320 = scmp.eq.s32.totalorder %s27, 0
    %p321 = por %p319, %p320
    %p322 = scmp.ne.s32.totalorder %s310, %s311
    %p323 = scmp.eq.s32.totalorder %s28, 1
    %p324 = por %p322, %p323
    %p326 = scmp.ne.s32.totalorder %s311, %s325
    %p327 = scmp.eq.s32.totalorder %s28, 0
    %p328 = por %p326, %p327
    %s330 = sadd.s32 %s329, 1
    %p333 = scmp.eq.s32.totalorder %s22, 1
    %p334 = scmp.ne.s32.totalorder %s329, %s331
    %p335 = scmp.eq.s32.totalorder %s22, 0
    %p336 = por %p334, %p335
    %p337 = scmp.ne.s32.totalorder %s329, %s331
    %p338 = scmp.eq.s32.totalorder %s27, 1
    %p339 = por %p337, %p338
    %p340 = scmp.ne.s32.totalorder %s331, %s332
    %p341 = scmp.eq.s32.totalorder %s27, 0
    %p342 = por %p340, %p341
    %p343 = scmp.ne.s32.totalorder %s331, %s332
    %p344 = scmp.eq.s32.totalorder %s28, 1
    %p345 = por %p343, %p344
    %p347 = scmp.ne.s32.totalorder %s332, %s346
    %p348 = scmp.eq.s32.totalorder %s28, 0
    %p349 = por %p347, %p348
    %s351 = sadd.s32 %s350, 1
    %p354 = scmp.eq.s32.totalorder %s22, 1
    %p355 = scmp.ne.s32.totalorder %s350, %s352
    %p356 = scmp.eq.s32.totalorder %s22, 0
    %p357 = por %p355, %p356
    %p358 = scmp.ne.s32.totalorder %s350, %s352
    %p359 = scmp.eq.s32.totalorder %s27, 1
    %p360 = por %p358, %p359
    %p361 = scmp.ne.s32.totalorder %s352, %s353
    %p362 = scmp.eq.s32.totalorder %s27, 0
    %p363 = por %p361, %p362
    %p364 = scmp.ne.s32.totalorder %s352, %s353
    %p365 = scmp.eq.s32.totalorder %s28, 1
    %p366 = por %p364, %p365
    %p368 = scmp.ne.s32.totalorder %s353, %s367
    %p369 = scmp.eq.s32.totalorder %s28, 0
    %p370 = por %p368, %p369
    %s371 = ssub.s32 %s22, %s29
    %p372 = scmp.eq.s32.totalorder %s371, 0
    %s374 = sadd.s32 %s373, 1
    %s375 = scalar_select %p372, %s373, %s374
    %p378 = pneg %p372
    %p379 = scmp.eq.s32.totalorder %s22, 1
    %p380 = por %p378, %p379
    %p381 = scmp.ne.s32.totalorder %s373, %s376
    %p382 = scmp.eq.s32.totalorder %s22, 0
    %p383 = por %p381, %p382
    %p384 = scmp.ne.s32.totalorder %s373, %s376
    %p385 = scmp.eq.s32.totalorder %s27, 1
    %p386 = por %p384, %p385
    %p387 = scmp.ne.s32.totalorder %s376, %s377
    %p388 = scmp.eq.s32.totalorder %s27, 0
    %p389 = por %p387, %p388
    %p390 = scmp.ne.s32.totalorder %s376, %s377
    %p391 = scmp.eq.s32.totalorder %s28, 1
    %p392 = por %p390, %p391
    %p394 = scmp.ne.s32.totalorder %s377, %s393
    %p395 = scmp.eq.s32.totalorder %s28, 0
    %p396 = por %p394, %p395
    %p397 = scmp.le.s32.totalorder 1, %s22
    %p398 = scmp.lt.s32.totalorder %s22, 3
    %p399 = pnand %p397, %p398
    %p400 = pneg %p399
    // Predicated region
    $region9: #{decoder_forward.1} parent=5 // pred_check
      _
    $region10: #{decoder_forward.1} parent=5 // pred_check_branch
      %402 = sbr.rel (%p399) target = $region12
    $region11: #{decoder_forward.1} parent=5 // pred_region
      %s403 = ssub.s32 %s22, 1
      // Predicated region
      $region13: #{decoder_forward.1} parent=11 // pred_check
        %p404 = pneg %p69
      $region14: #{decoder_forward.1} parent=11 // pred_check_branch
        %406 = sbr.rel (%p404) target = $region16
      $region15: #{decoder_forward.1} parent=11 // pred_region
        _
      $region16: #{decoder_forward.1} parent=11 // pred_fallthru
        _
      // Predicated region
      $region17: #{decoder_forward.1} parent=11 // pred_check
        %p407 = pneg %p90
      $region18: #{decoder_forward.1} parent=11 // pred_check_branch
        %409 = sbr.rel (%p407) target = $region20
      $region19: #{decoder_forward.1} parent=11 // pred_region
        _
      $region20: #{decoder_forward.1} parent=11 // pred_fallthru
        _
      // Predicated region
      $region21: #{decoder_forward.1} parent=11 // pred_check
        %p410 = pneg %p111
      $region22: #{decoder_forward.1} parent=11 // pred_check_branch
        %412 = sbr.rel (%p410) target = $region24
      $region23: #{decoder_forward.1} parent=11 // pred_region
        _
      $region24: #{decoder_forward.1} parent=11 // pred_fallthru
        _
      // Predicated region
      $region25: #{decoder_forward.1} parent=11 // pred_check
        %p413 = pneg %p132
      $region26: #{decoder_forward.1} parent=11 // pred_check_branch
        %415 = sbr.rel (%p413) target = $region28
      $region27: #{decoder_forward.1} parent=11 // pred_region
        _
      $region28: #{decoder_forward.1} parent=11 // pred_fallthru
        _
      // Predicated region
      $region29: #{decoder_forward.1} parent=11 // pred_check
        %p416 = pneg %p153
      $region30: #{decoder_forward.1} parent=11 // pred_check_branch
        %418 = sbr.rel (%p416) target = $region32
      $region31: #{decoder_forward.1} parent=11 // pred_region
        _
      $region32: #{decoder_forward.1} parent=11 // pred_fallthru
        _
      // Predicated region
      $region33: #{decoder_forward.1} parent=11 // pred_check
        %p419 = pneg %p174
      $region34: #{decoder_forward.1} parent=11 // pred_check_branch
        %421 = sbr.rel (%p419) target = $region36
      $region35: #{decoder_forward.1} parent=11 // pred_region
        _
      $region36: #{decoder_forward.1} parent=11 // pred_fallthru
        _
      // Predicated region
      $region37: #{decoder_forward.1} parent=11 // pred_check
        %p422 = pneg %p195
      $region38: #{decoder_forward.1} parent=11 // pred_check_branch
        %424 = sbr.rel (%p422) target = $region40
      $region39: #{decoder_forward.1} parent=11 // pred_region
        _
      $region40: #{decoder_forward.1} parent=11 // pred_fallthru
        _
      // Predicated region
      $region41: #{decoder_forward.1} parent=11 // pred_check
        %p425 = pneg %p216
      $region42: #{decoder_forward.1} parent=11 // pred_check_branch
        %427 = sbr.rel (%p425) target = $region44
      $region43: #{decoder_forward.1} parent=11 // pred_region
        _
      $region44: #{decoder_forward.1} parent=11 // pred_fallthru
        _
      // Predicated region
      $region45: #{decoder_forward.1} parent=11 // pred_check
        %p428 = pneg %p237
      $region46: #{decoder_forward.1} parent=11 // pred_check_branch
        %430 = sbr.rel (%p428) target = $region48
      $region47: #{decoder_forward.1} parent=11 // pred_region
        _
      $region48: #{decoder_forward.1} parent=11 // pred_fallthru
        _
      // Predicated region
      $region49: #{decoder_forward.1} parent=11 // pred_check
        %p431 = pneg %p258
      $region50: #{decoder_forward.1} parent=11 // pred_check_branch
        %433 = sbr.rel (%p431) target = $region52
      $region51: #{decoder_forward.1} parent=11 // pred_region
        _
      $region52: #{decoder_forward.1} parent=11 // pred_fallthru
        _
      // Predicated region
      $region53: #{decoder_forward.1} parent=11 // pred_check
        %p434 = pneg %p279
      $region54: #{decoder_forward.1} parent=11 // pred_check_branch
        %436 = sbr.rel (%p434) target = $region56
      $region55: #{decoder_forward.1} parent=11 // pred_region
        _
      $region56: #{decoder_forward.1} parent=11 // pred_fallthru
        _
      // Predicated region
      $region57: #{decoder_forward.1} parent=11 // pred_check
        %p437 = pneg %p300
      $region58: #{decoder_forward.1} parent=11 // pred_check_branch
        %439 = sbr.rel (%p437) target = $region60
      $region59: #{decoder_forward.1} parent=11 // pred_region
        _
      $region60: #{decoder_forward.1} parent=11 // pred_fallthru
        _
      // Predicated region
      $region61: #{decoder_forward.1} parent=11 // pred_check
        %p440 = pneg %p321
      $region62: #{decoder_forward.1} parent=11 // pred_check_branch
        %442 = sbr.rel (%p440) target = $region64
      $region63: #{decoder_forward.1} parent=11 // pred_region
        _
      $region64: #{decoder_forward.1} parent=11 // pred_fallthru
        _
      // Predicated region
      $region65: #{decoder_forward.1} parent=11 // pred_check
        %p443 = pneg %p342
      $region66: #{decoder_forward.1} parent=11 // pred_check_branch
        %445 = sbr.rel (%p443) target = $region68
      $region67: #{decoder_forward.1} parent=11 // pred_region
        _
      $region68: #{decoder_forward.1} parent=11 // pred_fallthru
        _
      // Predicated region
      $region69: #{decoder_forward.1} parent=11 // pred_check
        %p446 = pneg %p363
      $region70: #{decoder_forward.1} parent=11 // pred_check_branch
        %448 = sbr.rel (%p446) target = $region72
      $region71: #{decoder_forward.1} parent=11 // pred_region
        _
      $region72: #{decoder_forward.1} parent=11 // pred_fallthru
        _
    $region12: #{decoder_forward.1} parent=5 // pred_fallthru
      _
    %p449 = scmp.lt.s32.totalorder %s22, 2
    // Predicated region
    $region73: #{decoder_forward.1} parent=5 // pred_check
      %p450 = pneg %p449
    $region74: #{decoder_forward.1} parent=5 // pred_check_branch
      %452 = sbr.rel (%p450) target = $region76
    $region75: #{decoder_forward.1} parent=5 // pred_region
      // Predicated region
      $region77: #{decoder_forward.1} parent=75 // pred_check
        %p453 = pneg %p42
      $region78: #{decoder_forward.1} parent=75 // pred_check_branch
        %455 = sbr.rel (%p453) target = $region80
      $region79: #{decoder_forward.1} parent=75 // pred_region
        %p456 = scmp.lt.s32.totalorder %s22, 1
        %s457 = scalar_select %p456, %s22, 1
        %s458 = smul.addr %s457, 2
        %s459 = smul.addr %s458, 8
        %s460 = scalar_lea.vmem %s0, %s459
      $region80: #{decoder_forward.1} parent=75 // pred_fallthru
        _
    $region76: #{decoder_forward.1} parent=5 // pred_fallthru
      _
    %p461 = scmp.le.s32.totalorder 1, %s22
    %p462 = scmp.lt.s32.totalorder %s22, 3
    %p463 = pnand %p461, %p462
    %p464 = pneg %p463
    // Predicated region
    $region81: #{decoder_forward.1} parent=5 // pred_check
      _
    $region82: #{decoder_forward.1} parent=5 // pred_check_branch
      %466 = sbr.rel (%p463) target = $region84
    $region83: #{decoder_forward.1} parent=5 // pred_region
      %s467 = ssub.s32 %s22, 1
      %p468 = scmp.lt.s32.totalorder %s27, 1
      %s469 = scalar_select %p468, %s27, 1
      %s470 = smul.addr %s469, 2
      %s471 = smul.addr %s470, 8
      %s472 = scalar_lea.vmem %s0, %s471
      %p473 = pneg %p48
      %p474 = pneg %p45
      %p475 = pneg %p69
      %p476 = pneg %p66
      %p477 = pneg %p90
      %p478 = pneg %p87
      %p479 = pneg %p111
      %p480 = pneg %p108
      %p481 = pneg %p132
      %p482 = pneg %p129
      %p483 = pneg %p153
      %p484 = pneg %p150
      %p485 = pneg %p174
      %p486 = pneg %p171
      %p487 = pneg %p195
      %p488 = pneg %p192
      %p489 = pneg %p216
      %p490 = pneg %p213
      %p491 = pneg %p237
      %p492 = pneg %p234
      %p493 = pneg %p258
      %p494 = pneg %p255
      %p495 = pneg %p279
      %p496 = pneg %p276
      %p497 = pneg %p300
      %p498 = pneg %p297
      %p499 = pneg %p321
      %p500 = pneg %p318
      %p501 = pneg %p342
      %p502 = pneg %p339
      %p503 = pneg %p363
      %p504 = pneg %p360
      %p505 = pneg %p389
      %p506 = pneg %p386
      %p507 = scmp.lt.s32.totalorder %s27, 1
      %s508 = scalar_select %p507, %s27, 1
      %s509 = smul.addr %s508, 2
      %s510 = smul.addr %s509, 8
      %s511 = scalar_lea.vmem %s16, %s510
      %p512 = scmp.lt.s32.totalorder %s27, 1
      %s513 = scalar_select %p512, %s27, 1
      %s514 = smul.addr %s513, 2
      %s515 = smul.addr %s514, 8
      %s516 = scalar_lea.vmem %s0, %s515
      %p517 = scmp.lt.s32.totalorder %s27, 1
      %s518 = scalar_select %p517, %s27, 1
      %s519 = smul.addr %s518, 2
      %s520 = smul.addr %s519, 8
      %s521 = scalar_lea.vmem %s16, %s520
      %v523 = vld [vmem:[%s516] sm:$0xff]
      %v524 = vld [vmem:[%s516 + $0x8] sm:$0xff]
      %v525 = vld [vmem:[%s1] sm:$0xff]
      %v526 = vld [vmem:[%s1 + $0x8] sm:$0xff]
      %v527 = vld [vmem:[%s2] sm:$0xff]
      %v528 = vld [vmem:[%s2 + $0x8] sm:$0xff]
      %v529 = vlaneseq
      %v530 = vshrl.u32 %v529, 7
      %v531 = vadd.s32 %v530, 8
      %v532 = vlaneseq
      %v533 = vand.u32 %v532, 127
      %vm534 = vcmp.le.s32.totalorder %v533, %v530
      %vm535 = vcmp.le.s32.totalorder %v533, %v531
      %vm536 = vcmp.lt.s32.totalorder %v533, 4
      %vm537 = vmor %vm534, %vm536
      %vm538 = vmor %vm535, %vm536
      %v539 = vsel %vm537, 0.0, -1e+09
      %v540 = vsel %vm538, 0.0, -1e+09
      %v541 = vld [vmem:[%s3] sm:$0x1]
      %v542 = vmul.f32 %v523, %v523
      %v543 = vmul.f32 %v524, %v524
      %vm544 = vcmask 261120
      %v545 = vsel %vm544, %v542, 0.0
      %546 = vadd.xlane.f32.xlu0 %v545
      %v547 = vpop.xlane.xlu0 %546
      %v548 = vsel %vm544, %v543, 0.0
      %549 = vadd.xlane.f32.xlu0 %v548
      %v550 = vpop.xlane.xlu0 %549
      %v551 = vrcp.pop 32.0
      %v552 = vmul.f32 %v547, %v551
      %v553 = vmul.f32 %v550, %v551
      %v554 = vadd.f32 %v552, 1e-06
      %v555 = vadd.f32 %v553, 1e-06
      %v556 = vrsqrt.pop %v554
      %v557 = vrsqrt.pop %v555
      %v558 = vmul.f32 %v523, %v556
      %v559 = vmul.f32 %v524, %v557
      %v561 = vlaneseq
      %v562 = vshrl.u32 %v561, 7
      %v563 = vsub.s32 0, %v562
      %v564 = vrot.slane %v541, %v563
      %v566 = vmul.f32 %v558, %v564
      %v567 = vmul.f32 %v559, %v564
      %v568 = vpack.c.bf16 %v567, %v566
      %v569 = vld [vmem:[%s4] sm:$0xf]
      %v570 = vld [vmem:[%s4 + $0x4] sm:$0xf]
      %v571 = vld [vmem:[%s4 + $0x8] sm:$0xf]
      %v572 = vld [vmem:[%s4 + $0xc] sm:$0xf]
      %v573 = vld [vmem:[%s5] sm:$0x1]
      %v575 = vlaneseq
      %v576 = vshrl.u32 %v575, 7
      %v577 = vsub.s32 0, %v576
      %v578 = vrot.slane %v573, %v577
      %v584 = vunpack.c.l.b16 %v569
      %v585 = vunpack.c.l.b16 %v570
      %v586 = vunpack.c.l.b16 %v571
      %v587 = vunpack.c.l.b16 %v572
      %v588 = vpack.c.b16 %v585, %v584
      %v589 = vpack.c.b16 %v587, %v586
      %v593 = vsel %vm544, %v568, 0
      %595 = vmatprep.subr.bf16.mxu0 0
      %596 = vmatpush1.bf16.msra.mxu0 %v588
      %597 = vmatprep.subr.bf16.mxu0 0
      %598 = vmatpush1.bf16.msra.mxu0 %v589
      %599 = vmatprep.subr.bf16.mxu0 0
      %600 = vmatpush1.bf16.msra.mxu0 0
      %601 = vmatprep.subr.bf16.mxu0 0
      %602 = vmatpush1.bf16.msra.mxu0 0
      %603 = vmatprep.subr.bf16.mxu0 0
      %604 = vmatpush1.bf16.msra.mxu0 0
      %605 = vmatprep.subr.bf16.mxu0 0
      %606 = vmatpush1.bf16.msra.mxu0 0
      %607 = vmatprep.subr.bf16.mxu0 0
      %608 = vmatpush1.bf16.msra.mxu0 0
      %609 = vmatprep.subr.bf16.mxu0 0
      %610 = vmatpush1.bf16.msra.mxu0 0
      %611 = vmatprep.subr.bf16.mxu0 0
      %612 = vmatpush1.bf16.msra.mxu0 0
      %613 = vmatprep.subr.bf16.mxu0 0
      %614 = vmatpush1.bf16.msra.mxu0 0
      %615 = vmatprep.subr.bf16.mxu0 0
      %616 = vmatpush1.bf16.msra.mxu0 0
      %617 = vmatprep.subr.bf16.mxu0 0
      %618 = vmatpush1.bf16.msra.mxu0 0
      %619 = vmatprep.subr.bf16.mxu0 0
      %620 = vmatpush1.bf16.msra.mxu0 0
      %621 = vmatprep.subr.bf16.mxu0 0
      %622 = vmatpush1.bf16.msra.mxu0 0
      %623 = vmatprep.subr.bf16.mxu0 0
      %624 = vmatpush1.bf16.msra.mxu0 0
      %625 = vmatprep.subr.bf16.mxu0 0
      %626 = vmatpush1.bf16.msra.mxu0 0
      %627 = vmatprep.mubr.bf16.mxu0 0
      %628 = vmatmul.mubr.bf16.gmra.mrb[0].mxu0 %v593
      %v629 = vpop.f32.mrb[0].mxu0
      %v630 = vadd.f32 %v578, %v629
      %v631 = vpop.f32.mrb[0].mxu0
      %v632 = vpop.f32.mrb[0].mxu0
      %v633 = vadd.f32 %v578, %v632
      %v634 = vpop.f32.mrb[0].mxu0
      %635 = vdwg.mxu0
      %638 = vrot.lane.b32.xlu0 %v630, 120
      %v639 = vpop.permute.xlu0 %638
      %640 = vrot.lane.b32.xlu0 %v633, 120
      %v641 = vpop.permute.xlu0 %640
      %644 = vrot.lane.b32.xlu0 %v630, 112
      %v645 = vpop.permute.xlu0 %644
      %646 = vrot.lane.b32.xlu0 %v633, 112
      %v647 = vpop.permute.xlu0 %646
      %650 = vrot.lane.b32.xlu0 %v630, 104
      %v651 = vpop.permute.xlu0 %650
      %652 = vrot.lane.b32.xlu0 %v633, 104
      %v653 = vpop.permute.xlu0 %652
      %v656 = vsub.f32 0.0, %v630
      %v657 = vsub.f32 0.0, %v633
      %v658 = vsub.f32 0.0, %v639
      %v659 = vsub.f32 0.0, %v641
      %v660 = vsub.f32 0.0, %v645
      %v661 = vsub.f32 0.0, %v647
      %v662 = vsub.f32 0.0, %v651
      %v663 = vsub.f32 0.0, %v653
      %672 = vrot.lane.b32.xlu0 %v656, 124
      %v673 = vpop.permute.xlu0 %672
      %674 = vrot.lane.b32.xlu0 %v657, 124
      %v675 = vpop.permute.xlu0 %674
      %676 = vrot.lane.b32.xlu0 %v658, 124
      %v677 = vpop.permute.xlu0 %676
      %678 = vrot.lane.b32.xlu0 %v659, 124
      %v679 = vpop.permute.xlu0 %678
      %680 = vrot.lane.b32.xlu0 %v660, 124
      %v681 = vpop.permute.xlu0 %680
      %682 = vrot.lane.b32.xlu0 %v661, 124
      %v683 = vpop.permute.xlu0 %682
      %684 = vrot.lane.b32.xlu0 %v662, 124
      %v685 = vpop.permute.xlu0 %684
      %686 = vrot.lane.b32.xlu0 %v663, 124
      %v687 = vpop.permute.xlu0 %686
      %696 = vrot.lane.b32.xlu0 %v630, 4
      %v697 = vpop.permute.xlu0 %696
      %698 = vrot.lane.b32.xlu0 %v633, 4
      %v699 = vpop.permute.xlu0 %698
      %700 = vrot.lane.b32.xlu0 %v639, 4
      %v701 = vpop.permute.xlu0 %700
      %702 = vrot.lane.b32.xlu0 %v641, 4
      %v703 = vpop.permute.xlu0 %702
      %704 = vrot.lane.b32.xlu0 %v645, 4
      %v705 = vpop.permute.xlu0 %704
      %706 = vrot.lane.b32.xlu0 %v647, 4
      %v707 = vpop.permute.xlu0 %706
      %708 = vrot.lane.b32.xlu0 %v651, 4
      %v709 = vpop.permute.xlu0 %708
      %710 = vrot.lane.b32.xlu0 %v653, 4
      %v711 = vpop.permute.xlu0 %710
      %vm720 = vcmask 31744
      %v721 = vsel %vm720, %v673, %v697
      %v722 = vsel %vm720, %v675, %v699
      %v723 = vsel %vm720, %v677, %v701
      %v724 = vsel %vm720, %v679, %v703
      %v725 = vsel %vm720, %v681, %v705
      %v726 = vsel %vm720, %v683, %v707
      %v727 = vsel %vm720, %v685, %v709
      %v728 = vsel %vm720, %v687, %v711
      %v729 = vmul.f32 %v630, %v525
      %v730 = vmul.f32 %v633, %v526
      %v731 = vmul.f32 %v639, %v525
      %v732 = vmul.f32 %v641, %v526
      %v733 = vmul.f32 %v645, %v525
      %v734 = vmul.f32 %v647, %v526
      %v735 = vmul.f32 %v651, %v525
      %v736 = vmul.f32 %v653, %v526
      %v737 = vmul.f32 %v721, %v527
      %v738 = vmul.f32 %v722, %v528
      %v739 = vmul.f32 %v723, %v527
      %v740 = vmul.f32 %v724, %v528
      %v741 = vmul.f32 %v725, %v527
      %v742 = vmul.f32 %v726, %v528
      %v743 = vmul.f32 %v727, %v527
      %v744 = vmul.f32 %v728, %v528
      %v745 = vadd.f32 %v729, %v737
      %v746 = vadd.f32 %v730, %v738
      %v747 = vadd.f32 %v731, %v739
      %v748 = vadd.f32 %v732, %v740
      %v749 = vadd.f32 %v733, %v741
      %v750 = vadd.f32 %v734, %v742
      %v751 = vadd.f32 %v735, %v743
      %v752 = vadd.f32 %v736, %v744
      %v753 = vmul.f32 %v745, 0.35355338
      %v754 = vmul.f32 %v746, 0.35355338
      %v755 = vmul.f32 %v747, 0.35355338
      %v756 = vmul.f32 %v748, 0.35355338
      %v757 = vmul.f32 %v749, 0.35355338
      %v758 = vmul.f32 %v750, 0.35355338
      %v759 = vmul.f32 %v751, 0.35355338
      %v760 = vmul.f32 %v752, 0.35355338
      %761 = vrot.lane.b32.xlu0 %v656, 92
      %v762 = vpop.permute.xlu0 %761
      %763 = vrot.lane.b32.xlu0 %v657, 92
      %v764 = vpop.permute.xlu0 %763
      %765 = vrot.lane.b32.xlu0 %v658, 92
      %v766 = vpop.permute.xlu0 %765
      %767 = vrot.lane.b32.xlu0 %v659, 92
      %v768 = vpop.permute.xlu0 %767
      %769 = vrot.lane.b32.xlu0 %v660, 92
      %v770 = vpop.permute.xlu0 %769
      %771 = vrot.lane.b32.xlu0 %v661, 92
      %v772 = vpop.permute.xlu0 %771
      %773 = vrot.lane.b32.xlu0 %v662, 92
      %v774 = vpop.permute.xlu0 %773
      %775 = vrot.lane.b32.xlu0 %v663, 92
      %v776 = vpop.permute.xlu0 %775
      %785 = vrot.lane.b32.xlu0 %v630, 100
      %v786 = vpop.permute.xlu0 %785
      %787 = vrot.lane.b32.xlu0 %v633, 100
      %v788 = vpop.permute.xlu0 %787
      %789 = vrot.lane.b32.xlu0 %v639, 100
      %v790 = vpop.permute.xlu0 %789
      %791 = vrot.lane.b32.xlu0 %v641, 100
      %v792 = vpop.permute.xlu0 %791
      %793 = vrot.lane.b32.xlu0 %v645, 100
      %v794 = vpop.permute.xlu0 %793
      %795 = vrot.lane.b32.xlu0 %v647, 100
      %v796 = vpop.permute.xlu0 %795
      %797 = vrot.lane.b32.xlu0 %v651, 100
      %v798 = vpop.permute.xlu0 %797
      %799 = vrot.lane.b32.xlu0 %v653, 100
      %v800 = vpop.permute.xlu0 %799
      %v809 = vsel %vm720, %v762, %v786
      %v810 = vsel %vm720, %v764, %v788
      %v811 = vsel %vm720, %v766, %v790
      %v812 = vsel %vm720, %v768, %v792
      %v813 = vsel %vm720, %v770, %v794
      %v814 = vsel %vm720, %v772, %v796
      %v815 = vsel %vm720, %v774, %v798
      %v816 = vsel %vm720, %v776, %v800
      %819 = vrot.lane.b32.xlu0 %v525, 32
      %v820 = vpop.permute.xlu0 %819
      %821 = vrot.lane.b32.xlu0 %v526, 32
      %v822 = vpop.permute.xlu0 %821
      %v825 = vmul.f32 %v630, %v820
      %v826 = vmul.f32 %v633, %v822
      %v827 = vmul.f32 %v639, %v820
      %v828 = vmul.f32 %v641, %v822
      %v829 = vmul.f32 %v645, %v820
      %v830 = vmul.f32 %v647, %v822
      %v831 = vmul.f32 %v651, %v820
      %v832 = vmul.f32 %v653, %v822
      %v833 = vmul.f32 %v809, %v527
      %v834 = vmul.f32 %v810, %v528
      %v835 = vmul.f32 %v811, %v527
      %v836 = vmul.f32 %v812, %v528
      %v837 = vmul.f32 %v813, %v527
      %v838 = vmul.f32 %v814, %v528
      %v839 = vmul.f32 %v815, %v527
      %v840 = vmul.f32 %v816, %v528
      %849 = vrot.lane.b32.xlu0 %v833, 32
      %v850 = vpop.permute.xlu0 %849
      %851 = vrot.lane.b32.xlu0 %v834, 32
      %v852 = vpop.permute.xlu0 %851
      %853 = vrot.lane.b32.xlu0 %v835, 32
      %v854 = vpop.permute.xlu0 %853
      %855 = vrot.lane.b32.xlu0 %v836, 32
      %v856 = vpop.permute.xlu0 %855
      %857 = vrot.lane.b32.xlu0 %v837, 32
      %v858 = vpop.permute.xlu0 %857
      %859 = vrot.lane.b32.xlu0 %v838, 32
      %v860 = vpop.permute.xlu0 %859
      %861 = vrot.lane.b32.xlu0 %v839, 32
      %v862 = vpop.permute.xlu0 %861
      %863 = vrot.lane.b32.xlu0 %v840, 32
      %v864 = vpop.permute.xlu0 %863
      %v873 = vadd.f32 %v825, %v850
      %v874 = vadd.f32 %v826, %v852
      %v875 = vadd.f32 %v827, %v854
      %v876 = vadd.f32 %v828, %v856
      %v877 = vadd.f32 %v829, %v858
      %v878 = vadd.f32 %v830, %v860
      %v879 = vadd.f32 %v831, %v862
      %v880 = vadd.f32 %v832, %v864
      %v881 = vpack.c.bf16 %v754, %v753
      %v882 = vpack.c.bf16 %v756, %v755
      %v883 = vpack.c.bf16 %v758, %v757
      %v884 = vpack.c.bf16 %v760, %v759
      %v885 = vpack.c.bf16 %v874, %v873
      %v886 = vpack.c.bf16 %v876, %v875
      %v887 = vpack.c.bf16 %v878, %v877
      %v888 = vpack.c.bf16 %v880, %v879
      %890 = vrot.lane.b32.xlu0 %v885, 96
      %v891 = vpop.permute.xlu0 %890
      %vm892 = vcmask 64512
      %v894 = vsel %vm892, %v881, 0
      %v897 = vsel %vm892, %v891, 0
      %899 = vmatprep.subr.bf16.mxu0 0
      %900 = vmatpush1.bf16.xpose.msra.mxu0 %v897
      %901 = vmatprep.subr.bf16.mxu0 0
      %902 = vmatpush1.bf16.xpose.msra.mxu0 0
      %903 = vmatprep.subr.bf16.mxu0 0
      %904 = vmatpush1.bf16.xpose.msra.mxu0 0
      %905 = vmatprep.subr.bf16.mxu0 0
      %906 = vmatpush1.bf16.xpose.msra.mxu0 0
      %907 = vmatprep.subr.bf16.mxu0 0
      %908 = vmatpush1.bf16.xpose.msra.mxu0 0
      %909 = vmatprep.subr.bf16.mxu0 0
      %910 = vmatpush1.bf16.xpose.msra.mxu0 0
      %911 = vmatprep.subr.bf16.mxu0 0
      %912 = vmatpush1.bf16.xpose.msra.mxu0 0
      %913 = vmatprep.subr.bf16.mxu0 0
      %914 = vmatpush1.bf16.xpose.msra.mxu0 0
      %915 = vmatprep.subr.bf16.mxu0 0
      %916 = vmatpush1.bf16.xpose.msra.mxu0 0
      %917 = vmatprep.subr.bf16.mxu0 0
      %918 = vmatpush1.bf16.xpose.msra.mxu0 0
      %919 = vmatprep.subr.bf16.mxu0 0
      %920 = vmatpush1.bf16.xpose.msra.mxu0 0
      %921 = vmatprep.subr.bf16.mxu0 0
      %922 = vmatpush1.bf16.xpose.msra.mxu0 0
      %923 = vmatprep.subr.bf16.mxu0 0
      %924 = vmatpush1.bf16.xpose.msra.mxu0 0
      %925 = vmatprep.subr.bf16.mxu0 0
      %926 = vmatpush1.bf16.xpose.msra.mxu0 0
      %927 = vmatprep.subr.bf16.mxu0 0
      %928 = vmatpush1.bf16.xpose.msra.mxu0 0
      %929 = vmatprep.subr.bf16.mxu0 0
      %930 = vmatpush1.bf16.xpose.msra.mxu0 0
      %931 = vmatprep.mubr.bf16.mxu0 0
      %932 = vmatmul.mubr.bf16.gmra.mrb[0].mxu0 %v894
      %v933 = vpop.f32.mrb[0].mxu0
      %v934 = vadd.f32 %v539, %v933
      %v935 = vpop.f32.mrb[0].mxu0
      %v936 = vpop.f32.mrb[0].mxu0
      %v937 = vadd.f32 %v540, %v936
      %v938 = vpop.f32.mrb[0].mxu0
      %939 = vdwg.mxu0
      %941 = vrot.lane.b32.xlu0 %v886, 96
      %v942 = vpop.permute.xlu0 %941
      %v944 = vsel %vm892, %v882, 0
      %v947 = vsel %vm892, %v942, 0
      %949 = vmatprep.subr.bf16.mxu0 0
      %950 = vmatpush1.bf16.xpose.msra.mxu0 %v947
      %951 = vmatprep.subr.bf16.mxu0 0
      %952 = vmatpush1.bf16.xpose.msra.mxu0 0
      %953 = vmatprep.subr.bf16.mxu0 0
      %954 = vmatpush1.bf16.xpose.msra.mxu0 0
      %955 = vmatprep.subr.bf16.mxu0 0
      %956 = vmatpush1.bf16.xpose.msra.mxu0 0
      %957 = vmatprep.subr.bf16.mxu0 0
      %958 = vmatpush1.bf16.xpose.msra.mxu0 0
      %959 = vmatprep.subr.bf16.mxu0 0
      %960 = vmatpush1.bf16.xpose.msra.mxu0 0
      %961 = vmatprep.subr.bf16.mxu0 0
      %962 = vmatpush1.bf16.xpose.msra.mxu0 0
      %963 = vmatprep.subr.bf16.mxu0 0
      %964 = vmatpush1.bf16.xpose.msra.mxu0 0
      %965 = vmatprep.subr.bf16.mxu0 0
      %966 = vmatpush1.bf16.xpose.msra.mxu0 0
      %967 = vmatprep.subr.bf16.mxu0 0
      %968 = vmatpush1.bf16.xpose.msra.mxu0 0
      %969 = vmatprep.subr.bf16.mxu0 0
      %970 = vmatpush1.bf16.xpose.msra.mxu0 0
      %971 = vmatprep.subr.bf16.mxu0 0
      %972 = vmatpush1.bf16.xpose.msra.mxu0 0
      %973 = vmatprep.subr.bf16.mxu0 0
      %974 = vmatpush1.bf16.xpose.msra.mxu0 0
      %975 = vmatprep.subr.bf16.mxu0 0
      %976 = vmatpush1.bf16.xpose.msra.mxu0 0
      %977 = vmatprep.subr.bf16.mxu0 0
      %978 = vmatpush1.bf16.xpose.msra.mxu0 0
      %979 = vmatprep.subr.bf16.mxu0 0
      %980 = vmatpush1.bf16.xpose.msra.mxu0 0
      %981 = vmatprep.mubr.bf16.mxu0 0
      %982 = vmatmul.mubr.bf16.gmra.mrb[0].mxu0 %v944
      %v983 = vpop.f32.mrb[0].mxu0
      %v984 = vadd.f32 %v539, %v983
      %v985 = vpop.f32.mrb[0].mxu0
      %v986 = vpop.f32.mrb[0].mxu0
      %v987 = vadd.f32 %v540, %v986
      %v988 = vpop.f32.mrb[0].mxu0
      %989 = vdwg.mxu0
      %991 = vrot.lane.b32.xlu0 %v887, 96
      %v992 = vpop.permute.xlu0 %991
      %v994 = vsel %vm892, %v883, 0
      %v997 = vsel %vm892, %v992, 0
      %999 = vmatprep.subr.bf16.mxu0 0
      %1000 = vmatpush1.bf16.xpose.msra.mxu0 %v997
      %1001 = vmatprep.subr.bf16.mxu0 0
      %1002 = vmatpush1.bf16.xpose.msra.mxu0 0
      %1003 = vmatprep.subr.bf16.mxu0 0
      %1004 = vmatpush1.bf16.xpose.msra.mxu0 0
      %1005 = vmatprep.subr.bf16.mxu0 0
      %1006 = vmatpush1.bf16.xpose.msra.mxu0 0
      %1007 = vmatprep.subr.bf16.mxu0 0
      %1008 = vmatpush1.bf16.xpose.msra.mxu0 0
      %1009 = vmatprep.subr.bf16.mxu0 0
      %1010 = vmatpush1.bf16.xpose.msra.mxu0 0
      %1011 = vmatprep.subr.bf16.mxu0 0
      %1012 = vmatpush1.bf16.xpose.msra.mxu0 0
      %1013 = vmatprep.subr.bf16.mxu0 0
      %1014 = vmatpush1.bf16.xpose.msra.mxu0 0
      %1015 = vmatprep.subr.bf16.mxu0 0
      %1016 = vmatpush1.bf16.xpose.msra.mxu0 0
      %1017 = vmatprep.subr.bf16.mxu0 0
      %1018 = vmatpush1.bf16.xpose.msra.mxu0 0
      %1019 = vmatprep.subr.bf16.mxu0 0
      %1020 = vmatpush1.bf16.xpose.msra.mxu0 0
      %1021 = vmatprep.subr.bf16.mxu0 0
      %1022 = vmatpush1.bf16.xpose.msra.mxu0 0
      %1023 = vmatprep.subr.bf16.mxu0 0
      %1024 = vmatpush1.bf16.xpose.msra.mxu0 0
      %1025 = vmatprep.subr.bf16.mxu0 0
      %1026 = vmatpush1.bf16.xpose.msra.mxu0 0
      %1027 = vmatprep.subr.bf16.mxu0 0
      %1028 = vmatpush1.bf16.xpose.msra.mxu0 0
      %1029 = vmatprep.subr.bf16.mxu0 0
      %1030 = vmatpush1.bf16.xpose.msra.mxu0 0
      %1031 = vmatprep.mubr.bf16.mxu0 0
      %1032 = vmatmul.mubr.bf16.gmra.mrb[0].mxu0 %v994
      %v1033 = vpop.f32.mrb[0].mxu0
      %v1034 = vadd.f32 %v539, %v1033
      %v1035 = vpop.f32.mrb[0].mxu0
      %v1036 = vpop.f32.mrb[0].mxu0
      %v1037 = vadd.f32 %v540, %v1036
      %v1038 = vpop.f32.mrb[0].mxu0
      %1039 = vdwg.mxu0
      %1041 = vrot.lane.b32.xlu0 %v888, 96
      %v1042 = vpop.permute.xlu0 %1041
      %v1044 = vsel %vm892, %v884, 0
      %v1047 = vsel %vm892, %v1042, 0
      %1049 = vmatprep.subr.bf16.mxu0 0
      %1050 = vmatpush1.bf16.xpose.msra.mxu0 %v1047
      %1051 = vmatprep.subr.bf16.mxu0 0
      %1052 = vmatpush1.bf16.xpose.msra.mxu0 0
      %1053 = vmatprep.subr.bf16.mxu0 0
      %1054 = vmatpush1.bf16.xpose.msra.mxu0 0
      %1055 = vmatprep.subr.bf16.mxu0 0
      %1056 = vmatpush1.bf16.xpose.msra.mxu0 0
      %1057 = vmatprep.subr.bf16.mxu0 0
      %1058 = vmatpush1.bf16.xpose.msra.mxu0 0
      %1059 = vmatprep.subr.bf16.mxu0 0
      %1060 = vmatpush1.bf16.xpose.msra.mxu0 0
      %1061 = vmatprep.subr.bf16.mxu0 0
      %1062 = vmatpush1.bf16.xpose.msra.mxu0 0
      %1063 = vmatprep.subr.bf16.mxu0 0
      %1064 = vmatpush1.bf16.xpose.msra.mxu0 0
      %1065 = vmatprep.subr.bf16.mxu0 0
      %1066 = vmatpush1.bf16.xpose.msra.mxu0 0
      %1067 = vmatprep.subr.bf16.mxu0 0
      %1068 = vmatpush1.bf16.xpose.msra.mxu0 0
      %1069 = vmatprep.subr.bf16.mxu0 0
      %1070 = vmatpush1.bf16.xpose.msra.mxu0 0
      %1071 = vmatprep.subr.bf16.mxu0 0
      %1072 = vmatpush1.bf16.xpose.msra.mxu0 0
      %1073 = vmatprep.subr.bf16.mxu0 0
      %1074 = vmatpush1.bf16.xpose.msra.mxu0 0
      %1075 = vmatprep.subr.bf16.mxu0 0
      %1076 = vmatpush1.bf16.xpose.msra.mxu0 0
      %1077 = vmatprep.subr.bf16.mxu0 0
      %1078 = vmatpush1.bf16.xpose.msra.mxu0 0
      %1079 = vmatprep.subr.bf16.mxu0 0
      %1080 = vmatpush1.bf16.xpose.msra.mxu0 0
      %1081 = vmatprep.mubr.bf16.mxu0 0
      %1082 = vmatmul.mubr.bf16.gmra.mrb[0].mxu0 %v1044
      %v1083 = vpop.f32.mrb[0].mxu0
      %v1084 = vadd.f32 %v539, %v1083
      %v1085 = vpop.f32.mrb[0].mxu0
      %v1086 = vpop.f32.mrb[0].mxu0
      %v1087 = vadd.f32 %v540, %v1086
      %v1088 = vpop.f32.mrb[0].mxu0
      %1089 = vdwg.mxu0
      %vm1090 = vcmask 130048
      %v1091 = vsel %vm1090, %v934, -inf
      %1092 = vmax.xlane.f32.xlu0 %v1091
      %v1093 = vpop.xlane.xlu0 %1092
      %v1094 = vsel %vm1090, %v937, -inf
      %1095 = vmax.xlane.f32.xlu0 %v1094
      %v1096 = vpop.xlane.xlu0 %1095
      %v1097 = vsel %vm1090, %v984, -inf
      %1098 = vmax.xlane.f32.xlu0 %v1097
      %v1099 = vpop.xlane.xlu0 %1098
      %v1100 = vsel %vm1090, %v987, -inf
      %1101 = vmax.xlane.f32.xlu0 %v1100
      %v1102 = vpop.xlane.xlu0 %1101
      %v1103 = vsel %vm1090, %v1034, -inf
      %1104 = vmax.xlane.f32.xlu0 %v1103
      %v1105 = vpop.xlane.xlu0 %1104
      %v1106 = vsel %vm1090, %v1037, -inf
      %1107 = vmax.xlane.f32.xlu0 %v1106
      %v1108 = vpop.xlane.xlu0 %1107
      %v1109 = vsel %vm1090, %v1084, -inf
      %1110 = vmax.xlane.f32.xlu0 %v1109
      %v1111 = vpop.xlane.xlu0 %1110
      %v1112 = vsel %vm1090, %v1087, -inf
      %1113 = vmax.xlane.f32.xlu0 %v1112
      %v1114 = vpop.xlane.xlu0 %1113
      %v1115 = vsub.f32 %v934, %v1093
      %v1116 = vsub.f32 %v937, %v1096
      %v1117 = vsub.f32 %v984, %v1099
      %v1118 = vsub.f32 %v987, %v1102
      %v1119 = vsub.f32 %v1034, %v1105
      %v1120 = vsub.f32 %v1037, %v1108
      %v1121 = vsub.f32 %v1084, %v1111
      %v1122 = vsub.f32 %v1087, %v1114
      %v1123 = vmul.f32 %v1115, 1.442695
      %v1124 = vpow.pop %v1123
      %v1125 = vmul.f32 %v1116, 1.442695
      %v1126 = vpow.pop %v1125
      %v1127 = vmul.f32 %v1117, 1.442695
      %v1128 = vpow.pop %v1127
      %v1129 = vmul.f32 %v1118, 1.442695
      %v1130 = vpow.pop %v1129
      %v1131 = vmul.f32 %v1119, 1.442695
      %v1132 = vpow.pop %v1131
      %v1133 = vmul.f32 %v1120, 1.442695
      %v1134 = vpow.pop %v1133
      %v1135 = vmul.f32 %v1121, 1.442695
      %v1136 = vpow.pop %v1135
      %v1137 = vmul.f32 %v1122, 1.442695
      %v1138 = vpow.pop %v1137
      %v1139 = vsel %vm1090, %v1124, 0.0
      %1140 = vadd.xlane.f32.xlu0 %v1139
      %v1141 = vpop.xlane.xlu0 %1140
      %v1142 = vsel %vm1090, %v1126, 0.0
      %1143 = vadd.xlane.f32.xlu0 %v1142
      %v1144 = vpop.xlane.xlu0 %1143
      %v1145 = vsel %vm1090, %v1128, 0.0
      %1146 = vadd.xlane.f32.xlu0 %v1145
      %v1147 = vpop.xlane.xlu0 %1146
      %v1148 = vsel %vm1090, %v1130, 0.0
      %1149 = vadd.xlane.f32.xlu0 %v1148
      %v1150 = vpop.xlane.xlu0 %1149
      %v1151 = vsel %vm1090, %v1132, 0.0
      %1152 = vadd.xlane.f32.xlu0 %v1151
      %v1153 = vpop.xlane.xlu0 %1152
      %v1154 = vsel %vm1090, %v1134, 0.0
      %1155 = vadd.xlane.f32.xlu0 %v1154
      %v1156 = vpop.xlane.xlu0 %1155
      %v1157 = vsel %vm1090, %v1136, 0.0
      %1158 = vadd.xlane.f32.xlu0 %v1157
      %v1159 = vpop.xlane.xlu0 %1158
      %v1160 = vsel %vm1090, %v1138, 0.0
      %1161 = vadd.xlane.f32.xlu0 %v1160
      %v1162 = vpop.xlane.xlu0 %1161
      %v1163 = vrcp.pop %v1141
      %v1164 = vrcp.pop %v1144
      %v1165 = vrcp.pop %v1147
      %v1166 = vrcp.pop %v1150
      %v1167 = vrcp.pop %v1153
      %v1168 = vrcp.pop %v1156
      %v1169 = vrcp.pop %v1159
      %v1170 = vrcp.pop %v1162
      %v1171 = vpack.c.bf16 %v1126, %v1124
      %v1172 = vpack.c.bf16 %v1130, %v1128
      %v1173 = vpack.c.bf16 %v1134, %v1132
      %v1174 = vpack.c.bf16 %v1138, %v1136
      %v1175 = vpack.c.bf16 %v633, %v630
      %v1176 = vpack.c.bf16 %v641, %v639
      %v1177 = vpack.c.bf16 %v647, %v645
      %v1178 = vpack.c.bf16 %v653, %v651
      %1180 = vrot.lane.b32.xlu0 %v1175, 64
      %v1181 = vpop.permute.xlu0 %1180
      %v1184 = vsel %vm1090, %v1171, 0
      %1186 = vmatprep.subr.bf16.mxu0 0
      %1187 = vmatpush1.bf16.msra.mxu0 %v1181
      %1188 = vmatprep.subr.bf16.mxu0 0
      %1189 = vmatpush1.bf16.msra.mxu0 0
      %1190 = vmatprep.subr.bf16.mxu0 0
      %1191 = vmatpush1.bf16.msra.mxu0 0
      %1192 = vmatprep.subr.bf16.mxu0 0
      %1193 = vmatpush1.bf16.msra.mxu0 0
      %1194 = vmatprep.subr.bf16.mxu0 0
      %1195 = vmatpush1.bf16.msra.mxu0 0
      %1196 = vmatprep.subr.bf16.mxu0 0
      %1197 = vmatpush1.bf16.msra.mxu0 0
      %1198 = vmatprep.subr.bf16.mxu0 0
      %1199 = vmatpush1.bf16.msra.mxu0 0
      %1200 = vmatprep.subr.bf16.mxu0 0
      %1201 = vmatpush1.bf16.msra.mxu0 0
      %1202 = vmatprep.subr.bf16.mxu0 0
      %1203 = vmatpush1.bf16.msra.mxu0 0
      %1204 = vmatprep.subr.bf16.mxu0 0
      %1205 = vmatpush1.bf16.msra.mxu0 0
      %1206 = vmatprep.subr.bf16.mxu0 0
      %1207 = vmatpush1.bf16.msra.mxu0 0
      %1208 = vmatprep.subr.bf16.mxu0 0
      %1209 = vmatpush1.bf16.msra.mxu0 0
      %1210 = vmatprep.subr.bf16.mxu0 0
      %1211 = vmatpush1.bf16.msra.mxu0 0
      %1212 = vmatprep.subr.bf16.mxu0 0
      %1213 = vmatpush1.bf16.msra.mxu0 0
      %1214 = vmatprep.subr.bf16.mxu0 0
      %1215 = vmatpush1.bf16.msra.mxu0 0
      %1216 = vmatprep.subr.bf16.mxu0 0
      %1217 = vmatpush1.bf16.msra.mxu0 0
      %1218 = vmatprep.mubr.bf16.mxu0 0
      %1219 = vmatmul.mubr.bf16.gmra.mrb[0].mxu0 %v1184
      %v1220 = vpop.f32.mrb[0].mxu0
      %v1221 = vadd.f32 0.0, %v1220
      %v1222 = vpop.f32.mrb[0].mxu0
      %v1223 = vpop.f32.mrb[0].mxu0
      %v1224 = vadd.f32 0.0, %v1223
      %v1225 = vpop.f32.mrb[0].mxu0
      %1226 = vdwg.mxu0
      %1228 = vrot.lane.b32.xlu0 %v1176, 64
      %v1229 = vpop.permute.xlu0 %1228
      %v1232 = vsel %vm1090, %v1172, 0
      %1234 = vmatprep.subr.bf16.mxu0 0
      %1235 = vmatpush1.bf16.msra.mxu0 %v1229
      %1236 = vmatprep.subr.bf16.mxu0 0
      %1237 = vmatpush1.bf16.msra.mxu0 0
      %1238 = vmatprep.subr.bf16.mxu0 0
      %1239 = vmatpush1.bf16.msra.mxu0 0
      %1240 = vmatprep.subr.bf16.mxu0 0
      %1241 = vmatpush1.bf16.msra.mxu0 0
      %1242 = vmatprep.subr.bf16.mxu0 0
      %1243 = vmatpush1.bf16.msra.mxu0 0
      %1244 = vmatprep.subr.bf16.mxu0 0
      %1245 = vmatpush1.bf16.msra.mxu0 0
      %1246 = vmatprep.subr.bf16.mxu0 0
      %1247 = vmatpush1.bf16.msra.mxu0 0
      %1248 = vmatprep.subr.bf16.mxu0 0
      %1249 = vmatpush1.bf16.msra.mxu0 0
      %1250 = vmatprep.subr.bf16.mxu0 0
      %1251 = vmatpush1.bf16.msra.mxu0 0
      %1252 = vmatprep.subr.bf16.mxu0 0
      %1253 = vmatpush1.bf16.msra.mxu0 0
      %1254 = vmatprep.subr.bf16.mxu0 0
      %1255 = vmatpush1.bf16.msra.mxu0 0
      %1256 = vmatprep.subr.bf16.mxu0 0
      %1257 = vmatpush1.bf16.msra.mxu0 0
      %1258 = vmatprep.subr.bf16.mxu0 0
      %1259 = vmatpush1.bf16.msra.mxu0 0
      %1260 = vmatprep.subr.bf16.mxu0 0
      %1261 = vmatpush1.bf16.msra.mxu0 0
      %1262 = vmatprep.subr.bf16.mxu0 0
      %1263 = vmatpush1.bf16.msra.mxu0 0
      %1264 = vmatprep.subr.bf16.mxu0 0
      %1265 = vmatpush1.bf16.msra.mxu0 0
      %1266 = vmatprep.mubr.bf16.mxu0 0
      %1267 = vmatmul.mubr.bf16.gmra.mrb[0].mxu0 %v1232
      %v1268 = vpop.f32.mrb[0].mxu0
      %v1269 = vadd.f32 0.0, %v1268
      %v1270 = vpop.f32.mrb[0].mxu0
      %v1271 = vpop.f32.mrb[0].mxu0
      %v1272 = vadd.f32 0.0, %v1271
      %v1273 = vpop.f32.mrb[0].mxu0
      %1274 = vdwg.mxu0
      %1276 = vrot.lane.b32.xlu0 %v1177, 64
      %v1277 = vpop.permute.xlu0 %1276
      %v1280 = vsel %vm1090, %v1173, 0
      %1282 = vmatprep.subr.bf16.mxu0 0
      %1283 = vmatpush1.bf16.msra.mxu0 %v1277
      %1284 = vmatprep.subr.bf16.mxu0 0
      %1285 = vmatpush1.bf16.msra.mxu0 0
      %1286 = vmatprep.subr.bf16.mxu0 0
      %1287 = vmatpush1.bf16.msra.mxu0 0
      %1288 = vmatprep.subr.bf16.mxu0 0
      %1289 = vmatpush1.bf16.msra.mxu0 0
      %1290 = vmatprep.subr.bf16.mxu0 0
      %1291 = vmatpush1.bf16.msra.mxu0 0
      %1292 = vmatprep.subr.bf16.mxu0 0
      %1293 = vmatpush1.bf16.msra.mxu0 0
      %1294 = vmatprep.subr.bf16.mxu0 0
      %1295 = vmatpush1.bf16.msra.mxu0 0
      %1296 = vmatprep.subr.bf16.mxu0 0
      %1297 = vmatpush1.bf16.msra.mxu0 0
      %1298 = vmatprep.subr.bf16.mxu0 0
      %1299 = vmatpush1.bf16.msra.mxu0 0
      %1300 = vmatprep.subr.bf16.mxu0 0
      %1301 = vmatpush1.bf16.msra.mxu0 0
      %1302 = vmatprep.subr.bf16.mxu0 0
      %1303 = vmatpush1.bf16.msra.mxu0 0
      %1304 = vmatprep.subr.bf16.mxu0 0
      %1305 = vmatpush1.bf16.msra.mxu0 0
      %1306 = vmatprep.subr.bf16.mxu0 0
      %1307 = vmatpush1.bf16.msra.mxu0 0
      %1308 = vmatprep.subr.bf16.mxu0 0
      %1309 = vmatpush1.bf16.msra.mxu0 0
      %1310 = vmatprep.subr.bf16.mxu0 0
      %1311 = vmatpush1.bf16.msra.mxu0 0
      %1312 = vmatprep.subr.bf16.mxu0 0
      %1313 = vmatpush1.bf16.msra.mxu0 0
      %1314 = vmatprep.mubr.bf16.mxu0 0
      %1315 = vmatmul.mubr.bf16.gmra.mrb[0].mxu0 %v1280
      %v1316 = vpop.f32.mrb[0].mxu0
      %v1317 = vadd.f32 0.0, %v1316
      %v1318 = vpop.f32.mrb[0].mxu0
      %v1319 = vpop.f32.mrb[0].mxu0
      %v1320 = vadd.f32 0.0, %v1319
      %v1321 = vpop.f32.mrb[0].mxu0
      %1322 = vdwg.mxu0
      %1324 = vrot.lane.b32.xlu0 %v1178, 64
      %v1325 = vpop.permute.xlu0 %1324
      %v1328 = vsel %vm1090, %v1174, 0
      %1330 = vmatprep.subr.bf16.mxu0 0
      %1331 = vmatpush1.bf16.msra.mxu0 %v1325
      %1332 = vmatprep.subr.bf16.mxu0 0
      %1333 = vmatpush1.bf16.msra.mxu0 0
      %1334 = vmatprep.subr.bf16.mxu0 0
      %1335 = vmatpush1.bf16.msra.mxu0 0
      %1336 = vmatprep.subr.bf16.mxu0 0
      %1337 = vmatpush1.bf16.msra.mxu0 0
      %1338 = vmatprep.subr.bf16.mxu0 0
      %1339 = vmatpush1.bf16.msra.mxu0 0
      %1340 = vmatprep.subr.bf16.mxu0 0
      %1341 = vmatpush1.bf16.msra.mxu0 0
      %1342 = vmatprep.subr.bf16.mxu0 0
      %1343 = vmatpush1.bf16.msra.mxu0 0
      %1344 = vmatprep.subr.bf16.mxu0 0
      %1345 = vmatpush1.bf16.msra.mxu0 0
      %1346 = vmatprep.subr.bf16.mxu0 0
      %1347 = vmatpush1.bf16.msra.mxu0 0
      %1348 = vmatprep.subr.bf16.mxu0 0
      %1349 = vmatpush1.bf16.msra.mxu0 0
      %1350 = vmatprep.subr.bf16.mxu0 0
      %1351 = vmatpush1.bf16.msra.mxu0 0
      %1352 = vmatprep.subr.bf16.mxu0 0
      %1353 = vmatpush1.bf16.msra.mxu0 0
      %1354 = vmatprep.subr.bf16.mxu0 0
      %1355 = vmatpush1.bf16.msra.mxu0 0
      %1356 = vmatprep.subr.bf16.mxu0 0
      %1357 = vmatpush1.bf16.msra.mxu0 0
      %1358 = vmatprep.subr.bf16.mxu0 0
      %1359 = vmatpush1.bf16.msra.mxu0 0
      %1360 = vmatprep.subr.bf16.mxu0 0
      %1361 = vmatpush1.bf16.msra.mxu0 0
      %1362 = vmatprep.mubr.bf16.mxu0 0
      %1363 = vmatmul.mubr.bf16.gmra.mrb[0].mxu0 %v1328
      %v1364 = vpop.f32.mrb[0].mxu0
      %v1365 = vadd.f32 0.0, %v1364
      %v1366 = vpop.f32.mrb[0].mxu0
      %v1367 = vpop.f32.mrb[0].mxu0
      %v1368 = vadd.f32 0.0, %v1367
      %v1369 = vpop.f32.mrb[0].mxu0
      %1370 = vdwg.mxu0
      %v1371 = vmul.f32 %v1221, %v1163
      %v1372 = vmul.f32 %v1224, %v1164
      %v1373 = vmul.f32 %v1269, %v1165
      %v1374 = vmul.f32 %v1272, %v1166
      %v1375 = vmul.f32 %v1317, %v1167
      %v1376 = vmul.f32 %v1320, %v1168
      %v1377 = vmul.f32 %v1365, %v1169
      %v1378 = vmul.f32 %v1368, %v1170
      %1381 = vrot.lane.b32.xlu0 %v1373, 8
      %v1382 = vpop.permute.xlu0 %1381
      %1383 = vrot.lane.b32.xlu0 %v1374, 8
      %v1384 = vpop.permute.xlu0 %1383
      %1389 = vrot.lane.b32.xlu0 %v1375, 16
      %v1390 = vpop.permute.xlu0 %1389
      %1391 = vrot.lane.b32.xlu0 %v1376, 16
      %v1392 = vpop.permute.xlu0 %1391
      %1397 = vrot.lane.b32.xlu0 %v1377, 24
      %v1398 = vpop.permute.xlu0 %1397
      %1399 = vrot.lane.b32.xlu0 %v1378, 24
      %v1400 = vpop.permute.xlu0 %1399
      %v1403 = vsel %vm892, %v1371, %v1382
      %v1404 = vsel %vm892, %v1372, %v1384
      %v1405 = vsel %vm1090, %v1403, %v1390
      %v1406 = vsel %vm1090, %v1404, %v1392
      %vm1407 = vcmask 195584
      %v1408 = vsel %vm1407, %v1405, %v1398
      %v1409 = vsel %vm1407, %v1406, %v1400
      %v1410 = vpack.c.bf16 %v1409, %v1408
      %v1411 = vld [vmem:[%s6] sm:$0xf]
      %v1412 = vld [vmem:[%s6 + $0x4] sm:$0xf]
      %v1413 = vld [vmem:[%s6 + $0x8] sm:$0xf]
      %v1414 = vld [vmem:[%s6 + $0xc] sm:$0xf]
      %v1419 = vunpack.c.l.b16 %v1411
      %v1420 = vunpack.c.l.b16 %v1412
      %v1421 = vunpack.c.l.b16 %v1413
      %v1422 = vunpack.c.l.b16 %v1414
      %v1423 = vpack.c.b16 %v1420, %v1419
      %v1424 = vpack.c.b16 %v1422, %v1421
      %v1428 = vsel %vm544, %v1410, 0
      %1430 = vmatprep.subr.bf16.mxu0 0
      %1431 = vmatpush1.bf16.msra.mxu0 %v1423
      %1432 = vmatprep.subr.bf16.mxu0 0
      %1433 = vmatpush1.bf16.msra.mxu0 %v1424
      %1434 = vmatprep.subr.bf16.mxu0 0
      %1435 = vmatpush1.bf16.msra.mxu0 0
      %1436 = vmatprep.subr.bf16.mxu0 0
      %1437 = vmatpush1.bf16.msra.mxu0 0
      %1438 = vmatprep.subr.bf16.mxu0 0
      %1439 = vmatpush1.bf16.msra.mxu0 0
      %1440 = vmatprep.subr.bf16.mxu0 0
      %1441 = vmatpush1.bf16.msra.mxu0 0
      %1442 = vmatprep.subr.bf16.mxu0 0
      %1443 = vmatpush1.bf16.msra.mxu0 0
      %1444 = vmatprep.subr.bf16.mxu0 0
      %1445 = vmatpush1.bf16.msra.mxu0 0
      %1446 = vmatprep.subr.bf16.mxu0 0
      %1447 = vmatpush1.bf16.msra.mxu0 0
      %1448 = vmatprep.subr.bf16.mxu0 0
      %1449 = vmatpush1.bf16.msra.mxu0 0
      %1450 = vmatprep.subr.bf16.mxu0 0
      %1451 = vmatpush1.bf16.msra.mxu0 0
      %1452 = vmatprep.subr.bf16.mxu0 0
      %1453 = vmatpush1.bf16.msra.mxu0 0
      %1454 = vmatprep.subr.bf16.mxu0 0
      %1455 = vmatpush1.bf16.msra.mxu0 0
      %1456 = vmatprep.subr.bf16.mxu0 0
      %1457 = vmatpush1.bf16.msra.mxu0 0
      %1458 = vmatprep.subr.bf16.mxu0 0
      %1459 = vmatpush1.bf16.msra.mxu0 0
      %1460 = vmatprep.subr.bf16.mxu0 0
      %1461 = vmatpush1.bf16.msra.mxu0 0
      %1462 = vmatprep.mubr.bf16.mxu0 0
      %1463 = vmatmul.mubr.bf16.gmra.mrb[0].mxu0 %v1428
      %v1464 = vpop.f32.mrb[0].mxu0
      %v1465 = vadd.f32 0.0, %v1464
      %v1466 = vpop.f32.mrb[0].mxu0
      %v1467 = vpop.f32.mrb[0].mxu0
      %v1468 = vadd.f32 0.0, %v1467
      %v1469 = vpop.f32.mrb[0].mxu0
      %1470 = vdwg.mxu0
      %v1471 = vadd.f32 %v523, %v1465
      %v1472 = vadd.f32 %v524, %v1468
      %v1473 = vld [vmem:[%s7] sm:$0x1]
      %v1475 = vlaneseq
      %v1476 = vshrl.u32 %v1475, 7
      %v1477 = vsub.s32 0, %v1476
      %v1478 = vrot.slane %v1473, %v1477
      %v1480 = vadd.f32 %v1471, %v1478
      %v1481 = vadd.f32 %v1472, %v1478
      %v1482 = vld [vmem:[%s8] sm:$0x1]
      %v1483 = vmul.f32 %v1480, %v1480
      %v1484 = vmul.f32 %v1481, %v1481
      %v1485 = vsel %vm544, %v1483, 0.0
      %1486 = vadd.xlane.f32.xlu0 %v1485
      %v1487 = vpop.xlane.xlu0 %1486
      %v1488 = vsel %vm544, %v1484, 0.0
      %1489 = vadd.xlane.f32.xlu0 %v1488
      %v1490 = vpop.xlane.xlu0 %1489
      %v1491 = vmul.f32 %v1487, %v551
      %v1492 = vmul.f32 %v1490, %v551
      %v1493 = vadd.f32 %v1491, 1e-06
      %v1494 = vadd.f32 %v1492, 1e-06
      %v1495 = vrsqrt.pop %v1493
      %v1496 = vrsqrt.pop %v1494
      %v1497 = vmul.f32 %v1480, %v1495
      %v1498 = vmul.f32 %v1481, %v1496
      %v1500 = vlaneseq
      %v1501 = vshrl.u32 %v1500, 7
      %v1502 = vsub.s32 0, %v1501
      %v1503 = vrot.slane %v1482, %v1502
      %v1505 = vmul.f32 %v1497, %v1503
      %v1506 = vmul.f32 %v1498, %v1503
      %v1507 = vpack.c.bf16 %v1506, %v1505
      %v1508 = vld [vmem:[%s9] sm:$0xf]
      %v1509 = vld [vmem:[%s9 + $0x4] sm:$0xf]
      %v1510 = vld [vmem:[%s9 + $0x8] sm:$0xf]
      %v1511 = vld [vmem:[%s9 + $0xc] sm:$0xf]
      %v1512 = vld [vmem:[%s10] sm:$0x1]
      %v1514 = vlaneseq
      %v1515 = vshrl.u32 %v1514, 7
      %v1516 = vsub.s32 0, %v1515
      %v1517 = vrot.slane %v1512, %v1516
      %v1523 = vunpack.c.l.b16 %v1508
      %v1524 = vunpack.c.l.b16 %v1509
      %v1525 = vunpack.c.l.b16 %v1510
      %v1526 = vunpack.c.l.b16 %v1511
      %v1527 = vpack.c.b16 %v1524, %v1523
      %v1528 = vpack.c.b16 %v1526, %v1525
      %v1532 = vsel %vm544, %v1507, 0
      %1534 = vmatprep.subr.bf16.mxu0 0
      %1535 = vmatpush1.bf16.msra.mxu0 %v1527
      %1536 = vmatprep.subr.bf16.mxu0 0
      %1537 = vmatpush1.bf16.msra.mxu0 %v1528
      %1538 = vmatprep.subr.bf16.mxu0 0
      %1539 = vmatpush1.bf16.msra.mxu0 0
      %1540 = vmatprep.subr.bf16.mxu0 0
      %1541 = vmatpush1.bf16.msra.mxu0 0
      %1542 = vmatprep.subr.bf16.mxu0 0
      %1543 = vmatpush1.bf16.msra.mxu0 0
      %1544 = vmatprep.subr.bf16.mxu0 0
      %1545 = vmatpush1.bf16.msra.mxu0 0
      %1546 = vmatprep.subr.bf16.mxu0 0
      %1547 = vmatpush1.bf16.msra.mxu0 0
      %1548 = vmatprep.subr.bf16.mxu0 0
      %1549 = vmatpush1.bf16.msra.mxu0 0
      %1550 = vmatprep.subr.bf16.mxu0 0
      %1551 = vmatpush1.bf16.msra.mxu0 0
      %1552 = vmatprep.subr.bf16.mxu0 0
      %1553 = vmatpush1.bf16.msra.mxu0 0
      %1554 = vmatprep.subr.bf16.mxu0 0
      %1555 = vmatpush1.bf16.msra.mxu0 0
      %1556 = vmatprep.subr.bf16.mxu0 0
      %1557 = vmatpush1.bf16.msra.mxu0 0
      %1558 = vmatprep.subr.bf16.mxu0 0
      %1559 = vmatpush1.bf16.msra.mxu0 0
      %1560 = vmatprep.subr.bf16.mxu0 0
      %1561 = vmatpush1.bf16.msra.mxu0 0
      %1562 = vmatprep.subr.bf16.mxu0 0
      %1563 = vmatpush1.bf16.msra.mxu0 0
      %1564 = vmatprep.subr.bf16.mxu0 0
      %1565 = vmatpush1.bf16.msra.mxu0 0
      %1566 = vmatprep.mubr.bf16.mxu0 0
      %1567 = vmatmul.mubr.bf16.gmra.mrb[0].mxu0 %v1532
      %v1568 = vpop.f32.mrb[0].mxu0
      %v1569 = vadd.f32 %v1517, %v1568
      %v1570 = vpop.f32.mrb[0].mxu0
      %v1571 = vpop.f32.mrb[0].mxu0
      %v1572 = vadd.f32 %v1517, %v1571
      %v1573 = vpop.f32.mrb[0].mxu0
      %1574 = vdwg.mxu0
      %v1575 = vxor.u32 %v1569, 2147483648
      %v1576 = vxor.u32 %v1572, 2147483648
      %v1577 = vmul.f32 %v1575, 1.442695
      %v1578 = vpow.pop %v1577
      %v1579 = vmul.f32 %v1576, 1.442695
      %v1580 = vpow.pop %v1579
      %v1581 = vadd.f32 %v1578, 1.0
      %v1582 = vadd.f32 %v1580, 1.0
      %v1583 = vrcp.pop %v1581
      %v1584 = vmul.f32 1.0, %v1583
      %v1585 = vrcp.pop %v1582
      %v1586 = vmul.f32 1.0, %v1585
      %v1587 = vmul.f32 %v1569, %v1584
      %v1588 = vmul.f32 %v1572, %v1586
      %1591 = vrot.lane.b32.xlu0 %v1569, 64
      %v1592 = vpop.permute.xlu0 %1591
      %1593 = vrot.lane.b32.xlu0 %v1572, 64
      %v1594 = vpop.permute.xlu0 %1593
      %v1597 = vmul.f32 %v1587, %v1592
      %v1598 = vmul.f32 %v1588, %v1594
      %v1599 = vpack.c.bf16 %v1598, %v1597
      %v1600 = vld [vmem:[%s11] sm:$0xf]
      %v1601 = vld [vmem:[%s11 + $0x4] sm:$0xf]
      %v1602 = vld [vmem:[%s11 + $0x8] sm:$0xf]
      %v1603 = vld [vmem:[%s11 + $0xc] sm:$0xf]
      %v1604 = vld [vmem:[%s11 + $0x10] sm:$0xf]
      %v1605 = vld [vmem:[%s11 + $0x14] sm:$0xf]
      %v1606 = vld [vmem:[%s11 + $0x18] sm:$0xf]
      %v1607 = vld [vmem:[%s11 + $0x1c] sm:$0xf]
      %v1616 = vunpack.c.l.b16 %v1600
      %v1617 = vunpack.c.l.b16 %v1601
      %v1618 = vunpack.c.l.b16 %v1602
      %v1619 = vunpack.c.l.b16 %v1603
      %v1620 = vunpack.c.l.b16 %v1604
      %v1621 = vunpack.c.l.b16 %v1605
      %v1622 = vunpack.c.l.b16 %v1606
      %v1623 = vunpack.c.l.b16 %v1607
      %v1624 = vpack.c.b16 %v1617, %v1616
      %v1625 = vpack.c.b16 %v1619, %v1618
      %v1626 = vpack.c.b16 %v1621, %v1620
      %v1627 = vpack.c.b16 %v1623, %v1622
      %vm1632 = vcmask 523264
      %v1634 = vsel %vm1632, %v1599, 0
      %1636 = vmatprep.subr.bf16.mxu0 0
      %1637 = vmatpush1.bf16.msra.mxu0 %v1624
      %1638 = vmatprep.subr.bf16.mxu0 0
      %1639 = vmatpush1.bf16.msra.mxu0 %v1625
      %1640 = vmatprep.subr.bf16.mxu0 0
      %1641 = vmatpush1.bf16.msra.mxu0 %v1626
      %1642 = vmatprep.subr.bf16.mxu0 0
      %1643 = vmatpush1.bf16.msra.mxu0 %v1627
      %1644 = vmatprep.subr.bf16.mxu0 0
      %1645 = vmatpush1.bf16.msra.mxu0 0
      %1646 = vmatprep.subr.bf16.mxu0 0
      %1647 = vmatpush1.bf16.msra.mxu0 0
      %1648 = vmatprep.subr.bf16.mxu0 0
      %1649 = vmatpush1.bf16.msra.mxu0 0
      %1650 = vmatprep.subr.bf16.mxu0 0
      %1651 = vmatpush1.bf16.msra.mxu0 0
      %1652 = vmatprep.subr.bf16.mxu0 0
      %1653 = vmatpush1.bf16.msra.mxu0 0
      %1654 = vmatprep.subr.bf16.mxu0 0
      %1655 = vmatpush1.bf16.msra.mxu0 0
      %1656 = vmatprep.subr.bf16.mxu0 0
      %1657 = vmatpush1.bf16.msra.mxu0 0
      %1658 = vmatprep.subr.bf16.mxu0 0
      %1659 = vmatpush1.bf16.msra.mxu0 0
      %1660 = vmatprep.subr.bf16.mxu0 0
      %1661 = vmatpush1.bf16.msra.mxu0 0
      %1662 = vmatprep.subr.bf16.mxu0 0
      %1663 = vmatpush1.bf16.msra.mxu0 0
      %1664 = vmatprep.subr.bf16.mxu0 0
      %1665 = vmatpush1.bf16.msra.mxu0 0
      %1666 = vmatprep.subr.bf16.mxu0 0
      %1667 = vmatpush1.bf16.msra.mxu0 0
      %1668 = vmatprep.mubr.bf16.mxu0 0
      %1669 = vmatmul.mubr.bf16.gmra.mrb[0].mxu0 %v1634
      %v1670 = vpop.f32.mrb[0].mxu0
      %v1671 = vadd.f32 0.0, %v1670
      %v1672 = vpop.f32.mrb[0].mxu0
      %v1673 = vpop.f32.mrb[0].mxu0
      %v1674 = vadd.f32 0.0, %v1673
      %v1675 = vpop.f32.mrb[0].mxu0
      %1676 = vdwg.mxu0
      %v1677 = vadd.f32 %v1480, %v1671
      %v1678 = vadd.f32 %v1481, %v1674
      %v1679 = vld [vmem:[%s12] sm:$0x1]
      %v1681 = vlaneseq
      %v1682 = vshrl.u32 %v1681, 7
      %v1683 = vsub.s32 0, %v1682
      %v1684 = vrot.slane %v1679, %v1683
      %v1686 = vadd.f32 %v1677, %v1684
      %v1687 = vadd.f32 %v1678, %v1684
      %s1688 = scalar_lea.vmem %s3, 1
      %v1689 = vld [vmem:[%s1688] sm:$0x1]
      %v1690 = vmul.f32 %v1686, %v1686
      %v1691 = vmul.f32 %v1687, %v1687
      %v1692 = vsel %vm544, %v1690, 0.0
      %1693 = vadd.xlane.f32.xlu0 %v1692
      %v1694 = vpop.xlane.xlu0 %1693
      %v1695 = vsel %vm544, %v1691, 0.0
      %1696 = vadd.xlane.f32.xlu0 %v1695
      %v1697 = vpop.xlane.xlu0 %1696
      %v1698 = vmul.f32 %v1694, %v551
      %v1699 = vmul.f32 %v1697, %v551
      %v1700 = vadd.f32 %v1698, 1e-06
      %v1701 = vadd.f32 %v1699, 1e-06
      %v1702 = vrsqrt.pop %v1700
      %v1703 = vrsqrt.pop %v1701
      %v1704 = vmul.f32 %v1686, %v1702
      %v1705 = vmul.f32 %v1687, %v1703
      %v1707 = vlaneseq
      %v1708 = vshrl.u32 %v1707, 7
      %v1709 = vsub.s32 0, %v1708
      %v1710 = vrot.slane %v1689, %v1709
      %v1712 = vmul.f32 %v1704, %v1710
      %v1713 = vmul.f32 %v1705, %v1710
      %v1714 = vpack.c.bf16 %v1713, %v1712
      %s1715 = scalar_lea.vmem %s4, 16
      %v1716 = vld [vmem:[%s1715] sm:$0xf]
      %v1717 = vld [vmem:[%s1715 + $0x4] sm:$0xf]
      %v1718 = vld [vmem:[%s1715 + $0x8] sm:$0xf]
      %v1719 = vld [vmem:[%s1715 + $0xc] sm:$0xf]
      %s1720 = scalar_lea.vmem %s5, 1
      %v1721 = vld [vmem:[%s1720] sm:$0x1]
      %v1723 = vlaneseq
      %v1724 = vshrl.u32 %v1723, 7
      %v1725 = vsub.s32 0, %v1724
      %v1726 = vrot.slane %v1721, %v1725
      %v1732 = vunpack.c.l.b16 %v1716
      %v1733 = vunpack.c.l.b16 %v1717
      %v1734 = vunpack.c.l.b16 %v1718
      %v1735 = vunpack.c.l.b16 %v1719
      %v1736 = vpack.c.b16 %v1733, %v1732
      %v1737 = vpack.c.b16 %v1735, %v1734
      %v1741 = vsel %vm544, %v1714, 0
      %1743 = vmatprep.subr.bf16.mxu0 0
      %1744 = vmatpush1.bf16.msra.mxu0 %v1736
      %1745 = vmatprep.subr.bf16.mxu0 0
      %1746 = vmatpush1.bf16.msra.mxu0 %v1737
      %1747 = vmatprep.subr.bf16.mxu0 0
      %1748 = vmatpush1.bf16.msra.mxu0 0
      %1749 = vmatprep.subr.bf16.mxu0 0
      %1750 = vmatpush1.bf16.msra.mxu0 0
      %1751 = vmatprep.subr.bf16.mxu0 0
      %1752 = vmatpush1.bf16.msra.mxu0 0
      %1753 = vmatprep.subr.bf16.mxu0 0
      %1754 = vmatpush1.bf16.msra.mxu0 0
      %1755 = vmatprep.subr.bf16.mxu0 0
      %1756 = vmatpush1.bf16.msra.mxu0 0
      %1757 = vmatprep.subr.bf16.mxu0 0
      %1758 = vmatpush1.bf16.msra.mxu0 0
      %1759 = vmatprep.subr.bf16.mxu0 0
      %1760 = vmatpush1.bf16.msra.mxu0 0
      %1761 = vmatprep.subr.bf16.mxu0 0
      %1762 = vmatpush1.bf16.msra.mxu0 0
      %1763 = vmatprep.subr.bf16.mxu0 0
      %1764 = vmatpush1.bf16.msra.mxu0 0
      %1765 = vmatprep.subr.bf16.mxu0 0
      %1766 = vmatpush1.bf16.msra.mxu0 0
      %1767 = vmatprep.subr.bf16.mxu0 0
      %1768 = vmatpush1.bf16.msra.mxu0 0
      %1769 = vmatprep.subr.bf16.mxu0 0
      %1770 = vmatpush1.bf16.msra.mxu0 0
      %1771 = vmatprep.subr.bf16.mxu0 0
      %1772 = vmatpush1.bf16.msra.mxu0 0
      %1773 = vmatprep.subr.bf16.mxu0 0
      %1774 = vmatpush1.bf16.msra.mxu0 0
      %1775 = vmatprep.mubr.bf16.mxu0 0
      %1776 = vmatmul.mubr.bf16.gmra.mrb[0].mxu0 %v1741
      %v1777 = vpop.f32.mrb[0].mxu0
      %v1778 = vadd.f32 %v1726, %v1777
      %v1779 = vpop.f32.mrb[0].mxu0
      %v1780 = vpop.f32.mrb[0].mxu0
      %v1781 = vadd.f32 %v1726, %v1780
      %v1782 = vpop.f32.mrb[0].mxu0
      %1783 = vdwg.mxu0
      %1786 = vrot.lane.b32.xlu0 %v1778, 120
      %v1787 = vpop.permute.xlu0 %1786
      %1788 = vrot.lane.b32.xlu0 %v1781, 120
      %v1789 = vpop.permute.xlu0 %1788
      %1792 = vrot.lane.b32.xlu0 %v1778, 112
      %v1793 = vpop.permute.xlu0 %1792
      %1794 = vrot.lane.b32.xlu0 %v1781, 112
      %v1795 = vpop.permute.xlu0 %1794
      %1798 = vrot.lane.b32.xlu0 %v1778, 104
      %v1799 = vpop.permute.xlu0 %1798
      %1800 = vrot.lane.b32.xlu0 %v1781, 104
      %v1801 = vpop.permute.xlu0 %1800
      %v1804 = vsub.f32 0.0, %v1778
      %v1805 = vsub.f32 0.0, %v1781
      %v1806 = vsub.f32 0.0, %v1787
      %v1807 = vsub.f32 0.0, %v1789
      %v1808 = vsub.f32 0.0, %v1793
      %v1809 = vsub.f32 0.0, %v1795
      %v1810 = vsub.f32 0.0, %v1799
      %v1811 = vsub.f32 0.0, %v1801
      %1820 = vrot.lane.b32.xlu0 %v1804, 124
      %v1821 = vpop.permute.xlu0 %1820
      %1822 = vrot.lane.b32.xlu0 %v1805, 124
      %v1823 = vpop.permute.xlu0 %1822
      %1824 = vrot.lane.b32.xlu0 %v1806, 124
      %v1825 = vpop.permute.xlu0 %1824
      %1826 = vrot.lane.b32.xlu0 %v1807, 124
      %v1827 = vpop.permute.xlu0 %1826
      %1828 = vrot.lane.b32.xlu0 %v1808, 124
      %v1829 = vpop.permute.xlu0 %1828
      %1830 = vrot.lane.b32.xlu0 %v1809, 124
      %v1831 = vpop.permute.xlu0 %1830
      %1832 = vrot.lane.b32.xlu0 %v1810, 124
      %v1833 = vpop.permute.xlu0 %1832
      %1834 = vrot.lane.b32.xlu0 %v1811, 124
      %v1835 = vpop.permute.xlu0 %1834
      %1844 = vrot.lane.b32.xlu0 %v1778, 4
      %v1845 = vpop.permute.xlu0 %1844
      %1846 = vrot.lane.b32.xlu0 %v1781, 4
      %v1847 = vpop.permute.xlu0 %1846
      %1848 = vrot.lane.b32.xlu0 %v1787, 4
      %v1849 = vpop.permute.xlu0 %1848
      %1850 = vrot.lane.b32.xlu0 %v1789, 4
      %v1851 = vpop.permute.xlu0 %1850
      %1852 = vrot.lane.b32.xlu0 %v1793, 4
      %v1853 = vpop.permute.xlu0 %1852
      %1854 = vrot.lane.b32.xlu0 %v1795, 4
      %v1855 = vpop.permute.xlu0 %1854
      %1856 = vrot.lane.b32.xlu0 %v1799, 4
      %v1857 = vpop.permute.xlu0 %1856
      %1858 = vrot.lane.b32.xlu0 %v1801, 4
      %v1859 = vpop.permute.xlu0 %1858
      %v1868 = vsel %vm720, %v1821, %v1845
      %v1869 = vsel %vm720, %v1823, %v1847
      %v1870 = vsel %vm720, %v1825, %v1849
      %v1871 = vsel %vm720, %v1827, %v1851
      %v1872 = vsel %vm720, %v1829, %v1853
      %v1873 = vsel %vm720, %v1831, %v1855
      %v1874 = vsel %vm720, %v1833, %v1857
      %v1875 = vsel %vm720, %v1835, %v1859
      %v1876 = vmul.f32 %v1778, %v525
      %v1877 = vmul.f32 %v1781, %v526
      %v1878 = vmul.f32 %v1787, %v525
      %v1879 = vmul.f32 %v1789, %v526
      %v1880 = vmul.f32 %v1793, %v525
      %v1881 = vmul.f32 %v1795, %v526
      %v1882 = vmul.f32 %v1799, %v525
      %v1883 = vmul.f32 %v1801, %v526
      %v1884 = vmul.f32 %v1868, %v527
      %v1885 = vmul.f32 %v1869, %v528
      %v1886 = vmul.f32 %v1870, %v527
      %v1887 = vmul.f32 %v1871, %v528
      %v1888 = vmul.f32 %v1872, %v527
      %v1889 = vmul.f32 %v1873, %v528
      %v1890 = vmul.f32 %v1874, %v527
      %v1891 = vmul.f32 %v1875, %v528
      %v1892 = vadd.f32 %v1876, %v1884
      %v1893 = vadd.f32 %v1877, %v1885
      %v1894 = vadd.f32 %v1878, %v1886
      %v1895 = vadd.f32 %v1879, %v1887
      %v1896 = vadd.f32 %v1880, %v1888
      %v1897 = vadd.f32 %v1881, %v1889
      %v1898 = vadd.f32 %v1882, %v1890
      %v1899 = vadd.f32 %v1883, %v1891
      %v1900 = vmul.f32 %v1892, 0.35355338
      %v1901 = vmul.f32 %v1893, 0.35355338
      %v1902 = vmul.f32 %v1894, 0.35355338
      %v1903 = vmul.f32 %v1895, 0.35355338
      %v1904 = vmul.f32 %v1896, 0.35355338
      %v1905 = vmul.f32 %v1897, 0.35355338
      %v1906 = vmul.f32 %v1898, 0.35355338
      %v1907 = vmul.f32 %v1899, 0.35355338
      %1908 = vrot.lane.b32.xlu0 %v1804, 92
      %v1909 = vpop.permute.xlu0 %1908
      %1910 = vrot.lane.b32.xlu0 %v1805, 92
      %v1911 = vpop.permute.xlu0 %1910
      %1912 = vrot.lane.b32.xlu0 %v1806, 92
      %v1913 = vpop.permute.xlu0 %1912
      %1914 = vrot.lane.b32.xlu0 %v1807, 92
      %v1915 = vpop.permute.xlu0 %1914
      %1916 = vrot.lane.b32.xlu0 %v1808, 92
      %v1917 = vpop.permute.xlu0 %1916
      %1918 = vrot.lane.b32.xlu0 %v1809, 92
      %v1919 = vpop.permute.xlu0 %1918
      %1920 = vrot.lane.b32.xlu0 %v1810, 92
      %v1921 = vpop.permute.xlu0 %1920
      %1922 = vrot.lane.b32.xlu0 %v1811, 92
      %v1923 = vpop.permute.xlu0 %1922
      %1932 = vrot.lane.b32.xlu0 %v1778, 100
      %v1933 = vpop.permute.xlu0 %1932
      %1934 = vrot.lane.b32.xlu0 %v1781, 100
      %v1935 = vpop.permute.xlu0 %1934
      %1936 = vrot.lane.b32.xlu0 %v1787, 100
      %v1937 = vpop.permute.xlu0 %1936
      %1938 = vrot.lane.b32.xlu0 %v1789, 100
      %v1939 = vpop.permute.xlu0 %1938
      %1940 = vrot.lane.b32.xlu0 %v1793, 100
      %v1941 = vpop.permute.xlu0 %1940
      %1942 = vrot.lane.b32.xlu0 %v1795, 100
      %v1943 = vpop.permute.xlu0 %1942
      %1944 = vrot.lane.b32.xlu0 %v1799, 100
      %v1945 = vpop.permute.xlu0 %1944
      %1946 = vrot.lane.b32.xlu0 %v1801, 100
      %v1947 = vpop.permute.xlu0 %1946
      %v1956 = vsel %vm720, %v1909, %v1933
      %v1957 = vsel %vm720, %v1911, %v1935
      %v1958 = vsel %vm720, %v1913, %v1937
      %v1959 = vsel %vm720, %v1915, %v1939
      %v1960 = vsel %vm720, %v1917, %v1941
      %v1961 = vsel %vm720, %v1919, %v1943
      %v1962 = vsel %vm720, %v1921, %v1945
      %v1963 = vsel %vm720, %v1923, %v1947
      %v1964 = vmul.f32 %v1778, %v820
      %v1965 = vmul.f32 %v1781, %v822
      %v1966 = vmul.f32 %v1787, %v820
      %v1967 = vmul.f32 %v1789, %v822
      %v1968 = vmul.f32 %v1793, %v820
      %v1969 = vmul.f32 %v1795, %v822
      %v1970 = vmul.f32 %v1799, %v820
      %v1971 = vmul.f32 %v1801, %v822
      %v1972 = vmul.f32 %v1956, %v527
      %v1973 = vmul.f32 %v1957, %v528
      %v1974 = vmul.f32 %v1958, %v527
      %v1975 = vmul.f32 %v1959, %v528
      %v1976 = vmul.f32 %v1960, %v527
      %v1977 = vmul.f32 %v1961, %v528
      %v1978 = vmul.f32 %v1962, %v527
      %v1979 = vmul.f32 %v1963, %v528
      %1988 = vrot.lane.b32.xlu0 %v1972, 32
      %v1989 = vpop.permute.xlu0 %1988
      %1990 = vrot.lane.b32.xlu0 %v1973, 32
      %v1991 = vpop.permute.xlu0 %1990
      %1992 = vrot.lane.b32.xlu0 %v1974, 32
      %v1993 = vpop.permute.xlu0 %1992
      %1994 = vrot.lane.b32.xlu0 %v1975, 32
      %v1995 = vpop.permute.xlu0 %1994
      %1996 = vrot.lane.b32.xlu0 %v1976, 32
      %v1997 = vpop.permute.xlu0 %1996
      %1998 = vrot.lane.b32.xlu0 %v1977, 32
      %v1999 = vpop.permute.xlu0 %1998
      %2000 = vrot.lane.b32.xlu0 %v1978, 32
      %v2001 = vpop.permute.xlu0 %2000
      %2002 = vrot.lane.b32.xlu0 %v1979, 32
      %v2003 = vpop.permute.xlu0 %2002
      %v2012 = vadd.f32 %v1964, %v1989
      %v2013 = vadd.f32 %v1965, %v1991
      %v2014 = vadd.f32 %v1966, %v1993
      %v2015 = vadd.f32 %v1967, %v1995
      %v2016 = vadd.f32 %v1968, %v1997
      %v2017 = vadd.f32 %v1969, %v1999
      %v2018 = vadd.f32 %v1970, %v2001
      %v2019 = vadd.f32 %v1971, %v2003
      %v2020 = vpack.c.bf16 %v1901, %v1900
      %v2021 = vpack.c.bf16 %v1903, %v1902
      %v2022 = vpack.c.bf16 %v1905, %v1904
      %v2023 = vpack.c.bf16 %v1907, %v1906
      %v2024 = vpack.c.bf16 %v2013, %v2012
      %v2025 = vpack.c.bf16 %v2015, %v2014
      %v2026 = vpack.c.bf16 %v2017, %v2016
      %v2027 = vpack.c.bf16 %v2019, %v2018
      %2029 = vrot.lane.b32.xlu0 %v2024, 96
      %v2030 = vpop.permute.xlu0 %2029
      %v2032 = vsel %vm892, %v2020, 0
      %v2035 = vsel %vm892, %v2030, 0
      %2037 = vmatprep.subr.bf16.mxu0 0
      %2038 = vmatpush1.bf16.xpose.msra.mxu0 %v2035
      %2039 = vmatprep.subr.bf16.mxu0 0
      %2040 = vmatpush1.bf16.xpose.msra.mxu0 0
      %2041 = vmatprep.subr.bf16.mxu0 0
      %2042 = vmatpush1.bf16.xpose.msra.mxu0 0
      %2043 = vmatprep.subr.bf16.mxu0 0
      %2044 = vmatpush1.bf16.xpose.msra.mxu0 0
      %2045 = vmatprep.subr.bf16.mxu0 0
      %2046 = vmatpush1.bf16.xpose.msra.mxu0 0
      %2047 = vmatprep.subr.bf16.mxu0 0
      %2048 = vmatpush1.bf16.xpose.msra.mxu0 0
      %2049 = vmatprep.subr.bf16.mxu0 0
      %2050 = vmatpush1.bf16.xpose.msra.mxu0 0
      %2051 = vmatprep.subr.bf16.mxu0 0
      %2052 = vmatpush1.bf16.xpose.msra.mxu0 0
      %2053 = vmatprep.subr.bf16.mxu0 0
      %2054 = vmatpush1.bf16.xpose.msra.mxu0 0
      %2055 = vmatprep.subr.bf16.mxu0 0
      %2056 = vmatpush1.bf16.xpose.msra.mxu0 0
      %2057 = vmatprep.subr.bf16.mxu0 0
      %2058 = vmatpush1.bf16.xpose.msra.mxu0 0
      %2059 = vmatprep.subr.bf16.mxu0 0
      %2060 = vmatpush1.bf16.xpose.msra.mxu0 0
      %2061 = vmatprep.subr.bf16.mxu0 0
      %2062 = vmatpush1.bf16.xpose.msra.mxu0 0
      %2063 = vmatprep.subr.bf16.mxu0 0
      %2064 = vmatpush1.bf16.xpose.msra.mxu0 0
      %2065 = vmatprep.subr.bf16.mxu0 0
      %2066 = vmatpush1.bf16.xpose.msra.mxu0 0
      %2067 = vmatprep.subr.bf16.mxu0 0
      %2068 = vmatpush1.bf16.xpose.msra.mxu0 0
      %2069 = vmatprep.mubr.bf16.mxu0 0
      %2070 = vmatmul.mubr.bf16.gmra.mrb[0].mxu0 %v2032
      %v2071 = vpop.f32.mrb[0].mxu0
      %v2072 = vadd.f32 %v539, %v2071
      %v2073 = vpop.f32.mrb[0].mxu0
      %v2074 = vpop.f32.mrb[0].mxu0
      %v2075 = vadd.f32 %v540, %v2074
      %v2076 = vpop.f32.mrb[0].mxu0
      %2077 = vdwg.mxu0
      %2079 = vrot.lane.b32.xlu0 %v2025, 96
      %v2080 = vpop.permute.xlu0 %2079
      %v2082 = vsel %vm892, %v2021, 0
      %v2085 = vsel %vm892, %v2080, 0
      %2087 = vmatprep.subr.bf16.mxu0 0
      %2088 = vmatpush1.bf16.xpose.msra.mxu0 %v2085
      %2089 = vmatprep.subr.bf16.mxu0 0
      %2090 = vmatpush1.bf16.xpose.msra.mxu0 0
      %2091 = vmatprep.subr.bf16.mxu0 0
      %2092 = vmatpush1.bf16.xpose.msra.mxu0 0
      %2093 = vmatprep.subr.bf16.mxu0 0
      %2094 = vmatpush1.bf16.xpose.msra.mxu0 0
      %2095 = vmatprep.subr.bf16.mxu0 0
      %2096 = vmatpush1.bf16.xpose.msra.mxu0 0
      %2097 = vmatprep.subr.bf16.mxu0 0
      %2098 = vmatpush1.bf16.xpose.msra.mxu0 0
      %2099 = vmatprep.subr.bf16.mxu0 0
      %2100 = vmatpush1.bf16.xpose.msra.mxu0 0
      %2101 = vmatprep.subr.bf16.mxu0 0
      %2102 = vmatpush1.bf16.xpose.msra.mxu0 0
      %2103 = vmatprep.subr.bf16.mxu0 0
      %2104 = vmatpush1.bf16.xpose.msra.mxu0 0
      %2105 = vmatprep.subr.bf16.mxu0 0
      %2106 = vmatpush1.bf16.xpose.msra.mxu0 0
      %2107 = vmatprep.subr.bf16.mxu0 0
      %2108 = vmatpush1.bf16.xpose.msra.mxu0 0
      %2109 = vmatprep.subr.bf16.mxu0 0
      %2110 = vmatpush1.bf16.xpose.msra.mxu0 0
      %2111 = vmatprep.subr.bf16.mxu0 0
      %2112 = vmatpush1.bf16.xpose.msra.mxu0 0
      %2113 = vmatprep.subr.bf16.mxu0 0
      %2114 = vmatpush1.bf16.xpose.msra.mxu0 0
      %2115 = vmatprep.subr.bf16.mxu0 0
      %2116 = vmatpush1.bf16.xpose.msra.mxu0 0
      %2117 = vmatprep.subr.bf16.mxu0 0
      %2118 = vmatpush1.bf16.xpose.msra.mxu0 0
      %2119 = vmatprep.mubr.bf16.mxu0 0
      %2120 = vmatmul.mubr.bf16.gmra.mrb[0].mxu0 %v2082
      %v2121 = vpop.f32.mrb[0].mxu0
      %v2122 = vadd.f32 %v539, %v2121
      %v2123 = vpop.f32.mrb[0].mxu0
      %v2124 = vpop.f32.mrb[0].mxu0
      %v2125 = vadd.f32 %v540, %v2124
      %v2126 = vpop.f32.mrb[0].mxu0
      %2127 = vdwg.mxu0
      %2129 = vrot.lane.b32.xlu0 %v2026, 96
      %v2130 = vpop.permute.xlu0 %2129
      %v2132 = vsel %vm892, %v2022, 0
      %v2135 = vsel %vm892, %v2130, 0
      %2137 = vmatprep.subr.bf16.mxu0 0
      %2138 = vmatpush1.bf16.xpose.msra.mxu0 %v2135
      %2139 = vmatprep.subr.bf16.mxu0 0
      %2140 = vmatpush1.bf16.xpose.msra.mxu0 0
      %2141 = vmatprep.subr.bf16.mxu0 0
      %2142 = vmatpush1.bf16.xpose.msra.mxu0 0
      %2143 = vmatprep.subr.bf16.mxu0 0
      %2144 = vmatpush1.bf16.xpose.msra.mxu0 0
      %2145 = vmatprep.subr.bf16.mxu0 0
      %2146 = vmatpush1.bf16.xpose.msra.mxu0 0
      %2147 = vmatprep.subr.bf16.mxu0 0
      %2148 = vmatpush1.bf16.xpose.msra.mxu0 0
      %2149 = vmatprep.subr.bf16.mxu0 0
      %2150 = vmatpush1.bf16.xpose.msra.mxu0 0
      %2151 = vmatprep.subr.bf16.mxu0 0
      %2152 = vmatpush1.bf16.xpose.msra.mxu0 0
      %2153 = vmatprep.subr.bf16.mxu0 0
      %2154 = vmatpush1.bf16.xpose.msra.mxu0 0
      %2155 = vmatprep.subr.bf16.mxu0 0
      %2156 = vmatpush1.bf16.xpose.msra.mxu0 0
      %2157 = vmatprep.subr.bf16.mxu0 0
      %2158 = vmatpush1.bf16.xpose.msra.mxu0 0
      %2159 = vmatprep.subr.bf16.mxu0 0
      %2160 = vmatpush1.bf16.xpose.msra.mxu0 0
      %2161 = vmatprep.subr.bf16.mxu0 0
      %2162 = vmatpush1.bf16.xpose.msra.mxu0 0
      %2163 = vmatprep.subr.bf16.mxu0 0
      %2164 = vmatpush1.bf16.xpose.msra.mxu0 0
      %2165 = vmatprep.subr.bf16.mxu0 0
      %2166 = vmatpush1.bf16.xpose.msra.mxu0 0
      %2167 = vmatprep.subr.bf16.mxu0 0
      %2168 = vmatpush1.bf16.xpose.msra.mxu0 0
      %2169 = vmatprep.mubr.bf16.mxu0 0
      %2170 = vmatmul.mubr.bf16.gmra.mrb[0].mxu0 %v2132
      %v2171 = vpop.f32.mrb[0].mxu0
      %v2172 = vadd.f32 %v539, %v2171
      %v2173 = vpop.f32.mrb[0].mxu0
      %v2174 = vpop.f32.mrb[0].mxu0
      %v2175 = vadd.f32 %v540, %v2174
      %v2176 = vpop.f32.mrb[0].mxu0
      %2177 = vdwg.mxu0
      %2179 = vrot.lane.b32.xlu0 %v2027, 96
      %v2180 = vpop.permute.xlu0 %2179
      %v2182 = vsel %vm892, %v2023, 0
      %v2185 = vsel %vm892, %v2180, 0
      %2187 = vmatprep.subr.bf16.mxu0 0
      %2188 = vmatpush1.bf16.xpose.msra.mxu0 %v2185
      %2189 = vmatprep.subr.bf16.mxu0 0
      %2190 = vmatpush1.bf16.xpose.msra.mxu0 0
      %2191 = vmatprep.subr.bf16.mxu0 0
      %2192 = vmatpush1.bf16.xpose.msra.mxu0 0
      %2193 = vmatprep.subr.bf16.mxu0 0
      %2194 = vmatpush1.bf16.xpose.msra.mxu0 0
      %2195 = vmatprep.subr.bf16.mxu0 0
      %2196 = vmatpush1.bf16.xpose.msra.mxu0 0
      %2197 = vmatprep.subr.bf16.mxu0 0
      %2198 = vmatpush1.bf16.xpose.msra.mxu0 0
      %2199 = vmatprep.subr.bf16.mxu0 0
      %2200 = vmatpush1.bf16.xpose.msra.mxu0 0
      %2201 = vmatprep.subr.bf16.mxu0 0
      %2202 = vmatpush1.bf16.xpose.msra.mxu0 0
      %2203 = vmatprep.subr.bf16.mxu0 0
      %2204 = vmatpush1.bf16.xpose.msra.mxu0 0
      %2205 = vmatprep.subr.bf16.mxu0 0
      %2206 = vmatpush1.bf16.xpose.msra.mxu0 0
      %2207 = vmatprep.subr.bf16.mxu0 0
      %2208 = vmatpush1.bf16.xpose.msra.mxu0 0
      %2209 = vmatprep.subr.bf16.mxu0 0
      %2210 = vmatpush1.bf16.xpose.msra.mxu0 0
      %2211 = vmatprep.subr.bf16.mxu0 0
      %2212 = vmatpush1.bf16.xpose.msra.mxu0 0
      %2213 = vmatprep.subr.bf16.mxu0 0
      %2214 = vmatpush1.bf16.xpose.msra.mxu0 0
      %2215 = vmatprep.subr.bf16.mxu0 0
      %2216 = vmatpush1.bf16.xpose.msra.mxu0 0
      %2217 = vmatprep.subr.bf16.mxu0 0
      %2218 = vmatpush1.bf16.xpose.msra.mxu0 0
      %2219 = vmatprep.mubr.bf16.mxu0 0
      %2220 = vmatmul.mubr.bf16.gmra.mrb[0].mxu0 %v2182
      %v2221 = vpop.f32.mrb[0].mxu0
      %v2222 = vadd.f32 %v539, %v2221
      %v2223 = vpop.f32.mrb[0].mxu0
      %v2224 = vpop.f32.mrb[0].mxu0
      %v2225 = vadd.f32 %v540, %v2224
      %v2226 = vpop.f32.mrb[0].mxu0
      %2227 = vdwg.mxu0
      %v2228 = vsel %vm1090, %v2072, -inf
      %2229 = vmax.xlane.f32.xlu0 %v2228
      %v2230 = vpop.xlane.xlu0 %2229
      %v2231 = vsel %vm1090, %v2075, -inf
      %2232 = vmax.xlane.f32.xlu0 %v2231
      %v2233 = vpop.xlane.xlu0 %2232
      %v2234 = vsel %vm1090, %v2122, -inf
      %2235 = vmax.xlane.f32.xlu0 %v2234
      %v2236 = vpop.xlane.xlu0 %2235
      %v2237 = vsel %vm1090, %v2125, -inf
      %2238 = vmax.xlane.f32.xlu0 %v2237
      %v2239 = vpop.xlane.xlu0 %2238
      %v2240 = vsel %vm1090, %v2172, -inf
      %2241 = vmax.xlane.f32.xlu0 %v2240
      %v2242 = vpop.xlane.xlu0 %2241
      %v2243 = vsel %vm1090, %v2175, -inf
      %2244 = vmax.xlane.f32.xlu0 %v2243
      %v2245 = vpop.xlane.xlu0 %2244
      %v2246 = vsel %vm1090, %v2222, -inf
      %2247 = vmax.xlane.f32.xlu0 %v2246
      %v2248 = vpop.xlane.xlu0 %2247
      %v2249 = vsel %vm1090, %v2225, -inf
      %2250 = vmax.xlane.f32.xlu0 %v2249
      %v2251 = vpop.xlane.xlu0 %2250
      %v2252 = vsub.f32 %v2072, %v2230
      %v2253 = vsub.f32 %v2075, %v2233
      %v2254 = vsub.f32 %v2122, %v2236
      %v2255 = vsub.f32 %v2125, %v2239
      %v2256 = vsub.f32 %v2172, %v2242
      %v2257 = vsub.f32 %v2175, %v2245
      %v2258 = vsub.f32 %v2222, %v2248
      %v2259 = vsub.f32 %v2225, %v2251
      %v2260 = vmul.f32 %v2252, 1.442695
      %v2261 = vpow.pop %v2260
      %v2262 = vmul.f32 %v2253, 1.442695
      %v2263 = vpow.pop %v2262
      %v2264 = vmul.f32 %v2254, 1.442695
      %v2265 = vpow.pop %v2264
      %v2266 = vmul.f32 %v2255, 1.442695
      %v2267 = vpow.pop %v2266
      %v2268 = vmul.f32 %v2256, 1.442695
      %v2269 = vpow.pop %v2268
      %v2270 = vmul.f32 %v2257, 1.442695
      %v2271 = vpow.pop %v2270
      %v2272 = vmul.f32 %v2258, 1.442695
      %v2273 = vpow.pop %v2272
      %v2274 = vmul.f32 %v2259, 1.442695
      %v2275 = vpow.pop %v2274
      %v2276 = vsel %vm1090, %v2261, 0.0
      %2277 = vadd.xlane.f32.xlu0 %v2276
      %v2278 = vpop.xlane.xlu0 %2277
      %v2279 = vsel %vm1090, %v2263, 0.0
      %2280 = vadd.xlane.f32.xlu0 %v2279
      %v2281 = vpop.xlane.xlu0 %2280
      %v2282 = vsel %vm1090, %v2265, 0.0
      %2283 = vadd.xlane.f32.xlu0 %v2282
      %v2284 = vpop.xlane.xlu0 %2283
      %v2285 = vsel %vm1090, %v2267, 0.0
      %2286 = vadd.xlane.f32.xlu0 %v2285
      %v2287 = vpop.xlane.xlu0 %2286
      %v2288 = vsel %vm1090, %v2269, 0.0
      %2289 = vadd.xlane.f32.xlu0 %v2288
      %v2290 = vpop.xlane.xlu0 %2289
      %v2291 = vsel %vm1090, %v2271, 0.0
      %2292 = vadd.xlane.f32.xlu0 %v2291
      %v2293 = vpop.xlane.xlu0 %2292
      %v2294 = vsel %vm1090, %v2273, 0.0
      %2295 = vadd.xlane.f32.xlu0 %v2294
      %v2296 = vpop.xlane.xlu0 %2295
      %v2297 = vsel %vm1090, %v2275, 0.0
      %2298 = vadd.xlane.f32.xlu0 %v2297
      %v2299 = vpop.xlane.xlu0 %2298
      %v2300 = vrcp.pop %v2278
      %v2301 = vrcp.pop %v2281
      %v2302 = vrcp.pop %v2284
      %v2303 = vrcp.pop %v2287
      %v2304 = vrcp.pop %v2290
      %v2305 = vrcp.pop %v2293
      %v2306 = vrcp.pop %v2296
      %v2307 = vrcp.pop %v2299
      %v2308 = vpack.c.bf16 %v2263, %v2261
      %v2309 = vpack.c.bf16 %v2267, %v2265
      %v2310 = vpack.c.bf16 %v2271, %v2269
      %v2311 = vpack.c.bf16 %v2275, %v2273
      %v2312 = vpack.c.bf16 %v1781, %v1778
      %v2313 = vpack.c.bf16 %v1789, %v1787
      %v2314 = vpack.c.bf16 %v1795, %v1793
      %v2315 = vpack.c.bf16 %v1801, %v1799
      %2317 = vrot.lane.b32.xlu0 %v2312, 64
      %v2318 = vpop.permute.xlu0 %2317
      %v2321 = vsel %vm1090, %v2308, 0
      %2323 = vmatprep.subr.bf16.mxu0 0
      %2324 = vmatpush1.bf16.msra.mxu0 %v2318
      %2325 = vmatprep.subr.bf16.mxu0 0
      %2326 = vmatpush1.bf16.msra.mxu0 0
      %2327 = vmatprep.subr.bf16.mxu0 0
      %2328 = vmatpush1.bf16.msra.mxu0 0
      %2329 = vmatprep.subr.bf16.mxu0 0
      %2330 = vmatpush1.bf16.msra.mxu0 0
      %2331 = vmatprep.subr.bf16.mxu0 0
      %2332 = vmatpush1.bf16.msra.mxu0 0
      %2333 = vmatprep.subr.bf16.mxu0 0
      %2334 = vmatpush1.bf16.msra.mxu0 0
      %2335 = vmatprep.subr.bf16.mxu0 0
      %2336 = vmatpush1.bf16.msra.mxu0 0
      %2337 = vmatprep.subr.bf16.mxu0 0
      %2338 = vmatpush1.bf16.msra.mxu0 0
      %2339 = vmatprep.subr.bf16.mxu0 0
      %2340 = vmatpush1.bf16.msra.mxu0 0
      %2341 = vmatprep.subr.bf16.mxu0 0
      %2342 = vmatpush1.bf16.msra.mxu0 0
      %2343 = vmatprep.subr.bf16.mxu0 0
      %2344 = vmatpush1.bf16.msra.mxu0 0
      %2345 = vmatprep.subr.bf16.mxu0 0
      %2346 = vmatpush1.bf16.msra.mxu0 0
      %2347 = vmatprep.subr.bf16.mxu0 0
      %2348 = vmatpush1.bf16.msra.mxu0 0
      %2349 = vmatprep.subr.bf16.mxu0 0
      %2350 = vmatpush1.bf16.msra.mxu0 0
      %2351 = vmatprep.subr.bf16.mxu0 0
      %2352 = vmatpush1.bf16.msra.mxu0 0
      %2353 = vmatprep.subr.bf16.mxu0 0
      %2354 = vmatpush1.bf16.msra.mxu0 0
      %2355 = vmatprep.mubr.bf16.mxu0 0
      %2356 = vmatmul.mubr.bf16.gmra.mrb[0].mxu0 %v2321
      %v2357 = vpop.f32.mrb[0].mxu0
      %v2358 = vadd.f32 0.0, %v2357
      %v2359 = vpop.f32.mrb[0].mxu0
      %v2360 = vpop.f32.mrb[0].mxu0
      %v2361 = vadd.f32 0.0, %v2360
      %v2362 = vpop.f32.mrb[0].mxu0
      %2363 = vdwg.mxu0
      %2365 = vrot.lane.b32.xlu0 %v2313, 64
      %v2366 = vpop.permute.xlu0 %2365
      %v2369 = vsel %vm1090, %v2309, 0
      %2371 = vmatprep.subr.bf16.mxu0 0
      %2372 = vmatpush1.bf16.msra.mxu0 %v2366
      %2373 = vmatprep.subr.bf16.mxu0 0
      %2374 = vmatpush1.bf16.msra.mxu0 0
      %2375 = vmatprep.subr.bf16.mxu0 0
      %2376 = vmatpush1.bf16.msra.mxu0 0
      %2377 = vmatprep.subr.bf16.mxu0 0
      %2378 = vmatpush1.bf16.msra.mxu0 0
      %2379 = vmatprep.subr.bf16.mxu0 0
      %2380 = vmatpush1.bf16.msra.mxu0 0
      %2381 = vmatprep.subr.bf16.mxu0 0
      %2382 = vmatpush1.bf16.msra.mxu0 0
      %2383 = vmatprep.subr.bf16.mxu0 0
      %2384 = vmatpush1.bf16.msra.mxu0 0
      %2385 = vmatprep.subr.bf16.mxu0 0
      %2386 = vmatpush1.bf16.msra.mxu0 0
      %2387 = vmatprep.subr.bf16.mxu0 0
      %2388 = vmatpush1.bf16.msra.mxu0 0
      %2389 = vmatprep.subr.bf16.mxu0 0
      %2390 = vmatpush1.bf16.msra.mxu0 0
      %2391 = vmatprep.subr.bf16.mxu0 0
      %2392 = vmatpush1.bf16.msra.mxu0 0
      %2393 = vmatprep.subr.bf16.mxu0 0
      %2394 = vmatpush1.bf16.msra.mxu0 0
      %2395 = vmatprep.subr.bf16.mxu0 0
      %2396 = vmatpush1.bf16.msra.mxu0 0
      %2397 = vmatprep.subr.bf16.mxu0 0
      %2398 = vmatpush1.bf16.msra.mxu0 0
      %2399 = vmatprep.subr.bf16.mxu0 0
      %2400 = vmatpush1.bf16.msra.mxu0 0
      %2401 = vmatprep.subr.bf16.mxu0 0
      %2402 = vmatpush1.bf16.msra.mxu0 0
      %2403 = vmatprep.mubr.bf16.mxu0 0
      %2404 = vmatmul.mubr.bf16.gmra.mrb[0].mxu0 %v2369
      %v2405 = vpop.f32.mrb[0].mxu0
      %v2406 = vadd.f32 0.0, %v2405
      %v2407 = vpop.f32.mrb[0].mxu0
      %v2408 = vpop.f32.mrb[0].mxu0
      %v2409 = vadd.f32 0.0, %v2408
      %v2410 = vpop.f32.mrb[0].mxu0
      %2411 = vdwg.mxu0
      %2413 = vrot.lane.b32.xlu0 %v2314, 64
      %v2414 = vpop.permute.xlu0 %2413
      %v2417 = vsel %vm1090, %v2310, 0
      %2419 = vmatprep.subr.bf16.mxu0 0
      %2420 = vmatpush1.bf16.msra.mxu0 %v2414
      %2421 = vmatprep.subr.bf16.mxu0 0
      %2422 = vmatpush1.bf16.msra.mxu0 0
      %2423 = vmatprep.subr.bf16.mxu0 0
      %2424 = vmatpush1.bf16.msra.mxu0 0
      %2425 = vmatprep.subr.bf16.mxu0 0
      %2426 = vmatpush1.bf16.msra.mxu0 0
      %2427 = vmatprep.subr.bf16.mxu0 0
      %2428 = vmatpush1.bf16.msra.mxu0 0
      %2429 = vmatprep.subr.bf16.mxu0 0
      %2430 = vmatpush1.bf16.msra.mxu0 0
      %2431 = vmatprep.subr.bf16.mxu0 0
      %2432 = vmatpush1.bf16.msra.mxu0 0
      %2433 = vmatprep.subr.bf16.mxu0 0
      %2434 = vmatpush1.bf16.msra.mxu0 0
      %2435 = vmatprep.subr.bf16.mxu0 0
      %2436 = vmatpush1.bf16.msra.mxu0 0
      %2437 = vmatprep.subr.bf16.mxu0 0
      %2438 = vmatpush1.bf16.msra.mxu0 0
      %2439 = vmatprep.subr.bf16.mxu0 0
      %2440 = vmatpush1.bf16.msra.mxu0 0
      %2441 = vmatprep.subr.bf16.mxu0 0
      %2442 = vmatpush1.bf16.msra.mxu0 0
      %2443 = vmatprep.subr.bf16.mxu0 0
      %2444 = vmatpush1.bf16.msra.mxu0 0
      %2445 = vmatprep.subr.bf16.mxu0 0
      %2446 = vmatpush1.bf16.msra.mxu0 0
      %2447 = vmatprep.subr.bf16.mxu0 0
      %2448 = vmatpush1.bf16.msra.mxu0 0
      %2449 = vmatprep.subr.bf16.mxu0 0
      %2450 = vmatpush1.bf16.msra.mxu0 0
      %2451 = vmatprep.mubr.bf16.mxu0 0
      %2452 = vmatmul.mubr.bf16.gmra.mrb[0].mxu0 %v2417
      %v2453 = vpop.f32.mrb[0].mxu0
      %v2454 = vadd.f32 0.0, %v2453
      %v2455 = vpop.f32.mrb[0].mxu0
      %v2456 = vpop.f32.mrb[0].mxu0
      %v2457 = vadd.f32 0.0, %v2456
      %v2458 = vpop.f32.mrb[0].mxu0
      %2459 = vdwg.mxu0
      %2461 = vrot.lane.b32.xlu0 %v2315, 64
      %v2462 = vpop.permute.xlu0 %2461
      %v2465 = vsel %vm1090, %v2311, 0
      %2467 = vmatprep.subr.bf16.mxu0 0
      %2468 = vmatpush1.bf16.msra.mxu0 %v2462
      %2469 = vmatprep.subr.bf16.mxu0 0
      %2470 = vmatpush1.bf16.msra.mxu0 0
      %2471 = vmatprep.subr.bf16.mxu0 0
      %2472 = vmatpush1.bf16.msra.mxu0 0
      %2473 = vmatprep.subr.bf16.mxu0 0
      %2474 = vmatpush1.bf16.msra.mxu0 0
      %2475 = vmatprep.subr.bf16.mxu0 0
      %2476 = vmatpush1.bf16.msra.mxu0 0
      %2477 = vmatprep.subr.bf16.mxu0 0
      %2478 = vmatpush1.bf16.msra.mxu0 0
      %2479 = vmatprep.subr.bf16.mxu0 0
      %2480 = vmatpush1.bf16.msra.mxu0 0
      %2481 = vmatprep.subr.bf16.mxu0 0
      %2482 = vmatpush1.bf16.msra.mxu0 0
      %2483 = vmatprep.subr.bf16.mxu0 0
      %2484 = vmatpush1.bf16.msra.mxu0 0
      %2485 = vmatprep.subr.bf16.mxu0 0
      %2486 = vmatpush1.bf16.msra.mxu0 0
      %2487 = vmatprep.subr.bf16.mxu0 0
      %2488 = vmatpush1.bf16.msra.mxu0 0
      %2489 = vmatprep.subr.bf16.mxu0 0
      %2490 = vmatpush1.bf16.msra.mxu0 0
      %2491 = vmatprep.subr.bf16.mxu0 0
      %2492 = vmatpush1.bf16.msra.mxu0 0
      %2493 = vmatprep.subr.bf16.mxu0 0
      %2494 = vmatpush1.bf16.msra.mxu0 0
      %2495 = vmatprep.subr.bf16.mxu0 0
      %2496 = vmatpush1.bf16.msra.mxu0 0
      %2497 = vmatprep.subr.bf16.mxu0 0
      %2498 = vmatpush1.bf16.msra.mxu0 0
      %2499 = vmatprep.mubr.bf16.mxu0 0
      %2500 = vmatmul.mubr.bf16.gmra.mrb[0].mxu0 %v2465
      %v2501 = vpop.f32.mrb[0].mxu0
      %v2502 = vadd.f32 0.0, %v2501
      %v2503 = vpop.f32.mrb[0].mxu0
      %v2504 = vpop.f32.mrb[0].mxu0
      %v2505 = vadd.f32 0.0, %v2504
      %v2506 = vpop.f32.mrb[0].mxu0
      %2507 = vdwg.mxu0
      %v2508 = vmul.f32 %v2358, %v2300
      %v2509 = vmul.f32 %v2361, %v2301
      %v2510 = vmul.f32 %v2406, %v2302
      %v2511 = vmul.f32 %v2409, %v2303
      %v2512 = vmul.f32 %v2454, %v2304
      %v2513 = vmul.f32 %v2457, %v2305
      %v2514 = vmul.f32 %v2502, %v2306
      %v2515 = vmul.f32 %v2505, %v2307
      %2518 = vrot.lane.b32.xlu0 %v2510, 8
      %v2519 = vpop.permute.xlu0 %2518
      %2520 = vrot.lane.b32.xlu0 %v2511, 8
      %v2521 = vpop.permute.xlu0 %2520
      %2526 = vrot.lane.b32.xlu0 %v2512, 16
      %v2527 = vpop.permute.xlu0 %2526
      %2528 = vrot.lane.b32.xlu0 %v2513, 16
      %v2529 = vpop.permute.xlu0 %2528
      %2534 = vrot.lane.b32.xlu0 %v2514, 24
      %v2535 = vpop.permute.xlu0 %2534
      %2536 = vrot.lane.b32.xlu0 %v2515, 24
      %v2537 = vpop.permute.xlu0 %2536
      %v2540 = vsel %vm892, %v2508, %v2519
      %v2541 = vsel %vm892, %v2509, %v2521
      %v2542 = vsel %vm1090, %v2540, %v2527
      %v2543 = vsel %vm1090, %v2541, %v2529
      %v2544 = vsel %vm1407, %v2542, %v2535
      %v2545 = vsel %vm1407, %v2543, %v2537
      %v2546 = vpack.c.bf16 %v2545, %v2544
      %s2547 = scalar_lea.vmem %s6, 16
      %v2548 = vld [vmem:[%s2547] sm:$0xf]
      %v2549 = vld [vmem:[%s2547 + $0x4] sm:$0xf]
      %v2550 = vld [vmem:[%s2547 + $0x8] sm:$0xf]
      %v2551 = vld [vmem:[%s2547 + $0xc] sm:$0xf]
      %v2556 = vunpack.c.l.b16 %v2548
      %v2557 = vunpack.c.l.b16 %v2549
      %v2558 = vunpack.c.l.b16 %v2550
      %v2559 = vunpack.c.l.b16 %v2551
      %v2560 = vpack.c.b16 %v2557, %v2556
      %v2561 = vpack.c.b16 %v2559, %v2558
      %v2565 = vsel %vm544, %v2546, 0
      %2567 = vmatprep.subr.bf16.mxu0 0
      %2568 = vmatpush1.bf16.msra.mxu0 %v2560
      %2569 = vmatprep.subr.bf16.mxu0 0
      %2570 = vmatpush1.bf16.msra.mxu0 %v2561
      %2571 = vmatprep.subr.bf16.mxu0 0
      %2572 = vmatpush1.bf16.msra.mxu0 0
      %2573 = vmatprep.subr.bf16.mxu0 0
      %2574 = vmatpush1.bf16.msra.mxu0 0
      %2575 = vmatprep.subr.bf16.mxu0 0
      %2576 = vmatpush1.bf16.msra.mxu0 0
      %2577 = vmatprep.subr.bf16.mxu0 0
      %2578 = vmatpush1.bf16.msra.mxu0 0
      %2579 = vmatprep.subr.bf16.mxu0 0
      %2580 = vmatpush1.bf16.msra.mxu0 0
      %2581 = vmatprep.subr.bf16.mxu0 0
      %2582 = vmatpush1.bf16.msra.mxu0 0
      %2583 = vmatprep.subr.bf16.mxu0 0
      %2584 = vmatpush1.bf16.msra.mxu0 0
      %2585 = vmatprep.subr.bf16.mxu0 0
      %2586 = vmatpush1.bf16.msra.mxu0 0
      %2587 = vmatprep.subr.bf16.mxu0 0
      %2588 = vmatpush1.bf16.msra.mxu0 0
      %2589 = vmatprep.subr.bf16.mxu0 0
      %2590 = vmatpush1.bf16.msra.mxu0 0
      %2591 = vmatprep.subr.bf16.mxu0 0
      %2592 = vmatpush1.bf16.msra.mxu0 0
      %2593 = vmatprep.subr.bf16.mxu0 0
      %2594 = vmatpush1.bf16.msra.mxu0 0
      %2595 = vmatprep.subr.bf16.mxu0 0
      %2596 = vmatpush1.bf16.msra.mxu0 0
      %2597 = vmatprep.subr.bf16.mxu0 0
      %2598 = vmatpush1.bf16.msra.mxu0 0
      %2599 = vmatprep.mubr.bf16.mxu0 0
      %2600 = vmatmul.mubr.bf16.gmra.mrb[0].mxu0 %v2565
      %v2601 = vpop.f32.mrb[0].mxu0
      %v2602 = vadd.f32 0.0, %v2601
      %v2603 = vpop.f32.mrb[0].mxu0
      %v2604 = vpop.f32.mrb[0].mxu0
      %v2605 = vadd.f32 0.0, %v2604
      %v2606 = vpop.f32.mrb[0].mxu0
      %2607 = vdwg.mxu0
      %v2608 = vadd.f32 %v1686, %v2602
      %v2609 = vadd.f32 %v1687, %v2605
      %s2610 = scalar_lea.vmem %s7, 1
      %v2611 = vld [vmem:[%s2610] sm:$0x1]
      %v2613 = vlaneseq
      %v2614 = vshrl.u32 %v2613, 7
      %v2615 = vsub.s32 0, %v2614
      %v2616 = vrot.slane %v2611, %v2615
      %v2618 = vadd.f32 %v2608, %v2616
      %v2619 = vadd.f32 %v2609, %v2616
      %s2620 = scalar_lea.vmem %s8, 1
      %v2621 = vld [vmem:[%s2620] sm:$0x1]
      %v2622 = vmul.f32 %v2618, %v2618
      %v2623 = vmul.f32 %v2619, %v2619
      %v2624 = vsel %vm544, %v2622, 0.0
      %2625 = vadd.xlane.f32.xlu0 %v2624
      %v2626 = vpop.xlane.xlu0 %2625
      %v2627 = vsel %vm544, %v2623, 0.0
      %2628 = vadd.xlane.f32.xlu0 %v2627
      %v2629 = vpop.xlane.xlu0 %2628
      %v2630 = vmul.f32 %v2626, %v551
      %v2631 = vmul.f32 %v2629, %v551
      %v2632 = vadd.f32 %v2630, 1e-06
      %v2633 = vadd.f32 %v2631, 1e-06
      %v2634 = vrsqrt.pop %v2632
      %v2635 = vrsqrt.pop %v2633
      %v2636 = vmul.f32 %v2618, %v2634
      %v2637 = vmul.f32 %v2619, %v2635
      %v2639 = vlaneseq
      %v2640 = vshrl.u32 %v2639, 7
      %v2641 = vsub.s32 0, %v2640
      %v2642 = vrot.slane %v2621, %v2641
      %v2644 = vmul.f32 %v2636, %v2642
      %v2645 = vmul.f32 %v2637, %v2642
      %v2646 = vpack.c.bf16 %v2645, %v2644
      %s2647 = scalar_lea.vmem %s9, 16
      %v2648 = vld [vmem:[%s2647] sm:$0xf]
      %v2649 = vld [vmem:[%s2647 + $0x4] sm:$0xf]
      %v2650 = vld [vmem:[%s2647 + $0x8] sm:$0xf]
      %v2651 = vld [vmem:[%s2647 + $0xc] sm:$0xf]
      %s2652 = scalar_lea.vmem %s10, 1
      %v2653 = vld [vmem:[%s2652] sm:$0x1]
      %v2655 = vlaneseq
      %v2656 = vshrl.u32 %v2655, 7
      %v2657 = vsub.s32 0, %v2656
      %v2658 = vrot.slane %v2653, %v2657
      %v2664 = vunpack.c.l.b16 %v2648
      %v2665 = vunpack.c.l.b16 %v2649
      %v2666 = vunpack.c.l.b16 %v2650
      %v2667 = vunpack.c.l.b16 %v2651
      %v2668 = vpack.c.b16 %v2665, %v2664
      %v2669 = vpack.c.b16 %v2667, %v2666
      %v2673 = vsel %vm544, %v2646, 0
      %2675 = vmatprep.subr.bf16.mxu0 0
      %2676 = vmatpush1.bf16.msra.mxu0 %v2668
      %2677 = vmatprep.subr.bf16.mxu0 0
      %2678 = vmatpush1.bf16.msra.mxu0 %v2669
      %2679 = vmatprep.subr.bf16.mxu0 0
      %2680 = vmatpush1.bf16.msra.mxu0 0
      %2681 = vmatprep.subr.bf16.mxu0 0
      %2682 = vmatpush1.bf16.msra.mxu0 0
      %2683 = vmatprep.subr.bf16.mxu0 0
      %2684 = vmatpush1.bf16.msra.mxu0 0
      %2685 = vmatprep.subr.bf16.mxu0 0
      %2686 = vmatpush1.bf16.msra.mxu0 0
      %2687 = vmatprep.subr.bf16.mxu0 0
      %2688 = vmatpush1.bf16.msra.mxu0 0
      %2689 = vmatprep.subr.bf16.mxu0 0
      %2690 = vmatpush1.bf16.msra.mxu0 0
      %2691 = vmatprep.subr.bf16.mxu0 0
      %2692 = vmatpush1.bf16.msra.mxu0 0
      %2693 = vmatprep.subr.bf16.mxu0 0
      %2694 = vmatpush1.bf16.msra.mxu0 0
      %2695 = vmatprep.subr.bf16.mxu0 0
      %2696 = vmatpush1.bf16.msra.mxu0 0
      %2697 = vmatprep.subr.bf16.mxu0 0
      %2698 = vmatpush1.bf16.msra.mxu0 0
      %2699 = vmatprep.subr.bf16.mxu0 0
      %2700 = vmatpush1.bf16.msra.mxu0 0
      %2701 = vmatprep.subr.bf16.mxu0 0
      %2702 = vmatpush1.bf16.msra.mxu0 0
      %2703 = vmatprep.subr.bf16.mxu0 0
      %2704 = vmatpush1.bf16.msra.mxu0 0
      %2705 = vmatprep.subr.bf16.mxu0 0
      %2706 = vmatpush1.bf16.msra.mxu0 0
      %2707 = vmatprep.mubr.bf16.mxu0 0
      %2708 = vmatmul.mubr.bf16.gmra.mrb[0].mxu0 %v2673
      %v2709 = vpop.f32.mrb[0].mxu0
      %v2710 = vadd.f32 %v2658, %v2709
      %v2711 = vpop.f32.mrb[0].mxu0
      %v2712 = vpop.f32.mrb[0].mxu0
      %v2713 = vadd.f32 %v2658, %v2712
      %v2714 = vpop.f32.mrb[0].mxu0
      %2715 = vdwg.mxu0
      %v2716 = vxor.u32 %v2710, 2147483648
      %v2717 = vxor.u32 %v2713, 2147483648
      %v2718 = vmul.f32 %v2716, 1.442695
      %v2719 = vpow.pop %v2718
      %v2720 = vmul.f32 %v2717, 1.442695
      %v2721 = vpow.pop %v2720
      %v2722 = vadd.f32 %v2719, 1.0
      %v2723 = vadd.f32 %v2721, 1.0
      %v2724 = vrcp.pop %v2722
      %v2725 = vmul.f32 1.0, %v2724
      %v2726 = vrcp.pop %v2723
      %v2727 = vmul.f32 1.0, %v2726
      %v2728 = vmul.f32 %v2710, %v2725
      %v2729 = vmul.f32 %v2713, %v2727
      %2732 = vrot.lane.b32.xlu0 %v2710, 64
      %v2733 = vpop.permute.xlu0 %2732
      %2734 = vrot.lane.b32.xlu0 %v2713, 64
      %v2735 = vpop.permute.xlu0 %2734
      %v2738 = vmul.f32 %v2728, %v2733
      %v2739 = vmul.f32 %v2729, %v2735
      %v2740 = vpack.c.bf16 %v2739, %v2738
      %s2741 = scalar_lea.vmem %s11, 32
      %v2742 = vld [vmem:[%s2741] sm:$0xf]
      %v2743 = vld [vmem:[%s2741 + $0x4] sm:$0xf]
      %v2744 = vld [vmem:[%s2741 + $0x8] sm:$0xf]
      %v2745 = vld [vmem:[%s2741 + $0xc] sm:$0xf]
      %v2746 = vld [vmem:[%s2741 + $0x10] sm:$0xf]
      %v2747 = vld [vmem:[%s2741 + $0x14] sm:$0xf]
      %v2748 = vld [vmem:[%s2741 + $0x18] sm:$0xf]
      %v2749 = vld [vmem:[%s2741 + $0x1c] sm:$0xf]
      %v2758 = vunpack.c.l.b16 %v2742
      %v2759 = vunpack.c.l.b16 %v2743
      %v2760 = vunpack.c.l.b16 %v2744
      %v2761 = vunpack.c.l.b16 %v2745
      %v2762 = vunpack.c.l.b16 %v2746
      %v2763 = vunpack.c.l.b16 %v2747
      %v2764 = vunpack.c.l.b16 %v2748
      %v2765 = vunpack.c.l.b16 %v2749
      %v2766 = vpack.c.b16 %v2759, %v2758
      %v2767 = vpack.c.b16 %v2761, %v2760
      %v2768 = vpack.c.b16 %v2763, %v2762
      %v2769 = vpack.c.b16 %v2765, %v2764
      %v2775 = vsel %vm1632, %v2740, 0
      %2777 = vmatprep.subr.bf16.mxu0 0
      %2778 = vmatpush1.bf16.msra.mxu0 %v2766
      %2779 = vmatprep.subr.bf16.mxu0 0
      %2780 = vmatpush1.bf16.msra.mxu0 %v2767
      %2781 = vmatprep.subr.bf16.mxu0 0
      %2782 = vmatpush1.bf16.msra.mxu0 %v2768
      %2783 = vmatprep.subr.bf16.mxu0 0
      %2784 = vmatpush1.bf16.msra.mxu0 %v2769
      %2785 = vmatprep.subr.bf16.mxu0 0
      %2786 = vmatpush1.bf16.msra.mxu0 0
      %2787 = vmatprep.subr.bf16.mxu0 0
      %2788 = vmatpush1.bf16.msra.mxu0 0
      %2789 = vmatprep.subr.bf16.mxu0 0
      %2790 = vmatpush1.bf16.msra.mxu0 0
      %2791 = vmatprep.subr.bf16.mxu0 0
      %2792 = vmatpush1.bf16.msra.mxu0 0
      %2793 = vmatprep.subr.bf16.mxu0 0
      %2794 = vmatpush1.bf16.msra.mxu0 0
      %2795 = vmatprep.subr.bf16.mxu0 0
      %2796 = vmatpush1.bf16.msra.mxu0 0
      %2797 = vmatprep.subr.bf16.mxu0 0
      %2798 = vmatpush1.bf16.msra.mxu0 0
      %2799 = vmatprep.subr.bf16.mxu0 0
      %2800 = vmatpush1.bf16.msra.mxu0 0
      %2801 = vmatprep.subr.bf16.mxu0 0
      %2802 = vmatpush1.bf16.msra.mxu0 0
      %2803 = vmatprep.subr.bf16.mxu0 0
      %2804 = vmatpush1.bf16.msra.mxu0 0
      %2805 = vmatprep.subr.bf16.mxu0 0
      %2806 = vmatpush1.bf16.msra.mxu0 0
      %2807 = vmatprep.subr.bf16.mxu0 0
      %2808 = vmatpush1.bf16.msra.mxu0 0
      %2809 = vmatprep.mubr.bf16.mxu0 0
      %2810 = vmatmul.mubr.bf16.gmra.mrb[0].mxu0 %v2775
      %v2811 = vpop.f32.mrb[0].mxu0
      %v2812 = vadd.f32 0.0, %v2811
      %v2813 = vpop.f32.mrb[0].mxu0
      %v2814 = vpop.f32.mrb[0].mxu0
      %v2815 = vadd.f32 0.0, %v2814
      %v2816 = vpop.f32.mrb[0].mxu0
      %2817 = vdwg.mxu0
      %v2818 = vadd.f32 %v2618, %v2812
      %v2819 = vadd.f32 %v2619, %v2815
      %s2820 = scalar_lea.vmem %s12, 1
      %v2821 = vld [vmem:[%s2820] sm:$0x1]
      %v2823 = vlaneseq
      %v2824 = vshrl.u32 %v2823, 7
      %v2825 = vsub.s32 0, %v2824
      %v2826 = vrot.slane %v2821, %v2825
      %v2828 = vadd.f32 %v2818, %v2826
      %v2829 = vadd.f32 %v2819, %v2826
      %v2830 = vld [vmem:[%s13] sm:$0x1]
      %v2831 = vmul.f32 %v2828, %v2828
      %v2832 = vmul.f32 %v2829, %v2829
      %v2833 = vsel %vm544, %v2831, 0.0
      %2834 = vadd.xlane.f32.xlu0 %v2833
      %v2835 = vpop.xlane.xlu0 %2834
      %v2836 = vsel %vm544, %v2832, 0.0
      %2837 = vadd.xlane.f32.xlu0 %v2836
      %v2838 = vpop.xlane.xlu0 %2837
      %v2839 = vmul.f32 %v2835, %v551
      %v2840 = vmul.f32 %v2838, %v551
      %v2841 = vadd.f32 %v2839, 1e-06
      %v2842 = vadd.f32 %v2840, 1e-06
      %v2843 = vrsqrt.pop %v2841
      %v2844 = vrsqrt.pop %v2842
      %v2845 = vmul.f32 %v2828, %v2843
      %v2846 = vmul.f32 %v2829, %v2844
      %v2848 = vlaneseq
      %v2849 = vshrl.u32 %v2848, 7
      %v2850 = vsub.s32 0, %v2849
      %v2851 = vrot.slane %v2830, %v2850
      %v2853 = vmul.f32 %v2845, %v2851
      %v2854 = vmul.f32 %v2846, %v2851
      %v2855 = vpack.c.bf16 %v2854, %v2853
      %v2856 = vld [vmem:[%s14] sm:$0xf]
      %v2857 = vld [vmem:[%s14 + $0x4] sm:$0xf]
      %v2858 = vld [vmem:[%s14 + $0x8] sm:$0xf]
      %v2859 = vld [vmem:[%s14 + $0xc] sm:$0xf]
      %v2860 = vld [vmem:[%s15] sm:$0x1]
      %v2862 = vlaneseq
      %v2863 = vshrl.u32 %v2862, 7
      %v2864 = vsub.s32 0, %v2863
      %v2865 = vrot.slane %v2860, %v2864
      %v2871 = vunpack.c.l.b16 %v2856
      %v2872 = vunpack.c.l.b16 %v2857
      %v2873 = vunpack.c.l.b16 %v2858
      %v2874 = vunpack.c.l.b16 %v2859
      %v2875 = vpack.c.b16 %v2872, %v2871
      %v2876 = vpack.c.b16 %v2874, %v2873
      %v2880 = vsel %vm544, %v2855, 0
      %2882 = vmatprep.subr.bf16.mxu0 0
      %2883 = vmatpush1.bf16.msra.mxu0 %v2875
      %2884 = vmatprep.subr.bf16.mxu0 0
      %2885 = vmatpush1.bf16.msra.mxu0 %v2876
      %2886 = vmatprep.subr.bf16.mxu0 0
      %2887 = vmatpush1.bf16.msra.mxu0 0
      %2888 = vmatprep.subr.bf16.mxu0 0
      %2889 = vmatpush1.bf16.msra.mxu0 0
      %2890 = vmatprep.subr.bf16.mxu0 0
      %2891 = vmatpush1.bf16.msra.mxu0 0
      %2892 = vmatprep.subr.bf16.mxu0 0
      %2893 = vmatpush1.bf16.msra.mxu0 0
      %2894 = vmatprep.subr.bf16.mxu0 0
      %2895 = vmatpush1.bf16.msra.mxu0 0
      %2896 = vmatprep.subr.bf16.mxu0 0
      %2897 = vmatpush1.bf16.msra.mxu0 0
      %2898 = vmatprep.subr.bf16.mxu0 0
      %2899 = vmatpush1.bf16.msra.mxu0 0
      %2900 = vmatprep.subr.bf16.mxu0 0
      %2901 = vmatpush1.bf16.msra.mxu0 0
      %2902 = vmatprep.subr.bf16.mxu0 0
      %2903 = vmatpush1.bf16.msra.mxu0 0
      %2904 = vmatprep.subr.bf16.mxu0 0
      %2905 = vmatpush1.bf16.msra.mxu0 0
      %2906 = vmatprep.subr.bf16.mxu0 0
      %2907 = vmatpush1.bf16.msra.mxu0 0
      %2908 = vmatprep.subr.bf16.mxu0 0
      %2909 = vmatpush1.bf16.msra.mxu0 0
      %2910 = vmatprep.subr.bf16.mxu0 0
      %2911 = vmatpush1.bf16.msra.mxu0 0
      %2912 = vmatprep.subr.bf16.mxu0 0
      %2913 = vmatpush1.bf16.msra.mxu0 0
      %2914 = vmatprep.mubr.bf16.mxu0 0
      %2915 = vmatmul.mubr.bf16.gmra.mrb[0].mxu0 %v2880
      %v2916 = vpop.f32.mrb[0].mxu0
      %v2917 = vadd.f32 %v2865, %v2916
      %v2918 = vpop.f32.mrb[0].mxu0
      %v2919 = vpop.f32.mrb[0].mxu0
      %v2920 = vadd.f32 %v2865, %v2919
      %v2921 = vpop.f32.mrb[0].mxu0
      %2922 = vdwg.mxu0
      %2923 = vst [vmem:[%s521] sm:$0xff] %v2917
      %2924 = vst [vmem:[%s521 + $0x8] sm:$0xff] %v2920
      %p2925 = scmp.lt.s32.totalorder %s27, 1
      %s2926 = scalar_select %p2925, %s27, 1
      %s2927 = smul.addr %s2926, 2
      %s2928 = smul.addr %s2927, 8
      %s2929 = scalar_lea.vmem %s16, %s2928
      // Predicated region
      $region85: #{decoder_forward.1} parent=83 // pred_check
        %p2930 = pneg %p386
      $region86: #{decoder_forward.1} parent=83 // pred_check_branch
        %2932 = sbr.rel (%p2930) target = $region88
      $region87: #{decoder_forward.1} parent=83 // pred_region
        _
      $region88: #{decoder_forward.1} parent=83 // pred_fallthru
        _
    $region84: #{decoder_forward.1} parent=5 // pred_fallthru
      _
    %p2933 = scmp.le.s32.totalorder 2, %s22
    // Predicated region
    $region89: #{decoder_forward.1} parent=5 // pred_check
      %p2934 = pneg %p2933
    $region90: #{decoder_forward.1} parent=5 // pred_check_branch
      %2936 = sbr.rel (%p2934) target = $region92
    $region91: #{decoder_forward.1} parent=5 // pred_region
      %s2937 = ssub.s32 %s22, 2
      // Predicated region
      $region93: #{decoder_forward.1} parent=91 // pred_check
        %p2938 = pneg %p392
      $region94: #{decoder_forward.1} parent=91 // pred_check_branch
        %2940 = sbr.rel (%p2938) target = $region96
      $region95: #{decoder_forward.1} parent=91 // pred_region
        %p2941 = scmp.lt.s32.totalorder %s28, 1
        %s2942 = scalar_select %p2941, %s28, 1
        %s2943 = smul.addr %s2942, 2
        %s2944 = smul.addr %s2943, 8
        %s2945 = scalar_lea.vmem %s16, %s2944
      $region96: #{decoder_forward.1} parent=91 // pred_fallthru
        _
    $region92: #{decoder_forward.1} parent=5 // pred_fallthru
      _
  $region6: #{decoder_forward.1} parent=0 // loop_footer
    %s26 = sadd.s32 1, %s22
  $region7: #{decoder_forward.1} parent=0 // loop_footer_branch
    %21 = sbr.rel target = $region3
  $region8: #{decoder_forward.1} parent=0 // loop_exit
    _

</llo_original>
